<compile_context>
chip_gen: v5e
topology: v5e:2x2
jax: 0.10.0
libtpu: 0.0.40
codegen_flags: <defaults>
</compile_context>

<pallas_src>
import numpy as np
import jax
import jax.numpy as jnp
from jax.experimental import pallas as pl
from jax.experimental.pallas import tpu as pltpu


# ---------------- fused bidirectional LSTM layer (one kernel per layer) ----------------
def _bilstm_layer_kernel(x_ref, wih_ref, whh_f_ref, whh_b_ref, b_ref, len_ref,
                         out_ref, hlast_ref, gates_ref, outf_ref, outb_ref):
    T, B, D = x_ref.shape
    H = whh_f_ref.shape[0]
    G = 4 * H

    # Hoisted input projection: one big MXU GEMM for all timesteps & both directions.
    x2d = x_ref[...].reshape(T * B, D)
    g_in = (jnp.dot(x2d, wih_ref[...], preferred_element_type=jnp.float32)
            + b_ref[...])                                   # (T*B, 8H)
    gates_ref[...] = g_in.reshape(T, B, 2 * G)

    whh_f = whh_f_ref[...]                                  # (H, 4H)
    whh_b = whh_b_ref[...]                                  # (H, 4H)
    lens = len_ref[...]                                     # (B, 1) int32

    def cell(pre, c):
        # PyTorch gate order i, f, g, o; H=128 -> lane-aligned static slices.
        i = jax.nn.sigmoid(pre[:, 0 * H:1 * H])
        f = jax.nn.sigmoid(pre[:, 1 * H:2 * H])
        g = jnp.tanh(pre[:, 2 * H:3 * H])
        o = jax.nn.sigmoid(pre[:, 3 * H:4 * H])
        c_new = f * c + i * g
        return o * jnp.tanh(c_new), c_new

    def step(s, carry):
        h_f, c_f, h_b, c_b = carry
        tf = s                       # forward time index
        tb = T - 1 - s               # backward time index
        pre_f = gates_ref[tf][:, 0:G] + jnp.dot(
            h_f, whh_f, preferred_element_type=jnp.float32)
        pre_b = gates_ref[tb][:, G:2 * G] + jnp.dot(
            h_b, whh_b, preferred_element_type=jnp.float32)
        hf_new, cf_new = cell(pre_f, c_f)
        hb_new, cb_new = cell(pre_b, c_b)
        vf = tf < lens               # packed-sequence semantics
        vb = tb < lens
        outf_ref[tf] = jnp.where(vf, hf_new, 0.0)   # pad_packed_sequence zero-pads
        outb_ref[tb] = jnp.where(vb, hb_new, 0.0)
        h_f = jnp.where(vf, hf_new, h_f)
        c_f = jnp.where(vf, cf_new, c_f)
        h_b = jnp.where(vb, hb_new, h_b)
        c_b = jnp.where(vb, cb_new, c_b)
        return h_f, c_f, h_b, c_b

    z = jnp.zeros((B, H), jnp.float32)
    h_f, _, h_b, _ = jax.lax.fori_loop(0, T, step, (z, z, z, z), unroll=True)

    out_ref[:, :, 0:H] = outf_ref[...]
    out_ref[:, :, H:2 * H] = outb_ref[...]
    hlast_ref[:, 0:H] = h_f
    hlast_ref[:, H:2 * H] = h_b


def _run_bilstm_layer(x_tbd, lens_b1, lp, *, hidden):
    T, B, _ = x_tbd.shape
    H = hidden
    # TODO(synk): for long sequences, add a time-chunked grid with h/c carried in
    # VMEM scratch so x/out are streamed (matters for v7x's 64 MiB VMEM).
    out, h_last = pl.pallas_call(
        _bilstm_layer_kernel,
        out_shape=(jax.ShapeDtypeStruct((T, B, 2 * H), jnp.float32),
                   jax.ShapeDtypeStruct((B, 2 * H), jnp.float32)),
        scratch_shapes=[pltpu.VMEM((T, B, 8 * H), jnp.float32),   # hoisted input gates
                        pltpu.VMEM((T, B, H), jnp.float32),       # fwd outputs
                        pltpu.VMEM((T, B, H), jnp.float32)],      # bwd outputs
    )(x_tbd, lp["wih"], lp["whh_f"], lp["whh_b"], lp["b"], lens_b1)
    return out, h_last


# ------------------------------- Attention kernel -------------------------------
def _attention_kernel(hist_ref, ctx_ref, wh_ref, wc_ref, b_ref, v_ref, bv_ref,
                      len_ref, att_ref, w_ref):
    BB, T, E = hist_ref.shape
    hist = hist_ref[...]                                         # (BB, T, E)
    # Hoisted projections: single MXU GEMMs over the whole batch block.
    ph = jnp.dot(hist.reshape(BB * T, E), wh_ref[...],
                 preferred_element_type=jnp.float32)             # (BB*T, A)
    pc = jnp.dot(ctx_ref[...], wc_ref[...],
                 preferred_element_type=jnp.float32)             # (BB, A)
    v = v_ref[...]                                               # (1, A)
    bias = b_ref[...]                                            # (1, A)
    bv = bv_ref[0, 0]
    t_ids = jax.lax.broadcasted_iota(jnp.int32, (T, 1), 0)       # (T, 1)

    for i in range(BB):   # static unroll: only cheap vector ops remain per row
        e_i = jnp.tanh(ph[i * T:(i + 1) * T, :] + pc[i:i + 1, :] + bias)   # (T, A)
        s_i = jnp.sum(e_i * v, axis=-1, keepdims=True) + bv                # (T, 1)
        valid = t_ids < len_ref[i, 0]
        s_i = jnp.where(valid, s_i, -1e30)
        m = jnp.max(s_i, axis=0, keepdims=True)
        ex = jnp.where(valid, jnp.exp(s_i - m), 0.0)
        denom = jnp.maximum(jnp.sum(ex, axis=0, keepdims=True), 1e-30)  # len==0 guard
        w_i = ex * pl.reciprocal(denom, approx=True)                    # (T, 1)
        att_ref[i] = jnp.sum(w_i * hist[i], axis=0, keepdims=True)      # (1, E)
        w_ref[i] = w_i                                                  # (T, 1)


def _run_attention(history, context, lengths, p):
    B, T, E = history.shape
    A = p["wh"].shape[1]
    BB = min(8, B)
    assert B % BB == 0
    lens = lengths.reshape(B, 1).astype(jnp.int32)
    att, w = pl.pallas_call(
        _attention_kernel,
        grid=(B // BB,),
        in_specs=[
            pl.BlockSpec((BB, T, E), lambda g: (g, 0, 0)),   # history
            pl.BlockSpec((BB, E), lambda g: (g, 0)),         # context
            pl.BlockSpec((E, A), lambda g: (0, 0)),          # W_h
            pl.BlockSpec((E, A), lambda g: (0, 0)),          # W_c
            pl.BlockSpec((1, A), lambda g: (0, 0)),          # b (b_h + b_c)
            pl.BlockSpec((1, A), lambda g: (0, 0)),          # v (row vector)
            pl.BlockSpec((1, 1), lambda g: (0, 0)),          # v bias
            pl.BlockSpec((BB, 1), lambda g: (g, 0)),         # lengths
        ],
        out_specs=(
            pl.BlockSpec((BB, 1, E), lambda g: (g, 0, 0)),
            pl.BlockSpec((BB, T, 1), lambda g: (g, 0, 0)),
        ),
        out_shape=(jax.ShapeDtypeStruct((B, 1, E), jnp.float32),
                   jax.ShapeDtypeStruct((B, T, 1), jnp.float32)),
        compiler_params=pltpu.CompilerParams(dimension_semantics=("parallel",)),
    )(history, context.astype(jnp.float32), p["wh"], p["wc"], p["b"], p["v"],
      p["bv"], lens)
    return att[:, 0, :], w[:, :, 0]


# ------------------------------ Module forward pass ------------------------------
def embedding_encoder_forward(encoder_in, lengths, params, *, encoder_out_dim):
    """encoder_in: (B, T, embedding_dim) batch-first, lengths: (B,) int."""
    B, T, _ = encoder_in.shape
    H = encoder_out_dim // 2
    x_tbd = jnp.transpose(encoder_in, (1, 0, 2)).astype(jnp.float32)
    lens_b1 = lengths.reshape(B, 1).astype(jnp.int32)

    layer_in = x_tbd
    h_last = None
    for lp in params["lstm"]:
        layer_in, h_last = _run_bilstm_layer(layer_in, lens_b1, lp, hidden=H)
        # TODO(synk): inter-layer encoder_dropout is an eval-mode identity; not applied.

    encoder_out = jnp.transpose(layer_in, (1, 0, 2))        # (B, T, encoder_out_dim)
    return _run_attention(encoder_out, h_last, lengths, params["att"])


# ------------------------------ Parameter init (synthetic) -----------------------
def init_params(key, embedding_dim, encoder_out_dim, num_layers, attention_dim):
    H = encoder_out_dim // 2
    keys = iter(jax.random.split(key, 4 * num_layers + 5))

    def nrm(shape, scale=0.1):
        return (scale * jax.random.normal(next(keys), shape)).astype(jnp.float32)

    lstm = []
    for l in range(num_layers):
        d_in = embedding_dim if l == 0 else encoder_out_dim
        lstm.append({
            "wih": nrm((d_in, 8 * H)),      # [:, :4H] = fwd, [:, 4H:] = bwd (pre-transposed)
            "whh_f": nrm((H, 4 * H)),
            "whh_b": nrm((H, 4 * H)),
            "b": nrm((1, 8 * H)),           # b_ih + b_hh combined, fwd|bwd
        })
    att = {
        "wh": nrm((encoder_out_dim, attention_dim)),
        "wc": nrm((encoder_out_dim, attention_dim)),
        "b": nrm((1, attention_dim)),
        "v": nrm((1, attention_dim)),       # row vector (score = sum(e*v, -1))
        "bv": nrm((1, 1)),
    }
    return {"lstm": lstm, "att": att}


# ------------------------------ Pure-JAX reference -------------------------------
def _ref_lstm_dir(x_tbd, lens_b1, wih, whh, b, hidden, reverse):
    T, B, _ = x_tbd.shape
    h = jnp.zeros((B, hidden), jnp.float32)
    c = jnp.zeros((B, hidden), jnp.float32)
    outs = [None] * T
    order = range(T - 1, -1, -1) if reverse else range(T)
    hi = jax.lax.Precision.HIGHEST
    for t in order:
        gates = (jnp.dot(x_tbd[t], wih, precision=hi)
                 + jnp.dot(h, whh, precision=hi) + b)
        i = jax.nn.sigmoid(gates[:, :hidden])
        f = jax.nn.sigmoid(gates[:, hidden:2 * hidden])
        g = jnp.tanh(gates[:, 2 * hidden:3 * hidden])
        o = jax.nn.sigmoid(gates[:, 3 * hidden:])
        c_new = f * c + i * g
        h_new = o * jnp.tanh(c_new)
        valid = t < lens_b1
        h = jnp.where(valid, h_new, h)
        c = jnp.where(valid, c_new, c)
        outs[t] = jnp.where(valid, h_new, 0.0)
    return jnp.stack(outs, axis=0), h


def _ref_attention(history, context, lengths, p):
    B, T, _ = history.shape
    hi = jax.lax.Precision.HIGHEST
    hp = jnp.einsum("bte,ea->bta", history, p["wh"], precision=hi)
    cp = jnp.einsum("be,ea->ba", context, p["wc"], precision=hi)
    e = jnp.tanh(hp + cp[:, None, :] + p["b"])
    scores = jnp.sum(e * p["v"], axis=-1) + p["bv"][0, 0]
    mask = jnp.arange(T)[None, :] < lengths[:, None]
    scores = jnp.where(mask, scores, -1e30)
    w = jax.nn.softmax(scores, axis=-1)
    w = jnp.where(mask, w, 0.0)
    attended = jnp.einsum("bt,bte->be", w, history, precision=hi)
    return attended, w


def _reference_forward(encoder_in, lengths, params, *, encoder_out_dim):
    B, T, _ = encoder_in.shape
    H = encoder_out_dim // 2
    G = 4 * H
    x_tbd = jnp.transpose(encoder_in, (1, 0, 2)).astype(jnp.float32)
    lens_b1 = lengths.reshape(B, 1).astype(jnp.int32)
    layer_in = x_tbd
    h_f = h_b = None
    for lp in params["lstm"]:
        out_f, h_f = _ref_lstm_dir(layer_in, lens_b1, lp["wih"][:, :G],
                                   lp["whh_f"], lp["b"][:, :G], H, reverse=False)
        out_b, h_b = _ref_lstm_dir(layer_in, lens_b1, lp["wih"][:, G:],
                                   lp["whh_b"], lp["b"][:, G:], H, reverse=True)
        layer_in = jnp.concatenate([out_f, out_b], axis=-1)
    encoder_out = jnp.transpose(layer_in, (1, 0, 2))
    h_last = jnp.concatenate([h_f, h_b], axis=-1)
    return _ref_attention(encoder_out, h_last, lengths, params["att"])


# ------------------------------------- Main --------------------------------------
if __name__ == "__main__":
    # Lane-dense, 128-aligned small shapes (B is a full sublane group of 8).
    B, T = 8, 8
    EMB, ENC_OUT, NUM_LAYERS, ATT = 128, 256, 2, 128

    key = jax.random.PRNGKey(0)
    k_x, k_p = jax.random.split(key)
    x = jax.random.normal(k_x, (B, T, EMB), jnp.float32)
    lengths = jnp.array([T, 5, 3, T, 7, 1, 4, 6], dtype=jnp.int32)  # variable lengths
    params = init_params(k_p, EMB, ENC_OUT, NUM_LAYERS, ATT)

    attended, weights = embedding_encoder_forward(x, lengths, params,
                                                  encoder_out_dim=ENC_OUT)
    jax.block_until_ready((attended, weights))

    ref_att, ref_w = _reference_forward(x, lengths, params, encoder_out_dim=ENC_OUT)
    np.testing.assert_allclose(np.asarray(attended), np.asarray(ref_att),
                               rtol=2e-3, atol=2e-3)
    np.testing.assert_allclose(np.asarray(weights), np.asarray(ref_w),
                               rtol=2e-3, atol=2e-3)
    assert attended.shape == (B, ENC_OUT) and weights.shape == (B, T)
    print("KERNEL_OK")
</pallas_src>

<mosaic_0001>
module attributes {stable_mosaic.version = 11 : i64} {
  func.func @_bilstm_layer_kernel(%arg0: memref<8x8x128xf32, #tpu.memory_space<vmem>>, %arg1: memref<128x1024xf32, #tpu.memory_space<vmem>>, %arg2: memref<128x512xf32, #tpu.memory_space<vmem>>, %arg3: memref<128x512xf32, #tpu.memory_space<vmem>>, %arg4: memref<1x1024xf32, #tpu.memory_space<vmem>>, %arg5: memref<8x1xi32, #tpu.memory_space<vmem>>, %arg6: memref<8x8x256xf32, #tpu.memory_space<vmem>>, %arg7: memref<8x256xf32, #tpu.memory_space<vmem>>, %arg8: memref<8x8x1024xf32, #tpu.memory_space<vmem>>, %arg9: memref<8x8x128xf32, #tpu.memory_space<vmem>>, %arg10: memref<8x8x128xf32, #tpu.memory_space<vmem>>) attributes {dimension_semantics = [], scalar_prefetch = 0 : i64, scratch_operands = 3 : i64, tpu.core_type = #tpu.core_type<tc>} {
    %c0 = arith.constant 0 : index
    %c0_0 = arith.constant 0 : index
    %c0_1 = arith.constant 0 : index
    %0 = vector.load %arg0[%c0, %c0_0, %c0_1] : memref<8x8x128xf32, #tpu.memory_space<vmem>>, vector<8x8x128xf32>
    %1 = vector.shape_cast %0 : vector<8x8x128xf32> to vector<64x128xf32>
    %c0_2 = arith.constant 0 : index
    %c0_3 = arith.constant 0 : index
    %2 = vector.load %arg1[%c0_2, %c0_3] : memref<128x1024xf32, #tpu.memory_space<vmem>>, vector<128x1024xf32>
    %cst = arith.constant dense<0.000000e+00> : vector<64x1024xf32>
    %3 = tpu.matmul %1, %2, %cst {dimension_numbers = #tpu.dot_dimension_numbers<[1], [0], [0], [1], [0, 0, 1, 1], [], []>} : vector<64x128xf32>, vector<128x1024xf32>, vector<64x1024xf32> -> vector<64x1024xf32>
    %c0_4 = arith.constant 0 : index
    %c0_5 = arith.constant 0 : index
    %4 = vector.load %arg4[%c0_4, %c0_5] : memref<1x1024xf32, #tpu.memory_space<vmem>>, vector<1x1024xf32>
    %5 = vector.broadcast %4 : vector<1x1024xf32> to vector<64x1024xf32>
    %6 = arith.addf %3, %5 : vector<64x1024xf32>
    %7 = vector.shape_cast %6 : vector<64x1024xf32> to vector<8x8x1024xf32>
    %c0_6 = arith.constant 0 : index
    %c0_7 = arith.constant 0 : index
    %c0_8 = arith.constant 0 : index
    %8 = vector.load %arg8[%c0_6, %c0_7, %c0_8] : memref<8x8x1024xf32, #tpu.memory_space<vmem>>, vector<8x8x1024xf32>
    tpu.vector_store %arg8[%c0_6, %c0_7, %c0_8], %7 {strides = array<i32>} : memref<8x8x1024xf32, #tpu.memory_space<vmem>>, vector<8x8x1024xf32>,
    %c0_9 = arith.constant 0 : index
    %c0_10 = arith.constant 0 : index
    %9 = vector.load %arg2[%c0_9, %c0_10] : memref<128x512xf32, #tpu.memory_space<vmem>>, vector<128x512xf32>
    %c0_11 = arith.constant 0 : index
    %c0_12 = arith.constant 0 : index
    %10 = vector.load %arg3[%c0_11, %c0_12] : memref<128x512xf32, #tpu.memory_space<vmem>>, vector<128x512xf32>
    %c0_13 = arith.constant 0 : index
    %c0_14 = arith.constant 0 : index
    %11 = vector.load %arg5[%c0_13, %c0_14] : memref<8x1xi32, #tpu.memory_space<vmem>>, vector<8x1xi32>
    %cst_15 = arith.constant 0.000000e+00 : f32
    %12 = vector.broadcast %cst_15 : f32 to vector<8x128xf32>
    %c0_i32 = arith.constant 0 : i32
    %c7_i32 = arith.constant 7 : i32
    %13 = arith.subi %c7_i32, %c0_i32 : i32
    %14 = arith.index_cast %c0_i32 : i32 to index
    %c0_16 = arith.constant 0 : index
    %c0_17 = arith.constant 0 : index
    %15 = vector.load %arg8[%14, %c0_16, %c0_17] : memref<8x8x1024xf32, #tpu.memory_space<vmem>>, vector<1x8x1024xf32>
    %16 = vector.shape_cast %15 : vector<1x8x1024xf32> to vector<8x1024xf32>
    %17 = vector.extract_strided_slice %16 {offsets = [0, 0], sizes = [8, 512], strides = [1, 1]} : vector<8x1024xf32> to vector<8x512xf32>
    %cst_18 = arith.constant dense<0.000000e+00> : vector<8x512xf32>
    %18 = tpu.matmul %12, %9, %cst_18 {dimension_numbers = #tpu.dot_dimension_numbers<[1], [0], [0], [1], [0, 0, 1, 1], [], []>} : vector<8x128xf32>, vector<128x512xf32>, vector<8x512xf32> -> vector<8x512xf32>
    %19 = arith.addf %17, %18 : vector<8x512xf32>
    %20 = arith.index_cast %13 : i32 to index
    %c0_19 = arith.constant 0 : index
    %c0_20 = arith.constant 0 : index
    %21 = vector.load %arg8[%20, %c0_19, %c0_20] : memref<8x8x1024xf32, #tpu.memory_space<vmem>>, vector<1x8x1024xf32>
    %22 = vector.shape_cast %21 : vector<1x8x1024xf32> to vector<8x1024xf32>
    %23 = vector.extract_strided_slice %22 {offsets = [0, 512], sizes = [8, 512], strides = [1, 1]} : vector<8x1024xf32> to vector<8x512xf32>
    %cst_21 = arith.constant dense<0.000000e+00> : vector<8x512xf32>
    %24 = tpu.matmul %12, %10, %cst_21 {dimension_numbers = #tpu.dot_dimension_numbers<[1], [0], [0], [1], [0, 0, 1, 1], [], []>} : vector<8x128xf32>, vector<128x512xf32>, vector<8x512xf32> -> vector<8x512xf32>
    %25 = arith.addf %23, %24 : vector<8x512xf32>
    %26 = vector.extract_strided_slice %19 {offsets = [0, 0], sizes = [8, 128], strides = [1, 1]} : vector<8x512xf32> to vector<8x128xf32>
    %27 = arith.negf %26 : vector<8x128xf32>
    %28 = math.exp %27 : vector<8x128xf32>
    %cst_22 = arith.constant 1.000000e+00 : f32
    %29 = vector.broadcast %cst_22 : f32 to vector<8x128xf32>
    %30 = arith.addf %29, %28 : vector<8x128xf32>
    %31 = arith.divf %29, %30 : vector<8x128xf32>
    %32 = vector.extract_strided_slice %19 {offsets = [0, 128], sizes = [8, 128], strides = [1, 1]} : vector<8x512xf32> to vector<8x128xf32>
    %33 = arith.negf %32 : vector<8x128xf32>
    %34 = math.exp %33 : vector<8x128xf32>
    %cst_23 = arith.constant 1.000000e+00 : f32
    %35 = vector.broadcast %cst_23 : f32 to vector<8x128xf32>
    %36 = arith.addf %35, %34 : vector<8x128xf32>
    %37 = arith.divf %35, %36 : vector<8x128xf32>
    %38 = vector.extract_strided_slice %19 {offsets = [0, 256], sizes = [8, 128], strides = [1, 1]} : vector<8x512xf32> to vector<8x128xf32>
    %39 = math.tanh %38 : vector<8x128xf32>
    %40 = vector.extract_strided_slice %19 {offsets = [0, 384], sizes = [8, 128], strides = [1, 1]} : vector<8x512xf32> to vector<8x128xf32>
    %41 = arith.negf %40 : vector<8x128xf32>
    %42 = math.exp %41 : vector<8x128xf32>
    %cst_24 = arith.constant 1.000000e+00 : f32
    %43 = vector.broadcast %cst_24 : f32 to vector<8x128xf32>
    %44 = arith.addf %43, %42 : vector<8x128xf32>
    %45 = arith.divf %43, %44 : vector<8x128xf32>
    %46 = arith.mulf %37, %12 : vector<8x128xf32>
    %47 = arith.mulf %31, %39 : vector<8x128xf32>
    %48 = arith.addf %46, %47 : vector<8x128xf32>
    %49 = math.tanh %48 : vector<8x128xf32>
    %50 = arith.mulf %45, %49 : vector<8x128xf32>
    %51 = vector.extract_strided_slice %25 {offsets = [0, 0], sizes = [8, 128], strides = [1, 1]} : vector<8x512xf32> to vector<8x128xf32>
    %52 = arith.negf %51 : vector<8x128xf32>
    %53 = math.exp %52 : vector<8x128xf32>
    %cst_25 = arith.constant 1.000000e+00 : f32
    %54 = vector.broadcast %cst_25 : f32 to vector<8x128xf32>
    %55 = arith.addf %54, %53 : vector<8x128xf32>
    %56 = arith.divf %54, %55 : vector<8x128xf32>
    %57 = vector.extract_strided_slice %25 {offsets = [0, 128], sizes = [8, 128], strides = [1, 1]} : vector<8x512xf32> to vector<8x128xf32>
    %58 = arith.negf %57 : vector<8x128xf32>
    %59 = math.exp %58 : vector<8x128xf32>
    %cst_26 = arith.constant 1.000000e+00 : f32
    %60 = vector.broadcast %cst_26 : f32 to vector<8x128xf32>
    %61 = arith.addf %60, %59 : vector<8x128xf32>
    %62 = arith.divf %60, %61 : vector<8x128xf32>
    %63 = vector.extract_strided_slice %25 {offsets = [0, 256], sizes = [8, 128], strides = [1, 1]} : vector<8x512xf32> to vector<8x128xf32>
    %64 = math.tanh %63 : vector<8x128xf32>
    %65 = vector.extract_strided_slice %25 {offsets = [0, 384], sizes = [8, 128], strides = [1, 1]} : vector<8x512xf32> to vector<8x128xf32>
    %66 = arith.negf %65 : vector<8x128xf32>
    %67 = math.exp %66 : vector<8x128xf32>
    %cst_27 = arith.constant 1.000000e+00 : f32
    %68 = vector.broadcast %cst_27 : f32 to vector<8x128xf32>
    %69 = arith.addf %68, %67 : vector<8x128xf32>
    %70 = arith.divf %68, %69 : vector<8x128xf32>
    %71 = arith.mulf %62, %12 : vector<8x128xf32>
    %72 = arith.mulf %56, %64 : vector<8x128xf32>
    %73 = arith.addf %71, %72 : vector<8x128xf32>
    %74 = math.tanh %73 : vector<8x128xf32>
    %75 = arith.mulf %70, %74 : vector<8x128xf32>
    %76 = vector.broadcast %c0_i32 : i32 to vector<8x1xi32>
    %77 = arith.cmpi slt, %76, %11 : vector<8x1xi32>
    %78 = vector.broadcast %13 : i32 to vector<8x1xi32>
    %79 = arith.cmpi slt, %78, %11 : vector<8x1xi32>
    %cst_28 = arith.constant 0.000000e+00 : f32
    %80 = vector.shape_cast %77 : vector<8x1xi1> to vector<8x1xi1>
    %81 = vector.broadcast %80 : vector<8x1xi1> to vector<8x128xi1>
    %82 = vector.broadcast %cst_28 : f32 to vector<8x128xf32>
    %83 = arith.select %81, %50, %82 : vector<8x128xi1>, vector<8x128xf32>
    %84 = arith.index_cast %c0_i32 : i32 to index
    %c0_29 = arith.constant 0 : index
    %c0_30 = arith.constant 0 : index
    %85 = vector.load %arg9[%84, %c0_29, %c0_30] : memref<8x8x128xf32, #tpu.memory_space<vmem>>, vector<1x8x128xf32>
    %86 = vector.shape_cast %85 : vector<1x8x128xf32> to vector<8x128xf32>
    %87 = vector.shape_cast %83 : vector<8x128xf32> to vector<1x8x128xf32>
    tpu.vector_store %arg9[%84, %c0_29, %c0_30], %87 {strides = array<i32>} : memref<8x8x128xf32, #tpu.memory_space<vmem>>, vector<1x8x128xf32>,
    %cst_31 = arith.constant 0.000000e+00 : f32
    %88 = vector.shape_cast %79 : vector<8x1xi1> to vector<8x1xi1>
    %89 = vector.broadcast %88 : vector<8x1xi1> to vector<8x128xi1>
    %90 = vector.broadcast %cst_31 : f32 to vector<8x128xf32>
    %91 = arith.select %89, %75, %90 : vector<8x128xi1>, vector<8x128xf32>
    %92 = arith.index_cast %13 : i32 to index
    %c0_32 = arith.constant 0 : index
    %c0_33 = arith.constant 0 : index
    %93 = vector.load %arg10[%92, %c0_32, %c0_33] : memref<8x8x128xf32, #tpu.memory_space<vmem>>, vector<1x8x128xf32>
    %94 = vector.shape_cast %93 : vector<1x8x128xf32> to vector<8x128xf32>
    %95 = vector.shape_cast %91 : vector<8x128xf32> to vector<1x8x128xf32>
    tpu.vector_store %arg10[%92, %c0_32, %c0_33], %95 {strides = array<i32>} : memref<8x8x128xf32, #tpu.memory_space<vmem>>, vector<1x8x128xf32>,
    %96 = vector.shape_cast %77 : vector<8x1xi1> to vector<8x1xi1>
    %97 = vector.broadcast %96 : vector<8x1xi1> to vector<8x128xi1>
    %98 = arith.select %97, %50, %12 : vector<8x128xi1>, vector<8x128xf32>
    %99 = vector.shape_cast %77 : vector<8x1xi1> to vector<8x1xi1>
    %100 = vector.broadcast %99 : vector<8x1xi1> to vector<8x128xi1>
    %101 = arith.select %100, %48, %12 : vector<8x128xi1>, vector<8x128xf32>
    %102 = vector.shape_cast %79 : vector<8x1xi1> to vector<8x1xi1>
    %103 = vector.broadcast %102 : vector<8x1xi1> to vector<8x128xi1>
    %104 = arith.select %103, %75, %12 : vector<8x128xi1>, vector<8x128xf32>
    %105 = vector.shape_cast %79 : vector<8x1xi1> to vector<8x1xi1>
    %106 = vector.broadcast %105 : vector<8x1xi1> to vector<8x128xi1>
    %107 = arith.select %106, %73, %12 : vector<8x128xi1>, vector<8x128xf32>
    %c1_i32 = arith.constant 1 : i32
    %c7_i32_34 = arith.constant 7 : i32
    %108 = arith.subi %c7_i32_34, %c1_i32 : i32
    %109 = arith.index_cast %c1_i32 : i32 to index
    %c0_35 = arith.constant 0 : index
    %c0_36 = arith.constant 0 : index
    %110 = vector.load %arg8[%109, %c0_35, %c0_36] : memref<8x8x1024xf32, #tpu.memory_space<vmem>>, vector<1x8x1024xf32>
    %111 = vector.shape_cast %110 : vector<1x8x1024xf32> to vector<8x1024xf32>
    %112 = vector.extract_strided_slice %111 {offsets = [0, 0], sizes = [8, 512], strides = [1, 1]} : vector<8x1024xf32> to vector<8x512xf32>
    %cst_37 = arith.constant dense<0.000000e+00> : vector<8x512xf32>
    %113 = tpu.matmul %98, %9, %cst_37 {dimension_numbers = #tpu.dot_dimension_numbers<[1], [0], [0], [1], [0, 0, 1, 1], [], []>} : vector<8x128xf32>, vector<128x512xf32>, vector<8x512xf32> -> vector<8x512xf32>
    %114 = arith.addf %112, %113 : vector<8x512xf32>
    %115 = arith.index_cast %108 : i32 to index
    %c0_38 = arith.constant 0 : index
    %c0_39 = arith.constant 0 : index
    %116 = vector.load %arg8[%115, %c0_38, %c0_39] : memref<8x8x1024xf32, #tpu.memory_space<vmem>>, vector<1x8x1024xf32>
    %117 = vector.shape_cast %116 : vector<1x8x1024xf32> to vector<8x1024xf32>
    %118 = vector.extract_strided_slice %117 {offsets = [0, 512], sizes = [8, 512], strides = [1, 1]} : vector<8x1024xf32> to vector<8x512xf32>
    %cst_40 = arith.constant dense<0.000000e+00> : vector<8x512xf32>
    %119 = tpu.matmul %104, %10, %cst_40 {dimension_numbers = #tpu.dot_dimension_numbers<[1], [0], [0], [1], [0, 0, 1, 1], [], []>} : vector<8x128xf32>, vector<128x512xf32>, vector<8x512xf32> -> vector<8x512xf32>
    %120 = arith.addf %118, %119 : vector<8x512xf32>
    %121 = vector.extract_strided_slice %114 {offsets = [0, 0], sizes = [8, 128], strides = [1, 1]} : vector<8x512xf32> to vector<8x128xf32>
    %122 = arith.negf %121 : vector<8x128xf32>
    %123 = math.exp %122 : vector<8x128xf32>
    %cst_41 = arith.constant 1.000000e+00 : f32
    %124 = vector.broadcast %cst_41 : f32 to vector<8x128xf32>
    %125 = arith.addf %124, %123 : vector<8x128xf32>
    %126 = arith.divf %124, %125 : vector<8x128xf32>
    %127 = vector.extract_strided_slice %114 {offsets = [0, 128], sizes = [8, 128], strides = [1, 1]} : vector<8x512xf32> to vector<8x128xf32>
    %128 = arith.negf %127 : vector<8x128xf32>
    %129 = math.exp %128 : vector<8x128xf32>
    %cst_42 = arith.constant 1.000000e+00 : f32
    %130 = vector.broadcast %cst_42 : f32 to vector<8x128xf32>
    %131 = arith.addf %130, %129 : vector<8x128xf32>
    %132 = arith.divf %130, %131 : vector<8x128xf32>
    %133 = vector.extract_strided_slice %114 {offsets = [0, 256], sizes = [8, 128], strides = [1, 1]} : vector<8x512xf32> to vector<8x128xf32>
    %134 = math.tanh %133 : vector<8x128xf32>
    %135 = vector.extract_strided_slice %114 {offsets = [0, 384], sizes = [8, 128], strides = [1, 1]} : vector<8x512xf32> to vector<8x128xf32>
    %136 = arith.negf %135 : vector<8x128xf32>
    %137 = math.exp %136 : vector<8x128xf32>
    %cst_43 = arith.constant 1.000000e+00 : f32
    %138 = vector.broadcast %cst_43 : f32 to vector<8x128xf32>
    %139 = arith.addf %138, %137 : vector<8x128xf32>
    %140 = arith.divf %138, %139 : vector<8x128xf32>
    %141 = arith.mulf %132, %101 : vector<8x128xf32>
    %142 = arith.mulf %126, %134 : vector<8x128xf32>
    %143 = arith.addf %141, %142 : vector<8x128xf32>
    %144 = math.tanh %143 : vector<8x128xf32>
    %145 = arith.mulf %140, %144 : vector<8x128xf32>
    %146 = vector.extract_strided_slice %120 {offsets = [0, 0], sizes = [8, 128], strides = [1, 1]} : vector<8x512xf32> to vector<8x128xf32>
    %147 = arith.negf %146 : vector<8x128xf32>
    %148 = math.exp %147 : vector<8x128xf32>
    %cst_44 = arith.constant 1.000000e+00 : f32
    %149 = vector.broadcast %cst_44 : f32 to vector<8x128xf32>
    %150 = arith.addf %149, %148 : vector<8x128xf32>
    %151 = arith.divf %149, %150 : vector<8x128xf32>
    %152 = vector.extract_strided_slice %120 {offsets = [0, 128], sizes = [8, 128], strides = [1, 1]} : vector<8x512xf32> to vector<8x128xf32>
    %153 = arith.negf %152 : vector<8x128xf32>
    %154 = math.exp %153 : vector<8x128xf32>
    %cst_45 = arith.constant 1.000000e+00 : f32
    %155 = vector.broadcast %cst_45 : f32 to vector<8x128xf32>
    %156 = arith.addf %155, %154 : vector<8x128xf32>
    %157 = arith.divf %155, %156 : vector<8x128xf32>
    %158 = vector.extract_strided_slice %120 {offsets = [0, 256], sizes = [8, 128], strides = [1, 1]} : vector<8x512xf32> to vector<8x128xf32>
    %159 = math.tanh %158 : vector<8x128xf32>
    %160 = vector.extract_strided_slice %120 {offsets = [0, 384], sizes = [8, 128], strides = [1, 1]} : vector<8x512xf32> to vector<8x128xf32>
    %161 = arith.negf %160 : vector<8x128xf32>
    %162 = math.exp %161 : vector<8x128xf32>
    %cst_46 = arith.constant 1.000000e+00 : f32
    %163 = vector.broadcast %cst_46 : f32 to vector<8x128xf32>
    %164 = arith.addf %163, %162 : vector<8x128xf32>
    %165 = arith.divf %163, %164 : vector<8x128xf32>
    %166 = arith.mulf %157, %107 : vector<8x128xf32>
    %167 = arith.mulf %151, %159 : vector<8x128xf32>
    %168 = arith.addf %166, %167 : vector<8x128xf32>
    %169 = math.tanh %168 : vector<8x128xf32>
    %170 = arith.mulf %165, %169 : vector<8x128xf32>
    %171 = vector.broadcast %c1_i32 : i32 to vector<8x1xi32>
    %172 = arith.cmpi slt, %171, %11 : vector<8x1xi32>
    %173 = vector.broadcast %108 : i32 to vector<8x1xi32>
    %174 = arith.cmpi slt, %173, %11 : vector<8x1xi32>
    %cst_47 = arith.constant 0.000000e+00 : f32
    %175 = vector.shape_cast %172 : vector<8x1xi1> to vector<8x1xi1>
    %176 = vector.broadcast %175 : vector<8x1xi1> to vector<8x128xi1>
    %177 = vector.broadcast %cst_47 : f32 to vector<8x128xf32>
    %178 = arith.select %176, %145, %177 : vector<8x128xi1>, vector<8x128xf32>
    %179 = arith.index_cast %c1_i32 : i32 to index
    %c0_48 = arith.constant 0 : index
    %c0_49 = arith.constant 0 : index
    %180 = vector.load %arg9[%179, %c0_48, %c0_49] : memref<8x8x128xf32, #tpu.memory_space<vmem>>, vector<1x8x128xf32>
    %181 = vector.shape_cast %180 : vector<1x8x128xf32> to vector<8x128xf32>
    %182 = vector.shape_cast %178 : vector<8x128xf32> to vector<1x8x128xf32>
    tpu.vector_store %arg9[%179, %c0_48, %c0_49], %182 {strides = array<i32>} : memref<8x8x128xf32, #tpu.memory_space<vmem>>, vector<1x8x128xf32>,
    %cst_50 = arith.constant 0.000000e+00 : f32
    %183 = vector.shape_cast %174 : vector<8x1xi1> to vector<8x1xi1>
    %184 = vector.broadcast %183 : vector<8x1xi1> to vector<8x128xi1>
    %185 = vector.broadcast %cst_50 : f32 to vector<8x128xf32>
    %186 = arith.select %184, %170, %185 : vector<8x128xi1>, vector<8x128xf32>
    %187 = arith.index_cast %108 : i32 to index
    %c0_51 = arith.constant 0 : index
    %c0_52 = arith.constant 0 : index
    %188 = vector.load %arg10[%187, %c0_51, %c0_52] : memref<8x8x128xf32, #tpu.memory_space<vmem>>, vector<1x8x128xf32>
    %189 = vector.shape_cast %188 : vector<1x8x128xf32> to vector<8x128xf32>
    %190 = vector.shape_cast %186 : vector<8x128xf32> to vector<1x8x128xf32>
    tpu.vector_store %arg10[%187, %c0_51, %c0_52], %190 {strides = array<i32>} : memref<8x8x128xf32, #tpu.memory_space<vmem>>, vector<1x8x128xf32>,
    %191 = vector.shape_cast %172 : vector<8x1xi1> to vector<8x1xi1>
    %192 = vector.broadcast %191 : vector<8x1xi1> to vector<8x128xi1>
    %193 = arith.select %192, %145, %98 : vector<8x128xi1>, vector<8x128xf32>
    %194 = vector.shape_cast %172 : vector<8x1xi1> to vector<8x1xi1>
    %195 = vector.broadcast %194 : vector<8x1xi1> to vector<8x128xi1>
    %196 = arith.select %195, %143, %101 : vector<8x128xi1>, vector<8x128xf32>
    %197 = vector.shape_cast %174 : vector<8x1xi1> to vector<8x1xi1>
    %198 = vector.broadcast %197 : vector<8x1xi1> to vector<8x128xi1>
    %199 = arith.select %198, %170, %104 : vector<8x128xi1>, vector<8x128xf32>
    %200 = vector.shape_cast %174 : vector<8x1xi1> to vector<8x1xi1>
    %201 = vector.broadcast %200 : vector<8x1xi1> to vector<8x128xi1>
    %202 = arith.select %201, %168, %107 : vector<8x128xi1>, vector<8x128xf32>
    %c2_i32 = arith.constant 2 : i32
    %c7_i32_53 = arith.constant 7 : i32
    %203 = arith.subi %c7_i32_53, %c2_i32 : i32
    %204 = arith.index_cast %c2_i32 : i32 to index
    %c0_54 = arith.constant 0 : index
    %c0_55 = arith.constant 0 : index
    %205 = vector.load %arg8[%204, %c0_54, %c0_55] : memref<8x8x1024xf32, #tpu.memory_space<vmem>>, vector<1x8x1024xf32>
    %206 = vector.shape_cast %205 : vector<1x8x1024xf32> to vector<8x1024xf32>
    %207 = vector.extract_strided_slice %206 {offsets = [0, 0], sizes = [8, 512], strides = [1, 1]} : vector<8x1024xf32> to vector<8x512xf32>
    %cst_56 = arith.constant dense<0.000000e+00> : vector<8x512xf32>
    %208 = tpu.matmul %193, %9, %cst_56 {dimension_numbers = #tpu.dot_dimension_numbers<[1], [0], [0], [1], [0, 0, 1, 1], [], []>} : vector<8x128xf32>, vector<128x512xf32>, vector<8x512xf32> -> vector<8x512xf32>
    %209 = arith.addf %207, %208 : vector<8x512xf32>
    %210 = arith.index_cast %203 : i32 to index
    %c0_57 = arith.constant 0 : index
    %c0_58 = arith.constant 0 : index
    %211 = vector.load %arg8[%210, %c0_57, %c0_58] : memref<8x8x1024xf32, #tpu.memory_space<vmem>>, vector<1x8x1024xf32>
    %212 = vector.shape_cast %211 : vector<1x8x1024xf32> to vector<8x1024xf32>
    %213 = vector.extract_strided_slice %212 {offsets = [0, 512], sizes = [8, 512], strides = [1, 1]} : vector<8x1024xf32> to vector<8x512xf32>
    %cst_59 = arith.constant dense<0.000000e+00> : vector<8x512xf32>
    %214 = tpu.matmul %199, %10, %cst_59 {dimension_numbers = #tpu.dot_dimension_numbers<[1], [0], [0], [1], [0, 0, 1, 1], [], []>} : vector<8x128xf32>, vector<128x512xf32>, vector<8x512xf32> -> vector<8x512xf32>
    %215 = arith.addf %213, %214 : vector<8x512xf32>
    %216 = vector.extract_strided_slice %209 {offsets = [0, 0], sizes = [8, 128], strides = [1, 1]} : vector<8x512xf32> to vector<8x128xf32>
    %217 = arith.negf %216 : vector<8x128xf32>
    %218 = math.exp %217 : vector<8x128xf32>
    %cst_60 = arith.constant 1.000000e+00 : f32
    %219 = vector.broadcast %cst_60 : f32 to vector<8x128xf32>
    %220 = arith.addf %219, %218 : vector<8x128xf32>
    %221 = arith.divf %219, %220 : vector<8x128xf32>
    %222 = vector.extract_strided_slice %209 {offsets = [0, 128], sizes = [8, 128], strides = [1, 1]} : vector<8x512xf32> to vector<8x128xf32>
    %223 = arith.negf %222 : vector<8x128xf32>
    %224 = math.exp %223 : vector<8x128xf32>
    %cst_61 = arith.constant 1.000000e+00 : f32
    %225 = vector.broadcast %cst_61 : f32 to vector<8x128xf32>
    %226 = arith.addf %225, %224 : vector<8x128xf32>
    %227 = arith.divf %225, %226 : vector<8x128xf32>
    %228 = vector.extract_strided_slice %209 {offsets = [0, 256], sizes = [8, 128], strides = [1, 1]} : vector<8x512xf32> to vector<8x128xf32>
    %229 = math.tanh %228 : vector<8x128xf32>
    %230 = vector.extract_strided_slice %209 {offsets = [0, 384], sizes = [8, 128], strides = [1, 1]} : vector<8x512xf32> to vector<8x128xf32>
    %231 = arith.negf %230 : vector<8x128xf32>
    %232 = math.exp %231 : vector<8x128xf32>
    %cst_62 = arith.constant 1.000000e+00 : f32
    %233 = vector.broadcast %cst_62 : f32 to vector<8x128xf32>
    %234 = arith.addf %233, %232 : vector<8x128xf32>
    %235 = arith.divf %233, %234 : vector<8x128xf32>
    %236 = arith.mulf %227, %196 : vector<8x128xf32>
    %237 = arith.mulf %221, %229 : vector<8x128xf32>
    %238 = arith.addf %236, %237 : vector<8x128xf32>
    %239 = math.tanh %238 : vector<8x128xf32>
    %240 = arith.mulf %235, %239 : vector<8x128xf32>
    %241 = vector.extract_strided_slice %215 {offsets = [0, 0], sizes = [8, 128], strides = [1, 1]} : vector<8x512xf32> to vector<8x128xf32>
    %242 = arith.negf %241 : vector<8x128xf32>
    %243 = math.exp %242 : vector<8x128xf32>
    %cst_63 = arith.constant 1.000000e+00 : f32
    %244 = vector.broadcast %cst_63 : f32 to vector<8x128xf32>
    %245 = arith.addf %244, %243 : vector<8x128xf32>
    %246 = arith.divf %244, %245 : vector<8x128xf32>
    %247 = vector.extract_strided_slice %215 {offsets = [0, 128], sizes = [8, 128], strides = [1, 1]} : vector<8x512xf32> to vector<8x128xf32>
    %248 = arith.negf %247 : vector<8x128xf32>
    %249 = math.exp %248 : vector<8x128xf32>
    %cst_64 = arith.constant 1.000000e+00 : f32
    %250 = vector.broadcast %cst_64 : f32 to vector<8x128xf32>
    %251 = arith.addf %250, %249 : vector<8x128xf32>
    %252 = arith.divf %250, %251 : vector<8x128xf32>
    %253 = vector.extract_strided_slice %215 {offsets = [0, 256], sizes = [8, 128], strides = [1, 1]} : vector<8x512xf32> to vector<8x128xf32>
    %254 = math.tanh %253 : vector<8x128xf32>
    %255 = vector.extract_strided_slice %215 {offsets = [0, 384], sizes = [8, 128], strides = [1, 1]} : vector<8x512xf32> to vector<8x128xf32>
    %256 = arith.negf %255 : vector<8x128xf32>
    %257 = math.exp %256 : vector<8x128xf32>
    %cst_65 = arith.constant 1.000000e+00 : f32
    %258 = vector.broadcast %cst_65 : f32 to vector<8x128xf32>
    %259 = arith.addf %258, %257 : vector<8x128xf32>
    %260 = arith.divf %258, %259 : vector<8x128xf32>
    %261 = arith.mulf %252, %202 : vector<8x128xf32>
    %262 = arith.mulf %246, %254 : vector<8x128xf32>
    %263 = arith.addf %261, %262 : vector<8x128xf32>
    %264 = math.tanh %263 : vector<8x128xf32>
    %265 = arith.mulf %260, %264 : vector<8x128xf32>
    %266 = vector.broadcast %c2_i32 : i32 to vector<8x1xi32>
    %267 = arith.cmpi slt, %266, %11 : vector<8x1xi32>
    %268 = vector.broadcast %203 : i32 to vector<8x1xi32>
    %269 = arith.cmpi slt, %268, %11 : vector<8x1xi32>
    %cst_66 = arith.constant 0.000000e+00 : f32
    %270 = vector.shape_cast %267 : vector<8x1xi1> to vector<8x1xi1>
    %271 = vector.broadcast %270 : vector<8x1xi1> to vector<8x128xi1>
    %272 = vector.broadcast %cst_66 : f32 to vector<8x128xf32>
    %273 = arith.select %271, %240, %272 : vector<8x128xi1>, vector<8x128xf32>
    %274 = arith.index_cast %c2_i32 : i32 to index
    %c0_67 = arith.constant 0 : index
    %c0_68 = arith.constant 0 : index
    %275 = vector.load %arg9[%274, %c0_67, %c0_68] : memref<8x8x128xf32, #tpu.memory_space<vmem>>, vector<1x8x128xf32>
    %276 = vector.shape_cast %275 : vector<1x8x128xf32> to vector<8x128xf32>
    %277 = vector.shape_cast %273 : vector<8x128xf32> to vector<1x8x128xf32>
    tpu.vector_store %arg9[%274, %c0_67, %c0_68], %277 {strides = array<i32>} : memref<8x8x128xf32, #tpu.memory_space<vmem>>, vector<1x8x128xf32>,
    %cst_69 = arith.constant 0.000000e+00 : f32
    %278 = vector.shape_cast %269 : vector<8x1xi1> to vector<8x1xi1>
    %279 = vector.broadcast %278 : vector<8x1xi1> to vector<8x128xi1>
    %280 = vector.broadcast %cst_69 : f32 to vector<8x128xf32>
    %281 = arith.select %279, %265, %280 : vector<8x128xi1>, vector<8x128xf32>
    %282 = arith.index_cast %203 : i32 to index
    %c0_70 = arith.constant 0 : index
    %c0_71 = arith.constant 0 : index
    %283 = vector.load %arg10[%282, %c0_70, %c0_71] : memref<8x8x128xf32, #tpu.memory_space<vmem>>, vector<1x8x128xf32>
    %284 = vector.shape_cast %283 : vector<1x8x128xf32> to vector<8x128xf32>
    %285 = vector.shape_cast %281 : vector<8x128xf32> to vector<1x8x128xf32>
    tpu.vector_store %arg10[%282, %c0_70, %c0_71], %285 {strides = array<i32>} : memref<8x8x128xf32, #tpu.memory_space<vmem>>, vector<1x8x128xf32>,
    %286 = vector.shape_cast %267 : vector<8x1xi1> to vector<8x1xi1>
    %287 = vector.broadcast %286 : vector<8x1xi1> to vector<8x128xi1>
    %288 = arith.select %287, %240, %193 : vector<8x128xi1>, vector<8x128xf32>
    %289 = vector.shape_cast %267 : vector<8x1xi1> to vector<8x1xi1>
    %290 = vector.broadcast %289 : vector<8x1xi1> to vector<8x128xi1>
    %291 = arith.select %290, %238, %196 : vector<8x128xi1>, vector<8x128xf32>
    %292 = vector.shape_cast %269 : vector<8x1xi1> to vector<8x1xi1>
    %293 = vector.broadcast %292 : vector<8x1xi1> to vector<8x128xi1>
    %294 = arith.select %293, %265, %199 : vector<8x128xi1>, vector<8x128xf32>
    %295 = vector.shape_cast %269 : vector<8x1xi1> to vector<8x1xi1>
    %296 = vector.broadcast %295 : vector<8x1xi1> to vector<8x128xi1>
    %297 = arith.select %296, %263, %202 : vector<8x128xi1>, vector<8x128xf32>
    %c3_i32 = arith.constant 3 : i32
    %c7_i32_72 = arith.constant 7 : i32
    %298 = arith.subi %c7_i32_72, %c3_i32 : i32
    %299 = arith.index_cast %c3_i32 : i32 to index
    %c0_73 = arith.constant 0 : index
    %c0_74 = arith.constant 0 : index
    %300 = vector.load %arg8[%299, %c0_73, %c0_74] : memref<8x8x1024xf32, #tpu.memory_space<vmem>>, vector<1x8x1024xf32>
    %301 = vector.shape_cast %300 : vector<1x8x1024xf32> to vector<8x1024xf32>
    %302 = vector.extract_strided_slice %301 {offsets = [0, 0], sizes = [8, 512], strides = [1, 1]} : vector<8x1024xf32> to vector<8x512xf32>
    %cst_75 = arith.constant dense<0.000000e+00> : vector<8x512xf32>
    %303 = tpu.matmul %288, %9, %cst_75 {dimension_numbers = #tpu.dot_dimension_numbers<[1], [0], [0], [1], [0, 0, 1, 1], [], []>} : vector<8x128xf32>, vector<128x512xf32>, vector<8x512xf32> -> vector<8x512xf32>
    %304 = arith.addf %302, %303 : vector<8x512xf32>
    %305 = arith.index_cast %298 : i32 to index
    %c0_76 = arith.constant 0 : index
    %c0_77 = arith.constant 0 : index
    %306 = vector.load %arg8[%305, %c0_76, %c0_77] : memref<8x8x1024xf32, #tpu.memory_space<vmem>>, vector<1x8x1024xf32>
    %307 = vector.shape_cast %306 : vector<1x8x1024xf32> to vector<8x1024xf32>
    %308 = vector.extract_strided_slice %307 {offsets = [0, 512], sizes = [8, 512], strides = [1, 1]} : vector<8x1024xf32> to vector<8x512xf32>
    %cst_78 = arith.constant dense<0.000000e+00> : vector<8x512xf32>
    %309 = tpu.matmul %294, %10, %cst_78 {dimension_numbers = #tpu.dot_dimension_numbers<[1], [0], [0], [1], [0, 0, 1, 1], [], []>} : vector<8x128xf32>, vector<128x512xf32>, vector<8x512xf32> -> vector<8x512xf32>
    %310 = arith.addf %308, %309 : vector<8x512xf32>
    %311 = vector.extract_strided_slice %304 {offsets = [0, 0], sizes = [8, 128], strides = [1, 1]} : vector<8x512xf32> to vector<8x128xf32>
    %312 = arith.negf %311 : vector<8x128xf32>
    %313 = math.exp %312 : vector<8x128xf32>
    %cst_79 = arith.constant 1.000000e+00 : f32
    %314 = vector.broadcast %cst_79 : f32 to vector<8x128xf32>
    %315 = arith.addf %314, %313 : vector<8x128xf32>
    %316 = arith.divf %314, %315 : vector<8x128xf32>
    %317 = vector.extract_strided_slice %304 {offsets = [0, 128], sizes = [8, 128], strides = [1, 1]} : vector<8x512xf32> to vector<8x128xf32>
    %318 = arith.negf %317 : vector<8x128xf32>
    %319 = math.exp %318 : vector<8x128xf32>
    %cst_80 = arith.constant 1.000000e+00 : f32
    %320 = vector.broadcast %cst_80 : f32 to vector<8x128xf32>
    %321 = arith.addf %320, %319 : vector<8x128xf32>
    %322 = arith.divf %320, %321 : vector<8x128xf32>
    %323 = vector.extract_strided_slice %304 {offsets = [0, 256], sizes = [8, 128], strides = [1, 1]} : vector<8x512xf32> to vector<8x128xf32>
    %324 = math.tanh %323 : vector<8x128xf32>
    %325 = vector.extract_strided_slice %304 {offsets = [0, 384], sizes = [8, 128], strides = [1, 1]} : vector<8x512xf32> to vector<8x128xf32>
    %326 = arith.negf %325 : vector<8x128xf32>
    %327 = math.exp %326 : vector<8x128xf32>
    %cst_81 = arith.constant 1.000000e+00 : f32
    %328 = vector.broadcast %cst_81 : f32 to vector<8x128xf32>
    %329 = arith.addf %328, %327 : vector<8x128xf32>
    %330 = arith.divf %328, %329 : vector<8x128xf32>
    %331 = arith.mulf %322, %291 : vector<8x128xf32>
    %332 = arith.mulf %316, %324 : vector<8x128xf32>
    %333 = arith.addf %331, %332 : vector<8x128xf32>
    %334 = math.tanh %333 : vector<8x128xf32>
    %335 = arith.mulf %330, %334 : vector<8x128xf32>
    %336 = vector.extract_strided_slice %310 {offsets = [0, 0], sizes = [8, 128], strides = [1, 1]} : vector<8x512xf32> to vector<8x128xf32>
    %337 = arith.negf %336 : vector<8x128xf32>
    %338 = math.exp %337 : vector<8x128xf32>
    %cst_82 = arith.constant 1.000000e+00 : f32
    %339 = vector.broadcast %cst_82 : f32 to vector<8x128xf32>
    %340 = arith.addf %339, %338 : vector<8x128xf32>
    %341 = arith.divf %339, %340 : vector<8x128xf32>
    %342 = vector.extract_strided_slice %310 {offsets = [0, 128], sizes = [8, 128], strides = [1, 1]} : vector<8x512xf32> to vector<8x128xf32>
    %343 = arith.negf %342 : vector<8x128xf32>
    %344 = math.exp %343 : vector<8x128xf32>
    %cst_83 = arith.constant 1.000000e+00 : f32
    %345 = vector.broadcast %cst_83 : f32 to vector<8x128xf32>
    %346 = arith.addf %345, %344 : vector<8x128xf32>
    %347 = arith.divf %345, %346 : vector<8x128xf32>
    %348 = vector.extract_strided_slice %310 {offsets = [0, 256], sizes = [8, 128], strides = [1, 1]} : vector<8x512xf32> to vector<8x128xf32>
    %349 = math.tanh %348 : vector<8x128xf32>
    %350 = vector.extract_strided_slice %310 {offsets = [0, 384], sizes = [8, 128], strides = [1, 1]} : vector<8x512xf32> to vector<8x128xf32>
    %351 = arith.negf %350 : vector<8x128xf32>
    %352 = math.exp %351 : vector<8x128xf32>
    %cst_84 = arith.constant 1.000000e+00 : f32
    %353 = vector.broadcast %cst_84 : f32 to vector<8x128xf32>
    %354 = arith.addf %353, %352 : vector<8x128xf32>
    %355 = arith.divf %353, %354 : vector<8x128xf32>
    %356 = arith.mulf %347, %297 : vector<8x128xf32>
    %357 = arith.mulf %341, %349 : vector<8x128xf32>
    %358 = arith.addf %356, %357 : vector<8x128xf32>
    %359 = math.tanh %358 : vector<8x128xf32>
    %360 = arith.mulf %355, %359 : vector<8x128xf32>
    %361 = vector.broadcast %c3_i32 : i32 to vector<8x1xi32>
    %362 = arith.cmpi slt, %361, %11 : vector<8x1xi32>
    %363 = vector.broadcast %298 : i32 to vector<8x1xi32>
    %364 = arith.cmpi slt, %363, %11 : vector<8x1xi32>
    %cst_85 = arith.constant 0.000000e+00 : f32
    %365 = vector.shape_cast %362 : vector<8x1xi1> to vector<8x1xi1>
    %366 = vector.broadcast %365 : vector<8x1xi1> to vector<8x128xi1>
    %367 = vector.broadcast %cst_85 : f32 to vector<8x128xf32>
    %368 = arith.select %366, %335, %367 : vector<8x128xi1>, vector<8x128xf32>
    %369 = arith.index_cast %c3_i32 : i32 to index
    %c0_86 = arith.constant 0 : index
    %c0_87 = arith.constant 0 : index
    %370 = vector.load %arg9[%369, %c0_86, %c0_87] : memref<8x8x128xf32, #tpu.memory_space<vmem>>, vector<1x8x128xf32>
    %371 = vector.shape_cast %370 : vector<1x8x128xf32> to vector<8x128xf32>
    %372 = vector.shape_cast %368 : vector<8x128xf32> to vector<1x8x128xf32>
    tpu.vector_store %arg9[%369, %c0_86, %c0_87], %372 {strides = array<i32>} : memref<8x8x128xf32, #tpu.memory_space<vmem>>, vector<1x8x128xf32>,
    %cst_88 = arith.constant 0.000000e+00 : f32
    %373 = vector.shape_cast %364 : vector<8x1xi1> to vector<8x1xi1>
    %374 = vector.broadcast %373 : vector<8x1xi1> to vector<8x128xi1>
    %375 = vector.broadcast %cst_88 : f32 to vector<8x128xf32>
    %376 = arith.select %374, %360, %375 : vector<8x128xi1>, vector<8x128xf32>
    %377 = arith.index_cast %298 : i32 to index
    %c0_89 = arith.constant 0 : index
    %c0_90 = arith.constant 0 : index
    %378 = vector.load %arg10[%377, %c0_89, %c0_90] : memref<8x8x128xf32, #tpu.memory_space<vmem>>, vector<1x8x128xf32>
    %379 = vector.shape_cast %378 : vector<1x8x128xf32> to vector<8x128xf32>
    %380 = vector.shape_cast %376 : vector<8x128xf32> to vector<1x8x128xf32>
    tpu.vector_store %arg10[%377, %c0_89, %c0_90], %380 {strides = array<i32>} : memref<8x8x128xf32, #tpu.memory_space<vmem>>, vector<1x8x128xf32>,
    %381 = vector.shape_cast %362 : vector<8x1xi1> to vector<8x1xi1>
    %382 = vector.broadcast %381 : vector<8x1xi1> to vector<8x128xi1>
    %383 = arith.select %382, %335, %288 : vector<8x128xi1>, vector<8x128xf32>
    %384 = vector.shape_cast %362 : vector<8x1xi1> to vector<8x1xi1>
    %385 = vector.broadcast %384 : vector<8x1xi1> to vector<8x128xi1>
    %386 = arith.select %385, %333, %291 : vector<8x128xi1>, vector<8x128xf32>
    %387 = vector.shape_cast %364 : vector<8x1xi1> to vector<8x1xi1>
    %388 = vector.broadcast %387 : vector<8x1xi1> to vector<8x128xi1>
    %389 = arith.select %388, %360, %294 : vector<8x128xi1>, vector<8x128xf32>
    %390 = vector.shape_cast %364 : vector<8x1xi1> to vector<8x1xi1>
    %391 = vector.broadcast %390 : vector<8x1xi1> to vector<8x128xi1>
    %392 = arith.select %391, %358, %297 : vector<8x128xi1>, vector<8x128xf32>
    %c4_i32 = arith.constant 4 : i32
    %c7_i32_91 = arith.constant 7 : i32
    %393 = arith.subi %c7_i32_91, %c4_i32 : i32
    %394 = arith.index_cast %c4_i32 : i32 to index
    %c0_92 = arith.constant 0 : index
    %c0_93 = arith.constant 0 : index
    %395 = vector.load %arg8[%394, %c0_92, %c0_93] : memref<8x8x1024xf32, #tpu.memory_space<vmem>>, vector<1x8x1024xf32>
    %396 = vector.shape_cast %395 : vector<1x8x1024xf32> to vector<8x1024xf32>
    %397 = vector.extract_strided_slice %396 {offsets = [0, 0], sizes = [8, 512], strides = [1, 1]} : vector<8x1024xf32> to vector<8x512xf32>
    %cst_94 = arith.constant dense<0.000000e+00> : vector<8x512xf32>
    %398 = tpu.matmul %383, %9, %cst_94 {dimension_numbers = #tpu.dot_dimension_numbers<[1], [0], [0], [1], [0, 0, 1, 1], [], []>} : vector<8x128xf32>, vector<128x512xf32>, vector<8x512xf32> -> vector<8x512xf32>
    %399 = arith.addf %397, %398 : vector<8x512xf32>
    %400 = arith.index_cast %393 : i32 to index
    %c0_95 = arith.constant 0 : index
    %c0_96 = arith.constant 0 : index
    %401 = vector.load %arg8[%400, %c0_95, %c0_96] : memref<8x8x1024xf32, #tpu.memory_space<vmem>>, vector<1x8x1024xf32>
    %402 = vector.shape_cast %401 : vector<1x8x1024xf32> to vector<8x1024xf32>
    %403 = vector.extract_strided_slice %402 {offsets = [0, 512], sizes = [8, 512], strides = [1, 1]} : vector<8x1024xf32> to vector<8x512xf32>
    %cst_97 = arith.constant dense<0.000000e+00> : vector<8x512xf32>
    %404 = tpu.matmul %389, %10, %cst_97 {dimension_numbers = #tpu.dot_dimension_numbers<[1], [0], [0], [1], [0, 0, 1, 1], [], []>} : vector<8x128xf32>, vector<128x512xf32>, vector<8x512xf32> -> vector<8x512xf32>
    %405 = arith.addf %403, %404 : vector<8x512xf32>
    %406 = vector.extract_strided_slice %399 {offsets = [0, 0], sizes = [8, 128], strides = [1, 1]} : vector<8x512xf32> to vector<8x128xf32>
    %407 = arith.negf %406 : vector<8x128xf32>
    %408 = math.exp %407 : vector<8x128xf32>
    %cst_98 = arith.constant 1.000000e+00 : f32
    %409 = vector.broadcast %cst_98 : f32 to vector<8x128xf32>
    %410 = arith.addf %409, %408 : vector<8x128xf32>
    %411 = arith.divf %409, %410 : vector<8x128xf32>
    %412 = vector.extract_strided_slice %399 {offsets = [0, 128], sizes = [8, 128], strides = [1, 1]} : vector<8x512xf32> to vector<8x128xf32>
    %413 = arith.negf %412 : vector<8x128xf32>
    %414 = math.exp %413 : vector<8x128xf32>
    %cst_99 = arith.constant 1.000000e+00 : f32
    %415 = vector.broadcast %cst_99 : f32 to vector<8x128xf32>
    %416 = arith.addf %415, %414 : vector<8x128xf32>
    %417 = arith.divf %415, %416 : vector<8x128xf32>
    %418 = vector.extract_strided_slice %399 {offsets = [0, 256], sizes = [8, 128], strides = [1, 1]} : vector<8x512xf32> to vector<8x128xf32>
    %419 = math.tanh %418 : vector<8x128xf32>
    %420 = vector.extract_strided_slice %399 {offsets = [0, 384], sizes = [8, 128], strides = [1, 1]} : vector<8x512xf32> to vector<8x128xf32>
    %421 = arith.negf %420 : vector<8x128xf32>
    %422 = math.exp %421 : vector<8x128xf32>
    %cst_100 = arith.constant 1.000000e+00 : f32
    %423 = vector.broadcast %cst_100 : f32 to vector<8x128xf32>
    %424 = arith.addf %423, %422 : vector<8x128xf32>
    %425 = arith.divf %423, %424 : vector<8x128xf32>
    %426 = arith.mulf %417, %386 : vector<8x128xf32>
    %427 = arith.mulf %411, %419 : vector<8x128xf32>
    %428 = arith.addf %426, %427 : vector<8x128xf32>
    %429 = math.tanh %428 : vector<8x128xf32>
    %430 = arith.mulf %425, %429 : vector<8x128xf32>
    %431 = vector.extract_strided_slice %405 {offsets = [0, 0], sizes = [8, 128], strides = [1, 1]} : vector<8x512xf32> to vector<8x128xf32>
    %432 = arith.negf %431 : vector<8x128xf32>
    %433 = math.exp %432 : vector<8x128xf32>
    %cst_101 = arith.constant 1.000000e+00 : f32
    %434 = vector.broadcast %cst_101 : f32 to vector<8x128xf32>
    %435 = arith.addf %434, %433 : vector<8x128xf32>
    %436 = arith.divf %434, %435 : vector<8x128xf32>
    %437 = vector.extract_strided_slice %405 {offsets = [0, 128], sizes = [8, 128], strides = [1, 1]} : vector<8x512xf32> to vector<8x128xf32>
    %438 = arith.negf %437 : vector<8x128xf32>
    %439 = math.exp %438 : vector<8x128xf32>
    %cst_102 = arith.constant 1.000000e+00 : f32
    %440 = vector.broadcast %cst_102 : f32 to vector<8x128xf32>
    %441 = arith.addf %440, %439 : vector<8x128xf32>
    %442 = arith.divf %440, %441 : vector<8x128xf32>
    %443 = vector.extract_strided_slice %405 {offsets = [0, 256], sizes = [8, 128], strides = [1, 1]} : vector<8x512xf32> to vector<8x128xf32>
    %444 = math.tanh %443 : vector<8x128xf32>
    %445 = vector.extract_strided_slice %405 {offsets = [0, 384], sizes = [8, 128], strides = [1, 1]} : vector<8x512xf32> to vector<8x128xf32>
    %446 = arith.negf %445 : vector<8x128xf32>
    %447 = math.exp %446 : vector<8x128xf32>
    %cst_103 = arith.constant 1.000000e+00 : f32
    %448 = vector.broadcast %cst_103 : f32 to vector<8x128xf32>
    %449 = arith.addf %448, %447 : vector<8x128xf32>
    %450 = arith.divf %448, %449 : vector<8x128xf32>
    %451 = arith.mulf %442, %392 : vector<8x128xf32>
    %452 = arith.mulf %436, %444 : vector<8x128xf32>
    %453 = arith.addf %451, %452 : vector<8x128xf32>
    %454 = math.tanh %453 : vector<8x128xf32>
    %455 = arith.mulf %450, %454 : vector<8x128xf32>
    %456 = vector.broadcast %c4_i32 : i32 to vector<8x1xi32>
    %457 = arith.cmpi slt, %456, %11 : vector<8x1xi32>
    %458 = vector.broadcast %393 : i32 to vector<8x1xi32>
    %459 = arith.cmpi slt, %458, %11 : vector<8x1xi32>
    %cst_104 = arith.constant 0.000000e+00 : f32
    %460 = vector.shape_cast %457 : vector<8x1xi1> to vector<8x1xi1>
    %461 = vector.broadcast %460 : vector<8x1xi1> to vector<8x128xi1>
    %462 = vector.broadcast %cst_104 : f32 to vector<8x128xf32>
    %463 = arith.select %461, %430, %462 : vector<8x128xi1>, vector<8x128xf32>
    %464 = arith.index_cast %c4_i32 : i32 to index
    %c0_105 = arith.constant 0 : index
    %c0_106 = arith.constant 0 : index
    %465 = vector.load %arg9[%464, %c0_105, %c0_106] : memref<8x8x128xf32, #tpu.memory_space<vmem>>, vector<1x8x128xf32>
    %466 = vector.shape_cast %465 : vector<1x8x128xf32> to vector<8x128xf32>
    %467 = vector.shape_cast %463 : vector<8x128xf32> to vector<1x8x128xf32>
    tpu.vector_store %arg9[%464, %c0_105, %c0_106], %467 {strides = array<i32>} : memref<8x8x128xf32, #tpu.memory_space<vmem>>, vector<1x8x128xf32>,
    %cst_107 = arith.constant 0.000000e+00 : f32
    %468 = vector.shape_cast %459 : vector<8x1xi1> to vector<8x1xi1>
    %469 = vector.broadcast %468 : vector<8x1xi1> to vector<8x128xi1>
    %470 = vector.broadcast %cst_107 : f32 to vector<8x128xf32>
    %471 = arith.select %469, %455, %470 : vector<8x128xi1>, vector<8x128xf32>
    %472 = arith.index_cast %393 : i32 to index
    %c0_108 = arith.constant 0 : index
    %c0_109 = arith.constant 0 : index
    %473 = vector.load %arg10[%472, %c0_108, %c0_109] : memref<8x8x128xf32, #tpu.memory_space<vmem>>, vector<1x8x128xf32>
    %474 = vector.shape_cast %473 : vector<1x8x128xf32> to vector<8x128xf32>
    %475 = vector.shape_cast %471 : vector<8x128xf32> to vector<1x8x128xf32>
    tpu.vector_store %arg10[%472, %c0_108, %c0_109], %475 {strides = array<i32>} : memref<8x8x128xf32, #tpu.memory_space<vmem>>, vector<1x8x128xf32>,
    %476 = vector.shape_cast %457 : vector<8x1xi1> to vector<8x1xi1>
    %477 = vector.broadcast %476 : vector<8x1xi1> to vector<8x128xi1>
    %478 = arith.select %477, %430, %383 : vector<8x128xi1>, vector<8x128xf32>
    %479 = vector.shape_cast %457 : vector<8x1xi1> to vector<8x1xi1>
    %480 = vector.broadcast %479 : vector<8x1xi1> to vector<8x128xi1>
    %481 = arith.select %480, %428, %386 : vector<8x128xi1>, vector<8x128xf32>
    %482 = vector.shape_cast %459 : vector<8x1xi1> to vector<8x1xi1>
    %483 = vector.broadcast %482 : vector<8x1xi1> to vector<8x128xi1>
    %484 = arith.select %483, %455, %389 : vector<8x128xi1>, vector<8x128xf32>
    %485 = vector.shape_cast %459 : vector<8x1xi1> to vector<8x1xi1>
    %486 = vector.broadcast %485 : vector<8x1xi1> to vector<8x128xi1>
    %487 = arith.select %486, %453, %392 : vector<8x128xi1>, vector<8x128xf32>
    %c5_i32 = arith.constant 5 : i32
    %c7_i32_110 = arith.constant 7 : i32
    %488 = arith.subi %c7_i32_110, %c5_i32 : i32
    %489 = arith.index_cast %c5_i32 : i32 to index
    %c0_111 = arith.constant 0 : index
    %c0_112 = arith.constant 0 : index
    %490 = vector.load %arg8[%489, %c0_111, %c0_112] : memref<8x8x1024xf32, #tpu.memory_space<vmem>>, vector<1x8x1024xf32>
    %491 = vector.shape_cast %490 : vector<1x8x1024xf32> to vector<8x1024xf32>
    %492 = vector.extract_strided_slice %491 {offsets = [0, 0], sizes = [8, 512], strides = [1, 1]} : vector<8x1024xf32> to vector<8x512xf32>
    %cst_113 = arith.constant dense<0.000000e+00> : vector<8x512xf32>
    %493 = tpu.matmul %478, %9, %cst_113 {dimension_numbers = #tpu.dot_dimension_numbers<[1], [0], [0], [1], [0, 0, 1, 1], [], []>} : vector<8x128xf32>, vector<128x512xf32>, vector<8x512xf32> -> vector<8x512xf32>
    %494 = arith.addf %492, %493 : vector<8x512xf32>
    %495 = arith.index_cast %488 : i32 to index
    %c0_114 = arith.constant 0 : index
    %c0_115 = arith.constant 0 : index
    %496 = vector.load %arg8[%495, %c0_114, %c0_115] : memref<8x8x1024xf32, #tpu.memory_space<vmem>>, vector<1x8x1024xf32>
    %497 = vector.shape_cast %496 : vector<1x8x1024xf32> to vector<8x1024xf32>
    %498 = vector.extract_strided_slice %497 {offsets = [0, 512], sizes = [8, 512], strides = [1, 1]} : vector<8x1024xf32> to vector<8x512xf32>
    %cst_116 = arith.constant dense<0.000000e+00> : vector<8x512xf32>
    %499 = tpu.matmul %484, %10, %cst_116 {dimension_numbers = #tpu.dot_dimension_numbers<[1], [0], [0], [1], [0, 0, 1, 1], [], []>} : vector<8x128xf32>, vector<128x512xf32>, vector<8x512xf32> -> vector<8x512xf32>
    %500 = arith.addf %498, %499 : vector<8x512xf32>
    %501 = vector.extract_strided_slice %494 {offsets = [0, 0], sizes = [8, 128], strides = [1, 1]} : vector<8x512xf32> to vector<8x128xf32>
    %502 = arith.negf %501 : vector<8x128xf32>
    %503 = math.exp %502 : vector<8x128xf32>
    %cst_117 = arith.constant 1.000000e+00 : f32
    %504 = vector.broadcast %cst_117 : f32 to vector<8x128xf32>
    %505 = arith.addf %504, %503 : vector<8x128xf32>
    %506 = arith.divf %504, %505 : vector<8x128xf32>
    %507 = vector.extract_strided_slice %494 {offsets = [0, 128], sizes = [8, 128], strides = [1, 1]} : vector<8x512xf32> to vector<8x128xf32>
    %508 = arith.negf %507 : vector<8x128xf32>
    %509 = math.exp %508 : vector<8x128xf32>
    %cst_118 = arith.constant 1.000000e+00 : f32
    %510 = vector.broadcast %cst_118 : f32 to vector<8x128xf32>
    %511 = arith.addf %510, %509 : vector<8x128xf32>
    %512 = arith.divf %510, %511 : vector<8x128xf32>
    %513 = vector.extract_strided_slice %494 {offsets = [0, 256], sizes = [8, 128], strides = [1, 1]} : vector<8x512xf32> to vector<8x128xf32>
    %514 = math.tanh %513 : vector<8x128xf32>
    %515 = vector.extract_strided_slice %494 {offsets = [0, 384], sizes = [8, 128], strides = [1, 1]} : vector<8x512xf32> to vector<8x128xf32>
    %516 = arith.negf %515 : vector<8x128xf32>
    %517 = math.exp %516 : vector<8x128xf32>
    %cst_119 = arith.constant 1.000000e+00 : f32
    %518 = vector.broadcast %cst_119 : f32 to vector<8x128xf32>
    %519 = arith.addf %518, %517 : vector<8x128xf32>
    %520 = arith.divf %518, %519 : vector<8x128xf32>
    %521 = arith.mulf %512, %481 : vector<8x128xf32>
    %522 = arith.mulf %506, %514 : vector<8x128xf32>
    %523 = arith.addf %521, %522 : vector<8x128xf32>
    %524 = math.tanh %523 : vector<8x128xf32>
    %525 = arith.mulf %520, %524 : vector<8x128xf32>
    %526 = vector.extract_strided_slice %500 {offsets = [0, 0], sizes = [8, 128], strides = [1, 1]} : vector<8x512xf32> to vector<8x128xf32>
    %527 = arith.negf %526 : vector<8x128xf32>
    %528 = math.exp %527 : vector<8x128xf32>
    %cst_120 = arith.constant 1.000000e+00 : f32
    %529 = vector.broadcast %cst_120 : f32 to vector<8x128xf32>
    %530 = arith.addf %529, %528 : vector<8x128xf32>
    %531 = arith.divf %529, %530 : vector<8x128xf32>
    %532 = vector.extract_strided_slice %500 {offsets = [0, 128], sizes = [8, 128], strides = [1, 1]} : vector<8x512xf32> to vector<8x128xf32>
    %533 = arith.negf %532 : vector<8x128xf32>
    %534 = math.exp %533 : vector<8x128xf32>
    %cst_121 = arith.constant 1.000000e+00 : f32
    %535 = vector.broadcast %cst_121 : f32 to vector<8x128xf32>
    %536 = arith.addf %535, %534 : vector<8x128xf32>
    %537 = arith.divf %535, %536 : vector<8x128xf32>
    %538 = vector.extract_strided_slice %500 {offsets = [0, 256], sizes = [8, 128], strides = [1, 1]} : vector<8x512xf32> to vector<8x128xf32>
    %539 = math.tanh %538 : vector<8x128xf32>
    %540 = vector.extract_strided_slice %500 {offsets = [0, 384], sizes = [8, 128], strides = [1, 1]} : vector<8x512xf32> to vector<8x128xf32>
    %541 = arith.negf %540 : vector<8x128xf32>
    %542 = math.exp %541 : vector<8x128xf32>
    %cst_122 = arith.constant 1.000000e+00 : f32
    %543 = vector.broadcast %cst_122 : f32 to vector<8x128xf32>
    %544 = arith.addf %543, %542 : vector<8x128xf32>
    %545 = arith.divf %543, %544 : vector<8x128xf32>
    %546 = arith.mulf %537, %487 : vector<8x128xf32>
    %547 = arith.mulf %531, %539 : vector<8x128xf32>
    %548 = arith.addf %546, %547 : vector<8x128xf32>
    %549 = math.tanh %548 : vector<8x128xf32>
    %550 = arith.mulf %545, %549 : vector<8x128xf32>
    %551 = vector.broadcast %c5_i32 : i32 to vector<8x1xi32>
    %552 = arith.cmpi slt, %551, %11 : vector<8x1xi32>
    %553 = vector.broadcast %488 : i32 to vector<8x1xi32>
    %554 = arith.cmpi slt, %553, %11 : vector<8x1xi32>
    %cst_123 = arith.constant 0.000000e+00 : f32
    %555 = vector.shape_cast %552 : vector<8x1xi1> to vector<8x1xi1>
    %556 = vector.broadcast %555 : vector<8x1xi1> to vector<8x128xi1>
    %557 = vector.broadcast %cst_123 : f32 to vector<8x128xf32>
    %558 = arith.select %556, %525, %557 : vector<8x128xi1>, vector<8x128xf32>
    %559 = arith.index_cast %c5_i32 : i32 to index
    %c0_124 = arith.constant 0 : index
    %c0_125 = arith.constant 0 : index
    %560 = vector.load %arg9[%559, %c0_124, %c0_125] : memref<8x8x128xf32, #tpu.memory_space<vmem>>, vector<1x8x128xf32>
    %561 = vector.shape_cast %560 : vector<1x8x128xf32> to vector<8x128xf32>
    %562 = vector.shape_cast %558 : vector<8x128xf32> to vector<1x8x128xf32>
    tpu.vector_store %arg9[%559, %c0_124, %c0_125], %562 {strides = array<i32>} : memref<8x8x128xf32, #tpu.memory_space<vmem>>, vector<1x8x128xf32>,
    %cst_126 = arith.constant 0.000000e+00 : f32
    %563 = vector.shape_cast %554 : vector<8x1xi1> to vector<8x1xi1>
    %564 = vector.broadcast %563 : vector<8x1xi1> to vector<8x128xi1>
    %565 = vector.broadcast %cst_126 : f32 to vector<8x128xf32>
    %566 = arith.select %564, %550, %565 : vector<8x128xi1>, vector<8x128xf32>
    %567 = arith.index_cast %488 : i32 to index
    %c0_127 = arith.constant 0 : index
    %c0_128 = arith.constant 0 : index
    %568 = vector.load %arg10[%567, %c0_127, %c0_128] : memref<8x8x128xf32, #tpu.memory_space<vmem>>, vector<1x8x128xf32>
    %569 = vector.shape_cast %568 : vector<1x8x128xf32> to vector<8x128xf32>
    %570 = vector.shape_cast %566 : vector<8x128xf32> to vector<1x8x128xf32>
    tpu.vector_store %arg10[%567, %c0_127, %c0_128], %570 {strides = array<i32>} : memref<8x8x128xf32, #tpu.memory_space<vmem>>, vector<1x8x128xf32>,
    %571 = vector.shape_cast %552 : vector<8x1xi1> to vector<8x1xi1>
    %572 = vector.broadcast %571 : vector<8x1xi1> to vector<8x128xi1>
    %573 = arith.select %572, %525, %478 : vector<8x128xi1>, vector<8x128xf32>
    %574 = vector.shape_cast %552 : vector<8x1xi1> to vector<8x1xi1>
    %575 = vector.broadcast %574 : vector<8x1xi1> to vector<8x128xi1>
    %576 = arith.select %575, %523, %481 : vector<8x128xi1>, vector<8x128xf32>
    %577 = vector.shape_cast %554 : vector<8x1xi1> to vector<8x1xi1>
    %578 = vector.broadcast %577 : vector<8x1xi1> to vector<8x128xi1>
    %579 = arith.select %578, %550, %484 : vector<8x128xi1>, vector<8x128xf32>
    %580 = vector.shape_cast %554 : vector<8x1xi1> to vector<8x1xi1>
    %581 = vector.broadcast %580 : vector<8x1xi1> to vector<8x128xi1>
    %582 = arith.select %581, %548, %487 : vector<8x128xi1>, vector<8x128xf32>
    %c6_i32 = arith.constant 6 : i32
    %c7_i32_129 = arith.constant 7 : i32
    %583 = arith.subi %c7_i32_129, %c6_i32 : i32
    %584 = arith.index_cast %c6_i32 : i32 to index
    %c0_130 = arith.constant 0 : index
    %c0_131 = arith.constant 0 : index
    %585 = vector.load %arg8[%584, %c0_130, %c0_131] : memref<8x8x1024xf32, #tpu.memory_space<vmem>>, vector<1x8x1024xf32>
    %586 = vector.shape_cast %585 : vector<1x8x1024xf32> to vector<8x1024xf32>
    %587 = vector.extract_strided_slice %586 {offsets = [0, 0], sizes = [8, 512], strides = [1, 1]} : vector<8x1024xf32> to vector<8x512xf32>
    %cst_132 = arith.constant dense<0.000000e+00> : vector<8x512xf32>
    %588 = tpu.matmul %573, %9, %cst_132 {dimension_numbers = #tpu.dot_dimension_numbers<[1], [0], [0], [1], [0, 0, 1, 1], [], []>} : vector<8x128xf32>, vector<128x512xf32>, vector<8x512xf32> -> vector<8x512xf32>
    %589 = arith.addf %587, %588 : vector<8x512xf32>
    %590 = arith.index_cast %583 : i32 to index
    %c0_133 = arith.constant 0 : index
    %c0_134 = arith.constant 0 : index
    %591 = vector.load %arg8[%590, %c0_133, %c0_134] : memref<8x8x1024xf32, #tpu.memory_space<vmem>>, vector<1x8x1024xf32>
    %592 = vector.shape_cast %591 : vector<1x8x1024xf32> to vector<8x1024xf32>
    %593 = vector.extract_strided_slice %592 {offsets = [0, 512], sizes = [8, 512], strides = [1, 1]} : vector<8x1024xf32> to vector<8x512xf32>
    %cst_135 = arith.constant dense<0.000000e+00> : vector<8x512xf32>
    %594 = tpu.matmul %579, %10, %cst_135 {dimension_numbers = #tpu.dot_dimension_numbers<[1], [0], [0], [1], [0, 0, 1, 1], [], []>} : vector<8x128xf32>, vector<128x512xf32>, vector<8x512xf32> -> vector<8x512xf32>
    %595 = arith.addf %593, %594 : vector<8x512xf32>
    %596 = vector.extract_strided_slice %589 {offsets = [0, 0], sizes = [8, 128], strides = [1, 1]} : vector<8x512xf32> to vector<8x128xf32>
    %597 = arith.negf %596 : vector<8x128xf32>
    %598 = math.exp %597 : vector<8x128xf32>
    %cst_136 = arith.constant 1.000000e+00 : f32
    %599 = vector.broadcast %cst_136 : f32 to vector<8x128xf32>
    %600 = arith.addf %599, %598 : vector<8x128xf32>
    %601 = arith.divf %599, %600 : vector<8x128xf32>
    %602 = vector.extract_strided_slice %589 {offsets = [0, 128], sizes = [8, 128], strides = [1, 1]} : vector<8x512xf32> to vector<8x128xf32>
    %603 = arith.negf %602 : vector<8x128xf32>
    %604 = math.exp %603 : vector<8x128xf32>
    %cst_137 = arith.constant 1.000000e+00 : f32
    %605 = vector.broadcast %cst_137 : f32 to vector<8x128xf32>
    %606 = arith.addf %605, %604 : vector<8x128xf32>
    %607 = arith.divf %605, %606 : vector<8x128xf32>
    %608 = vector.extract_strided_slice %589 {offsets = [0, 256], sizes = [8, 128], strides = [1, 1]} : vector<8x512xf32> to vector<8x128xf32>
    %609 = math.tanh %608 : vector<8x128xf32>
    %610 = vector.extract_strided_slice %589 {offsets = [0, 384], sizes = [8, 128], strides = [1, 1]} : vector<8x512xf32> to vector<8x128xf32>
    %611 = arith.negf %610 : vector<8x128xf32>
    %612 = math.exp %611 : vector<8x128xf32>
    %cst_138 = arith.constant 1.000000e+00 : f32
    %613 = vector.broadcast %cst_138 : f32 to vector<8x128xf32>
    %614 = arith.addf %613, %612 : vector<8x128xf32>
    %615 = arith.divf %613, %614 : vector<8x128xf32>
    %616 = arith.mulf %607, %576 : vector<8x128xf32>
    %617 = arith.mulf %601, %609 : vector<8x128xf32>
    %618 = arith.addf %616, %617 : vector<8x128xf32>
    %619 = math.tanh %618 : vector<8x128xf32>
    %620 = arith.mulf %615, %619 : vector<8x128xf32>
    %621 = vector.extract_strided_slice %595 {offsets = [0, 0], sizes = [8, 128], strides = [1, 1]} : vector<8x512xf32> to vector<8x128xf32>
    %622 = arith.negf %621 : vector<8x128xf32>
    %623 = math.exp %622 : vector<8x128xf32>
    %cst_139 = arith.constant 1.000000e+00 : f32
    %624 = vector.broadcast %cst_139 : f32 to vector<8x128xf32>
    %625 = arith.addf %624, %623 : vector<8x128xf32>
    %626 = arith.divf %624, %625 : vector<8x128xf32>
    %627 = vector.extract_strided_slice %595 {offsets = [0, 128], sizes = [8, 128], strides = [1, 1]} : vector<8x512xf32> to vector<8x128xf32>
    %628 = arith.negf %627 : vector<8x128xf32>
    %629 = math.exp %628 : vector<8x128xf32>
    %cst_140 = arith.constant 1.000000e+00 : f32
    %630 = vector.broadcast %cst_140 : f32 to vector<8x128xf32>
    %631 = arith.addf %630, %629 : vector<8x128xf32>
    %632 = arith.divf %630, %631 : vector<8x128xf32>
    %633 = vector.extract_strided_slice %595 {offsets = [0, 256], sizes = [8, 128], strides = [1, 1]} : vector<8x512xf32> to vector<8x128xf32>
    %634 = math.tanh %633 : vector<8x128xf32>
    %635 = vector.extract_strided_slice %595 {offsets = [0, 384], sizes = [8, 128], strides = [1, 1]} : vector<8x512xf32> to vector<8x128xf32>
    %636 = arith.negf %635 : vector<8x128xf32>
    %637 = math.exp %636 : vector<8x128xf32>
    %cst_141 = arith.constant 1.000000e+00 : f32
    %638 = vector.broadcast %cst_141 : f32 to vector<8x128xf32>
    %639 = arith.addf %638, %637 : vector<8x128xf32>
    %640 = arith.divf %638, %639 : vector<8x128xf32>
    %641 = arith.mulf %632, %582 : vector<8x128xf32>
    %642 = arith.mulf %626, %634 : vector<8x128xf32>
    %643 = arith.addf %641, %642 : vector<8x128xf32>
    %644 = math.tanh %643 : vector<8x128xf32>
    %645 = arith.mulf %640, %644 : vector<8x128xf32>
    %646 = vector.broadcast %c6_i32 : i32 to vector<8x1xi32>
    %647 = arith.cmpi slt, %646, %11 : vector<8x1xi32>
    %648 = vector.broadcast %583 : i32 to vector<8x1xi32>
    %649 = arith.cmpi slt, %648, %11 : vector<8x1xi32>
    %cst_142 = arith.constant 0.000000e+00 : f32
    %650 = vector.shape_cast %647 : vector<8x1xi1> to vector<8x1xi1>
    %651 = vector.broadcast %650 : vector<8x1xi1> to vector<8x128xi1>
    %652 = vector.broadcast %cst_142 : f32 to vector<8x128xf32>
    %653 = arith.select %651, %620, %652 : vector<8x128xi1>, vector<8x128xf32>
    %654 = arith.index_cast %c6_i32 : i32 to index
    %c0_143 = arith.constant 0 : index
    %c0_144 = arith.constant 0 : index
    %655 = vector.load %arg9[%654, %c0_143, %c0_144] : memref<8x8x128xf32, #tpu.memory_space<vmem>>, vector<1x8x128xf32>
    %656 = vector.shape_cast %655 : vector<1x8x128xf32> to vector<8x128xf32>
    %657 = vector.shape_cast %653 : vector<8x128xf32> to vector<1x8x128xf32>
    tpu.vector_store %arg9[%654, %c0_143, %c0_144], %657 {strides = array<i32>} : memref<8x8x128xf32, #tpu.memory_space<vmem>>, vector<1x8x128xf32>,
    %cst_145 = arith.constant 0.000000e+00 : f32
    %658 = vector.shape_cast %649 : vector<8x1xi1> to vector<8x1xi1>
    %659 = vector.broadcast %658 : vector<8x1xi1> to vector<8x128xi1>
    %660 = vector.broadcast %cst_145 : f32 to vector<8x128xf32>
    %661 = arith.select %659, %645, %660 : vector<8x128xi1>, vector<8x128xf32>
    %662 = arith.index_cast %583 : i32 to index
    %c0_146 = arith.constant 0 : index
    %c0_147 = arith.constant 0 : index
    %663 = vector.load %arg10[%662, %c0_146, %c0_147] : memref<8x8x128xf32, #tpu.memory_space<vmem>>, vector<1x8x128xf32>
    %664 = vector.shape_cast %663 : vector<1x8x128xf32> to vector<8x128xf32>
    %665 = vector.shape_cast %661 : vector<8x128xf32> to vector<1x8x128xf32>
    tpu.vector_store %arg10[%662, %c0_146, %c0_147], %665 {strides = array<i32>} : memref<8x8x128xf32, #tpu.memory_space<vmem>>, vector<1x8x128xf32>,
    %666 = vector.shape_cast %647 : vector<8x1xi1> to vector<8x1xi1>
    %667 = vector.broadcast %666 : vector<8x1xi1> to vector<8x128xi1>
    %668 = arith.select %667, %620, %573 : vector<8x128xi1>, vector<8x128xf32>
    %669 = vector.shape_cast %647 : vector<8x1xi1> to vector<8x1xi1>
    %670 = vector.broadcast %669 : vector<8x1xi1> to vector<8x128xi1>
    %671 = arith.select %670, %618, %576 : vector<8x128xi1>, vector<8x128xf32>
    %672 = vector.shape_cast %649 : vector<8x1xi1> to vector<8x1xi1>
    %673 = vector.broadcast %672 : vector<8x1xi1> to vector<8x128xi1>
    %674 = arith.select %673, %645, %579 : vector<8x128xi1>, vector<8x128xf32>
    %675 = vector.shape_cast %649 : vector<8x1xi1> to vector<8x1xi1>
    %676 = vector.broadcast %675 : vector<8x1xi1> to vector<8x128xi1>
    %677 = arith.select %676, %643, %582 : vector<8x128xi1>, vector<8x128xf32>
    %c7_i32_148 = arith.constant 7 : i32
    %c7_i32_149 = arith.constant 7 : i32
    %678 = arith.subi %c7_i32_149, %c7_i32_148 : i32
    %679 = arith.index_cast %c7_i32_148 : i32 to index
    %c0_150 = arith.constant 0 : index
    %c0_151 = arith.constant 0 : index
    %680 = vector.load %arg8[%679, %c0_150, %c0_151] : memref<8x8x1024xf32, #tpu.memory_space<vmem>>, vector<1x8x1024xf32>
    %681 = vector.shape_cast %680 : vector<1x8x1024xf32> to vector<8x1024xf32>
    %682 = vector.extract_strided_slice %681 {offsets = [0, 0], sizes = [8, 512], strides = [1, 1]} : vector<8x1024xf32> to vector<8x512xf32>
    %cst_152 = arith.constant dense<0.000000e+00> : vector<8x512xf32>
    %683 = tpu.matmul %668, %9, %cst_152 {dimension_numbers = #tpu.dot_dimension_numbers<[1], [0], [0], [1], [0, 0, 1, 1], [], []>} : vector<8x128xf32>, vector<128x512xf32>, vector<8x512xf32> -> vector<8x512xf32>
    %684 = arith.addf %682, %683 : vector<8x512xf32>
    %685 = arith.index_cast %678 : i32 to index
    %c0_153 = arith.constant 0 : index
    %c0_154 = arith.constant 0 : index
    %686 = vector.load %arg8[%685, %c0_153, %c0_154] : memref<8x8x1024xf32, #tpu.memory_space<vmem>>, vector<1x8x1024xf32>
    %687 = vector.shape_cast %686 : vector<1x8x1024xf32> to vector<8x1024xf32>
    %688 = vector.extract_strided_slice %687 {offsets = [0, 512], sizes = [8, 512], strides = [1, 1]} : vector<8x1024xf32> to vector<8x512xf32>
    %cst_155 = arith.constant dense<0.000000e+00> : vector<8x512xf32>
    %689 = tpu.matmul %674, %10, %cst_155 {dimension_numbers = #tpu.dot_dimension_numbers<[1], [0], [0], [1], [0, 0, 1, 1], [], []>} : vector<8x128xf32>, vector<128x512xf32>, vector<8x512xf32> -> vector<8x512xf32>
    %690 = arith.addf %688, %689 : vector<8x512xf32>
    %691 = vector.extract_strided_slice %684 {offsets = [0, 0], sizes = [8, 128], strides = [1, 1]} : vector<8x512xf32> to vector<8x128xf32>
    %692 = arith.negf %691 : vector<8x128xf32>
    %693 = math.exp %692 : vector<8x128xf32>
    %cst_156 = arith.constant 1.000000e+00 : f32
    %694 = vector.broadcast %cst_156 : f32 to vector<8x128xf32>
    %695 = arith.addf %694, %693 : vector<8x128xf32>
    %696 = arith.divf %694, %695 : vector<8x128xf32>
    %697 = vector.extract_strided_slice %684 {offsets = [0, 128], sizes = [8, 128], strides = [1, 1]} : vector<8x512xf32> to vector<8x128xf32>
    %698 = arith.negf %697 : vector<8x128xf32>
    %699 = math.exp %698 : vector<8x128xf32>
    %cst_157 = arith.constant 1.000000e+00 : f32
    %700 = vector.broadcast %cst_157 : f32 to vector<8x128xf32>
    %701 = arith.addf %700, %699 : vector<8x128xf32>
    %702 = arith.divf %700, %701 : vector<8x128xf32>
    %703 = vector.extract_strided_slice %684 {offsets = [0, 256], sizes = [8, 128], strides = [1, 1]} : vector<8x512xf32> to vector<8x128xf32>
    %704 = math.tanh %703 : vector<8x128xf32>
    %705 = vector.extract_strided_slice %684 {offsets = [0, 384], sizes = [8, 128], strides = [1, 1]} : vector<8x512xf32> to vector<8x128xf32>
    %706 = arith.negf %705 : vector<8x128xf32>
    %707 = math.exp %706 : vector<8x128xf32>
    %cst_158 = arith.constant 1.000000e+00 : f32
    %708 = vector.broadcast %cst_158 : f32 to vector<8x128xf32>
    %709 = arith.addf %708, %707 : vector<8x128xf32>
    %710 = arith.divf %708, %709 : vector<8x128xf32>
    %711 = arith.mulf %702, %671 : vector<8x128xf32>
    %712 = arith.mulf %696, %704 : vector<8x128xf32>
    %713 = arith.addf %711, %712 : vector<8x128xf32>
    %714 = math.tanh %713 : vector<8x128xf32>
    %715 = arith.mulf %710, %714 : vector<8x128xf32>
    %716 = vector.extract_strided_slice %690 {offsets = [0, 0], sizes = [8, 128], strides = [1, 1]} : vector<8x512xf32> to vector<8x128xf32>
    %717 = arith.negf %716 : vector<8x128xf32>
    %718 = math.exp %717 : vector<8x128xf32>
    %cst_159 = arith.constant 1.000000e+00 : f32
    %719 = vector.broadcast %cst_159 : f32 to vector<8x128xf32>
    %720 = arith.addf %719, %718 : vector<8x128xf32>
    %721 = arith.divf %719, %720 : vector<8x128xf32>
    %722 = vector.extract_strided_slice %690 {offsets = [0, 128], sizes = [8, 128], strides = [1, 1]} : vector<8x512xf32> to vector<8x128xf32>
    %723 = arith.negf %722 : vector<8x128xf32>
    %724 = math.exp %723 : vector<8x128xf32>
    %cst_160 = arith.constant 1.000000e+00 : f32
    %725 = vector.broadcast %cst_160 : f32 to vector<8x128xf32>
    %726 = arith.addf %725, %724 : vector<8x128xf32>
    %727 = arith.divf %725, %726 : vector<8x128xf32>
    %728 = vector.extract_strided_slice %690 {offsets = [0, 256], sizes = [8, 128], strides = [1, 1]} : vector<8x512xf32> to vector<8x128xf32>
    %729 = math.tanh %728 : vector<8x128xf32>
    %730 = vector.extract_strided_slice %690 {offsets = [0, 384], sizes = [8, 128], strides = [1, 1]} : vector<8x512xf32> to vector<8x128xf32>
    %731 = arith.negf %730 : vector<8x128xf32>
    %732 = math.exp %731 : vector<8x128xf32>
    %cst_161 = arith.constant 1.000000e+00 : f32
    %733 = vector.broadcast %cst_161 : f32 to vector<8x128xf32>
    %734 = arith.addf %733, %732 : vector<8x128xf32>
    %735 = arith.divf %733, %734 : vector<8x128xf32>
    %736 = arith.mulf %727, %677 : vector<8x128xf32>
    %737 = arith.mulf %721, %729 : vector<8x128xf32>
    %738 = arith.addf %736, %737 : vector<8x128xf32>
    %739 = math.tanh %738 : vector<8x128xf32>
    %740 = arith.mulf %735, %739 : vector<8x128xf32>
    %741 = vector.broadcast %c7_i32_148 : i32 to vector<8x1xi32>
    %742 = arith.cmpi slt, %741, %11 : vector<8x1xi32>
    %743 = vector.broadcast %678 : i32 to vector<8x1xi32>
    %744 = arith.cmpi slt, %743, %11 : vector<8x1xi32>
    %cst_162 = arith.constant 0.000000e+00 : f32
    %745 = vector.shape_cast %742 : vector<8x1xi1> to vector<8x1xi1>
    %746 = vector.broadcast %745 : vector<8x1xi1> to vector<8x128xi1>
    %747 = vector.broadcast %cst_162 : f32 to vector<8x128xf32>
    %748 = arith.select %746, %715, %747 : vector<8x128xi1>, vector<8x128xf32>
    %749 = arith.index_cast %c7_i32_148 : i32 to index
    %c0_163 = arith.constant 0 : index
    %c0_164 = arith.constant 0 : index
    %750 = vector.load %arg9[%749, %c0_163, %c0_164] : memref<8x8x128xf32, #tpu.memory_space<vmem>>, vector<1x8x128xf32>
    %751 = vector.shape_cast %750 : vector<1x8x128xf32> to vector<8x128xf32>
    %752 = vector.shape_cast %748 : vector<8x128xf32> to vector<1x8x128xf32>
    tpu.vector_store %arg9[%749, %c0_163, %c0_164], %752 {strides = array<i32>} : memref<8x8x128xf32, #tpu.memory_space<vmem>>, vector<1x8x128xf32>,
    %cst_165 = arith.constant 0.000000e+00 : f32
    %753 = vector.shape_cast %744 : vector<8x1xi1> to vector<8x1xi1>
    %754 = vector.broadcast %753 : vector<8x1xi1> to vector<8x128xi1>
    %755 = vector.broadcast %cst_165 : f32 to vector<8x128xf32>
    %756 = arith.select %754, %740, %755 : vector<8x128xi1>, vector<8x128xf32>
    %757 = arith.index_cast %678 : i32 to index
    %c0_166 = arith.constant 0 : index
    %c0_167 = arith.constant 0 : index
    %758 = vector.load %arg10[%757, %c0_166, %c0_167] : memref<8x8x128xf32, #tpu.memory_space<vmem>>, vector<1x8x128xf32>
    %759 = vector.shape_cast %758 : vector<1x8x128xf32> to vector<8x128xf32>
    %760 = vector.shape_cast %756 : vector<8x128xf32> to vector<1x8x128xf32>
    tpu.vector_store %arg10[%757, %c0_166, %c0_167], %760 {strides = array<i32>} : memref<8x8x128xf32, #tpu.memory_space<vmem>>, vector<1x8x128xf32>,
    %761 = vector.shape_cast %742 : vector<8x1xi1> to vector<8x1xi1>
    %762 = vector.broadcast %761 : vector<8x1xi1> to vector<8x128xi1>
    %763 = arith.select %762, %715, %668 : vector<8x128xi1>, vector<8x128xf32>
    %764 = vector.shape_cast %742 : vector<8x1xi1> to vector<8x1xi1>
    %765 = vector.broadcast %764 : vector<8x1xi1> to vector<8x128xi1>
    %766 = arith.select %765, %713, %671 : vector<8x128xi1>, vector<8x128xf32>
    %767 = vector.shape_cast %744 : vector<8x1xi1> to vector<8x1xi1>
    %768 = vector.broadcast %767 : vector<8x1xi1> to vector<8x128xi1>
    %769 = arith.select %768, %740, %674 : vector<8x128xi1>, vector<8x128xf32>
    %770 = vector.shape_cast %744 : vector<8x1xi1> to vector<8x1xi1>
    %771 = vector.broadcast %770 : vector<8x1xi1> to vector<8x128xi1>
    %772 = arith.select %771, %738, %677 : vector<8x128xi1>, vector<8x128xf32>
    %c8_i32 = arith.constant 8 : i32
    %c0_168 = arith.constant 0 : index
    %c0_169 = arith.constant 0 : index
    %c0_170 = arith.constant 0 : index
    %773 = vector.load %arg9[%c0_168, %c0_169, %c0_170] : memref<8x8x128xf32, #tpu.memory_space<vmem>>, vector<8x8x128xf32>
    %c0_171 = arith.constant 0 : index
    %c0_172 = arith.constant 0 : index
    %c0_173 = arith.constant 0 : index
    %774 = vector.load %arg6[%c0_171, %c0_172, %c0_173] : memref<8x8x256xf32, #tpu.memory_space<vmem>>, vector<8x8x128xf32>
    tpu.vector_store %arg6[%c0_171, %c0_172, %c0_173], %773 {strides = array<i32>} : memref<8x8x256xf32, #tpu.memory_space<vmem>>, vector<8x8x128xf32>,
    %c0_174 = arith.constant 0 : index
    %c0_175 = arith.constant 0 : index
    %c0_176 = arith.constant 0 : index
    %775 = vector.load %arg10[%c0_174, %c0_175, %c0_176] : memref<8x8x128xf32, #tpu.memory_space<vmem>>, vector<8x8x128xf32>
    %c0_177 = arith.constant 0 : index
    %c0_178 = arith.constant 0 : index
    %c128 = arith.constant 128 : index
    %776 = vector.load %arg6[%c0_177, %c0_178, %c128] : memref<8x8x256xf32, #tpu.memory_space<vmem>>, vector<8x8x128xf32>
    tpu.vector_store %arg6[%c0_177, %c0_178, %c128], %775 {strides = array<i32>} : memref<8x8x256xf32, #tpu.memory_space<vmem>>, vector<8x8x128xf32>,
    %c0_179 = arith.constant 0 : index
    %c0_180 = arith.constant 0 : index
    %777 = vector.load %arg7[%c0_179, %c0_180] : memref<8x256xf32, #tpu.memory_space<vmem>>, vector<8x128xf32>
    tpu.vector_store %arg7[%c0_179, %c0_180], %763 {strides = array<i32>} : memref<8x256xf32, #tpu.memory_space<vmem>>, vector<8x128xf32>,
    %c0_181 = arith.constant 0 : index
    %c128_182 = arith.constant 128 : index
    %778 = vector.load %arg7[%c0_181, %c128_182] : memref<8x256xf32, #tpu.memory_space<vmem>>, vector<8x128xf32>
    tpu.vector_store %arg7[%c0_181, %c128_182], %769 {strides = array<i32>} : memref<8x256xf32, #tpu.memory_space<vmem>>, vector<8x128xf32>,
    return
  }
}

</mosaic_0001>

<llo_original>
// kernel: tpu_custom_call.1
$region0: #{tpu_custom_call.1}
  #allocation0 [shape = 'u32[]', space=smem, size = 0x4, offset = 0x4, fixed_abs, tag = 'smem constant byte address 0x4 - core index']
  #allocation1 [shape = 'u32[72,128]{1,0:T(1,128)}', space=vmem, size = 0x9000, scoped, tag = 'internal scratch']
  #allocation2 [shape = 'f32[8,8,1024]{2,1,0:T(8,128)}', space=vmem, size = 0x40000, scoped, tag = 'scratch operand']
  #allocation3 [shape = 'f32[8,8,128]{2,1,0:T(8,128)}', space=vmem, size = 0x8000, scoped, tag = 'scratch operand']
  #allocation4 [shape = 'f32[8,8,128]{2,1,0:T(8,128)}', space=vmem, size = 0x8000, scoped, tag = 'scratch operand']
  %s0 = inlined_call_operand.hbm [shape: f32[8,8,128], index: 0, kind: input, shape index: {}]
  %s1 = inlined_call_operand.hbm [shape: f32[128,1024], index: 1, kind: input, shape index: {}]
  %s2 = inlined_call_operand.hbm [shape: f32[128,512], index: 2, kind: input, shape index: {}]
  %s3 = inlined_call_operand.hbm [shape: f32[128,512], index: 3, kind: input, shape index: {}]
  %s4 = inlined_call_operand.vmem [shape: f32[1,1024], index: 4, kind: input, shape index: {}]
  %s5 = inlined_call_operand.vmem [shape: s32[8,1], index: 5, kind: input, shape index: {}]
  %s6 = inlined_call_operand.hbm [shape: f32[8,8,256], index: 6, kind: output, shape index: {0}]
  %s7 = inlined_call_operand.hbm [shape: f32[8,256], index: 7, kind: output, shape index: {1}]
  %8 = xla_tuple %s6, %s7
  %s9 = sld [smem:[#allocation0]]
  $region58: #{tpu_custom_call.1} parent=0
    _
  %s11 = ssub.s32 1, %s9
  %s12 = scalar_select 0, %s11, %s9
  $region1: #{tpu_custom_call.1} parent=0
    #allocation5 [shape = 'u8[32768]{0}', space=vmem, size = 0x8000, scoped, tag = 'input window, operand 0, single buffered']
    #allocation6 [shape = 's32[1]{0}', space=sflag, size = 0x4, scoped, tag = 'scoped memory for tpu_custom_call.1']
    #allocation7 [shape = 's32[1]{0}', space=sflag, size = 0x4, scoped, tag = 'scoped memory for tpu_custom_call.1']
    #allocation8 [shape = 'u8[524288]{0}', space=vmem, size = 0x80000, scoped, tag = 'input window, operand 1, single buffered']
    #allocation9 [shape = 's32[1]{0}', space=sflag, size = 0x4, scoped, tag = 'scoped memory for tpu_custom_call.1']
    #allocation10 [shape = 'u8[262144]{0}', space=vmem, size = 0x40000, scoped, tag = 'input window, operand 2, single buffered']
    #allocation11 [shape = 'u8[262144]{0}', space=vmem, size = 0x40000, scoped, tag = 'input window, operand 3, single buffered']
    #allocation12 [shape = 's32[1]{0}', space=sflag, size = 0x4, scoped, tag = 'scoped memory for tpu_custom_call.1']
    #allocation13 [shape = 'u8[65536]{0}', space=vmem, size = 0x10000, scoped, tag = 'output window, operand 0, single buffered']
    #allocation14 [shape = 'u8[8192]{0}', space=vmem, size = 0x2000, scoped, tag = 'output window, operand 1, single buffered']
    #allocation15 [shape = 's32[1]{0}', space=sflag, size = 0x4, scoped, tag = 'scoped memory for tpu_custom_call.1']
    %13 = vsyncpa [#allocation6], 0
    %14 = vsyncpa [#allocation9], 0
    %15 = vsyncpa [#allocation12], 0
    %16 = vsyncpa [#allocation7], 0
    %17 = vsyncpa [#allocation15], 0
    // Predicated region
    $region2: #{tpu_custom_call.1} parent=1 // pred_check
      _
    $region3: #{tpu_custom_call.1} parent=1 // pred_check_branch
      %19 = sbr.rel (0) target = $region5
    $region4: #{tpu_custom_call.1} parent=1 // pred_region
      %21 = vsyncadd [#allocation6], 0
      %s22 = sshll.u32 %s0, 4
      %s23 = int_to_ptr.hbm [resolvable:$true] %s22
      %s24 = sshll.u32 [#allocation5], 4
      %s25 = int_to_ptr.vmem [resolvable:$true] %s24
      %30 = dma.hbm_to_vmem [thread:$0]  %s23, 1024, %s25, [#allocation6], 128, 128, 8
    $region5: #{tpu_custom_call.1} parent=1 // pred_fallthru
      _
    // Predicated region
    $region6: #{tpu_custom_call.1} parent=1 // pred_check
      _
    $region7: #{tpu_custom_call.1} parent=1 // pred_check_branch
      %32 = sbr.rel (0) target = $region9
    $region8: #{tpu_custom_call.1} parent=1 // pred_region
      %34 = vsyncadd [#allocation9], 0
      %s35 = sshll.u32 %s1, 4
      %s36 = int_to_ptr.hbm [resolvable:$true] %s35
      %s37 = sshll.u32 [#allocation8], 4
      %s38 = int_to_ptr.vmem [resolvable:$true] %s37
      %43 = dma.hbm_to_vmem [thread:$0]  %s36, 16384, %s38, [#allocation9], 1024, 1024, 64
    $region9: #{tpu_custom_call.1} parent=1 // pred_fallthru
      _
    // Predicated region
    $region10: #{tpu_custom_call.1} parent=1 // pred_check
      _
    $region11: #{tpu_custom_call.1} parent=1 // pred_check_branch
      %45 = sbr.rel (0) target = $region13
    $region12: #{tpu_custom_call.1} parent=1 // pred_region
      %47 = vsyncadd [#allocation9], 0
      %s48 = sshll.u32 %s2, 4
      %s49 = int_to_ptr.hbm [resolvable:$true] %s48
      %s50 = sshll.u32 [#allocation10], 4
      %s51 = int_to_ptr.vmem [resolvable:$true] %s50
      %56 = dma.hbm_to_vmem [thread:$0]  %s49, 8192, %s51, [#allocation9], 512, 512, 32
    $region13: #{tpu_custom_call.1} parent=1 // pred_fallthru
      _
    // Predicated region
    $region14: #{tpu_custom_call.1} parent=1 // pred_check
      _
    $region15: #{tpu_custom_call.1} parent=1 // pred_check_branch
      %58 = sbr.rel (0) target = $region17
    $region16: #{tpu_custom_call.1} parent=1 // pred_region
      %60 = vsyncadd [#allocation12], 0
      %s61 = sshll.u32 %s3, 4
      %s62 = int_to_ptr.hbm [resolvable:$true] %s61
      %s63 = sshll.u32 [#allocation11], 4
      %s64 = int_to_ptr.vmem [resolvable:$true] %s63
      %69 = dma.hbm_to_vmem [thread:$0]  %s62, 8192, %s64, [#allocation12], 512, 512, 32
    $region17: #{tpu_custom_call.1} parent=1 // pred_fallthru
      _
    // Predicated region
    $region18: #{tpu_custom_call.1} parent=1 // pred_check
      _
    $region19: #{tpu_custom_call.1} parent=1 // pred_check_branch
      %71 = sbr.rel (0) target = $region21
    $region20: #{tpu_custom_call.1} parent=1 // pred_region
      _
    $region21: #{tpu_custom_call.1} parent=1 // pred_fallthru
      _
    // Predicated region
    $region22: #{tpu_custom_call.1} parent=1 // pred_check
      _
    $region23: #{tpu_custom_call.1} parent=1 // pred_check_branch
      %73 = sbr.rel (0) target = $region25
    $region24: #{tpu_custom_call.1} parent=1 // pred_region
      _
    $region25: #{tpu_custom_call.1} parent=1 // pred_fallthru
      _
    // Predicated region
    $region26: #{tpu_custom_call.1} parent=1 // pred_check
      _
    $region27: #{tpu_custom_call.1} parent=1 // pred_check_branch
      %75 = sbr.rel (0) target = $region29
    $region28: #{tpu_custom_call.1} parent=1 // pred_region
      %77 = dma.done [#allocation6], 1024
    $region29: #{tpu_custom_call.1} parent=1 // pred_fallthru
      _
    // Predicated region
    $region30: #{tpu_custom_call.1} parent=1 // pred_check
      _
    $region31: #{tpu_custom_call.1} parent=1 // pred_check_branch
      %79 = sbr.rel (0) target = $region33
    $region32: #{tpu_custom_call.1} parent=1 // pred_region
      %81 = dma.done [#allocation9], 16384
    $region33: #{tpu_custom_call.1} parent=1 // pred_fallthru
      _
    // Predicated region
    $region34: #{tpu_custom_call.1} parent=1 // pred_check
      _
    $region35: #{tpu_custom_call.1} parent=1 // pred_check_branch
      %83 = sbr.rel (0) target = $region37
    $region36: #{tpu_custom_call.1} parent=1 // pred_region
      %85 = dma.done [#allocation9], 8192
    $region37: #{tpu_custom_call.1} parent=1 // pred_fallthru
      _
    // Predicated region
    $region38: #{tpu_custom_call.1} parent=1 // pred_check
      _
    $region39: #{tpu_custom_call.1} parent=1 // pred_check_branch
      %87 = sbr.rel (0) target = $region41
    $region40: #{tpu_custom_call.1} parent=1 // pred_region
      %89 = dma.done [#allocation12], 8192
    $region41: #{tpu_custom_call.1} parent=1 // pred_fallthru
      _
    %v90 = vld [vmem:[#allocation5] sm:$0xff]
    %v91 = vld [vmem:[#allocation5 + $0x8] sm:$0xff]
    %v92 = vld [vmem:[#allocation5 + $0x10] sm:$0xff]
    %v93 = vld [vmem:[#allocation5 + $0x18] sm:$0xff]
    %v94 = vld [vmem:[#allocation5 + $0x20] sm:$0xff]
    %v95 = vld [vmem:[#allocation5 + $0x28] sm:$0xff]
    %v96 = vld [vmem:[#allocation5 + $0x30] sm:$0xff]
    %v97 = vld [vmem:[#allocation5 + $0x38] sm:$0xff]
    %v98 = vld [vmem:[#allocation8] sm:$0xff]
    %v99 = vld [vmem:[#allocation8 + $0x8] sm:$0xff]
    %v100 = vld [vmem:[#allocation8 + $0x10] sm:$0xff]
    %v101 = vld [vmem:[#allocation8 + $0x18] sm:$0xff]
    %v102 = vld [vmem:[#allocation8 + $0x20] sm:$0xff]
    %v103 = vld [vmem:[#allocation8 + $0x28] sm:$0xff]
    %v104 = vld [vmem:[#allocation8 + $0x30] sm:$0xff]
    %v105 = vld [vmem:[#allocation8 + $0x38] sm:$0xff]
    %v106 = vld [vmem:[#allocation8 + $0x40] sm:$0xff]
    %v107 = vld [vmem:[#allocation8 + $0x48] sm:$0xff]
    %v108 = vld [vmem:[#allocation8 + $0x50] sm:$0xff]
    %v109 = vld [vmem:[#allocation8 + $0x58] sm:$0xff]
    %v110 = vld [vmem:[#allocation8 + $0x60] sm:$0xff]
    %v111 = vld [vmem:[#allocation8 + $0x68] sm:$0xff]
    %v112 = vld [vmem:[#allocation8 + $0x70] sm:$0xff]
    %v113 = vld [vmem:[#allocation8 + $0x78] sm:$0xff]
    %v114 = vld [vmem:[#allocation8 + $0x80] sm:$0xff]
    %v115 = vld [vmem:[#allocation8 + $0x88] sm:$0xff]
    %v116 = vld [vmem:[#allocation8 + $0x90] sm:$0xff]
    %v117 = vld [vmem:[#allocation8 + $0x98] sm:$0xff]
    %v118 = vld [vmem:[#allocation8 + $0xa0] sm:$0xff]
    %v119 = vld [vmem:[#allocation8 + $0xa8] sm:$0xff]
    %v120 = vld [vmem:[#allocation8 + $0xb0] sm:$0xff]
    %v121 = vld [vmem:[#allocation8 + $0xb8] sm:$0xff]
    %v122 = vld [vmem:[#allocation8 + $0xc0] sm:$0xff]
    %v123 = vld [vmem:[#allocation8 + $0xc8] sm:$0xff]
    %v124 = vld [vmem:[#allocation8 + $0xd0] sm:$0xff]
    %v125 = vld [vmem:[#allocation8 + $0xd8] sm:$0xff]
    %v126 = vld [vmem:[#allocation8 + $0xe0] sm:$0xff]
    %v127 = vld [vmem:[#allocation8 + $0xe8] sm:$0xff]
    %v128 = vld [vmem:[#allocation8 + $0xf0] sm:$0xff]
    %v129 = vld [vmem:[#allocation8 + $0xf8] sm:$0xff]
    %v130 = vld [vmem:[#allocation8 + $0x100] sm:$0xff]
    %v131 = vld [vmem:[#allocation8 + $0x108] sm:$0xff]
    %v132 = vld [vmem:[#allocation8 + $0x110] sm:$0xff]
    %v133 = vld [vmem:[#allocation8 + $0x118] sm:$0xff]
    %v134 = vld [vmem:[#allocation8 + $0x120] sm:$0xff]
    %v135 = vld [vmem:[#allocation8 + $0x128] sm:$0xff]
    %v136 = vld [vmem:[#allocation8 + $0x130] sm:$0xff]
    %v137 = vld [vmem:[#allocation8 + $0x138] sm:$0xff]
    %v138 = vld [vmem:[#allocation8 + $0x140] sm:$0xff]
    %v139 = vld [vmem:[#allocation8 + $0x148] sm:$0xff]
    %v140 = vld [vmem:[#allocation8 + $0x150] sm:$0xff]
    %v141 = vld [vmem:[#allocation8 + $0x158] sm:$0xff]
    %v142 = vld [vmem:[#allocation8 + $0x160] sm:$0xff]
    %v143 = vld [vmem:[#allocation8 + $0x168] sm:$0xff]
    %v144 = vld [vmem:[#allocation8 + $0x170] sm:$0xff]
    %v145 = vld [vmem:[#allocation8 + $0x178] sm:$0xff]
    %v146 = vld [vmem:[#allocation8 + $0x180] sm:$0xff]
    %v147 = vld [vmem:[#allocation8 + $0x188] sm:$0xff]
    %v148 = vld [vmem:[#allocation8 + $0x190] sm:$0xff]
    %v149 = vld [vmem:[#allocation8 + $0x198] sm:$0xff]
    %v150 = vld [vmem:[#allocation8 + $0x1a0] sm:$0xff]
    %v151 = vld [vmem:[#allocation8 + $0x1a8] sm:$0xff]
    %v152 = vld [vmem:[#allocation8 + $0x1b0] sm:$0xff]
    %v153 = vld [vmem:[#allocation8 + $0x1b8] sm:$0xff]
    %v154 = vld [vmem:[#allocation8 + $0x1c0] sm:$0xff]
    %v155 = vld [vmem:[#allocation8 + $0x1c8] sm:$0xff]
    %v156 = vld [vmem:[#allocation8 + $0x1d0] sm:$0xff]
    %v157 = vld [vmem:[#allocation8 + $0x1d8] sm:$0xff]
    %v158 = vld [vmem:[#allocation8 + $0x1e0] sm:$0xff]
    %v159 = vld [vmem:[#allocation8 + $0x1e8] sm:$0xff]
    %v160 = vld [vmem:[#allocation8 + $0x1f0] sm:$0xff]
    %v161 = vld [vmem:[#allocation8 + $0x1f8] sm:$0xff]
    %v162 = vld [vmem:[#allocation8 + $0x200] sm:$0xff]
    %v163 = vld [vmem:[#allocation8 + $0x208] sm:$0xff]
    %v164 = vld [vmem:[#allocation8 + $0x210] sm:$0xff]
    %v165 = vld [vmem:[#allocation8 + $0x218] sm:$0xff]
    %v166 = vld [vmem:[#allocation8 + $0x220] sm:$0xff]
    %v167 = vld [vmem:[#allocation8 + $0x228] sm:$0xff]
    %v168 = vld [vmem:[#allocation8 + $0x230] sm:$0xff]
    %v169 = vld [vmem:[#allocation8 + $0x238] sm:$0xff]
    %v170 = vld [vmem:[#allocation8 + $0x240] sm:$0xff]
    %v171 = vld [vmem:[#allocation8 + $0x248] sm:$0xff]
    %v172 = vld [vmem:[#allocation8 + $0x250] sm:$0xff]
    %v173 = vld [vmem:[#allocation8 + $0x258] sm:$0xff]
    %v174 = vld [vmem:[#allocation8 + $0x260] sm:$0xff]
    %v175 = vld [vmem:[#allocation8 + $0x268] sm:$0xff]
    %v176 = vld [vmem:[#allocation8 + $0x270] sm:$0xff]
    %v177 = vld [vmem:[#allocation8 + $0x278] sm:$0xff]
    %v178 = vld [vmem:[#allocation8 + $0x280] sm:$0xff]
    %v179 = vld [vmem:[#allocation8 + $0x288] sm:$0xff]
    %v180 = vld [vmem:[#allocation8 + $0x290] sm:$0xff]
    %v181 = vld [vmem:[#allocation8 + $0x298] sm:$0xff]
    %v182 = vld [vmem:[#allocation8 + $0x2a0] sm:$0xff]
    %v183 = vld [vmem:[#allocation8 + $0x2a8] sm:$0xff]
    %v184 = vld [vmem:[#allocation8 + $0x2b0] sm:$0xff]
    %v185 = vld [vmem:[#allocation8 + $0x2b8] sm:$0xff]
    %v186 = vld [vmem:[#allocation8 + $0x2c0] sm:$0xff]
    %v187 = vld [vmem:[#allocation8 + $0x2c8] sm:$0xff]
    %v188 = vld [vmem:[#allocation8 + $0x2d0] sm:$0xff]
    %v189 = vld [vmem:[#allocation8 + $0x2d8] sm:$0xff]
    %v190 = vld [vmem:[#allocation8 + $0x2e0] sm:$0xff]
    %v191 = vld [vmem:[#allocation8 + $0x2e8] sm:$0xff]
    %v192 = vld [vmem:[#allocation8 + $0x2f0] sm:$0xff]
    %v193 = vld [vmem:[#allocation8 + $0x2f8] sm:$0xff]
    %v194 = vld [vmem:[#allocation8 + $0x300] sm:$0xff]
    %v195 = vld [vmem:[#allocation8 + $0x308] sm:$0xff]
    %v196 = vld [vmem:[#allocation8 + $0x310] sm:$0xff]
    %v197 = vld [vmem:[#allocation8 + $0x318] sm:$0xff]
    %v198 = vld [vmem:[#allocation8 + $0x320] sm:$0xff]
    %v199 = vld [vmem:[#allocation8 + $0x328] sm:$0xff]
    %v200 = vld [vmem:[#allocation8 + $0x330] sm:$0xff]
    %v201 = vld [vmem:[#allocation8 + $0x338] sm:$0xff]
    %v202 = vld [vmem:[#allocation8 + $0x340] sm:$0xff]
    %v203 = vld [vmem:[#allocation8 + $0x348] sm:$0xff]
    %v204 = vld [vmem:[#allocation8 + $0x350] sm:$0xff]
    %v205 = vld [vmem:[#allocation8 + $0x358] sm:$0xff]
    %v206 = vld [vmem:[#allocation8 + $0x360] sm:$0xff]
    %v207 = vld [vmem:[#allocation8 + $0x368] sm:$0xff]
    %v208 = vld [vmem:[#allocation8 + $0x370] sm:$0xff]
    %v209 = vld [vmem:[#allocation8 + $0x378] sm:$0xff]
    %v210 = vld [vmem:[#allocation8 + $0x380] sm:$0xff]
    %v211 = vld [vmem:[#allocation8 + $0x388] sm:$0xff]
    %v212 = vld [vmem:[#allocation8 + $0x390] sm:$0xff]
    %v213 = vld [vmem:[#allocation8 + $0x398] sm:$0xff]
    %v214 = vld [vmem:[#allocation8 + $0x3a0] sm:$0xff]
    %v215 = vld [vmem:[#allocation8 + $0x3a8] sm:$0xff]
    %v216 = vld [vmem:[#allocation8 + $0x3b0] sm:$0xff]
    %v217 = vld [vmem:[#allocation8 + $0x3b8] sm:$0xff]
    %v218 = vld [vmem:[#allocation8 + $0x3c0] sm:$0xff]
    %v219 = vld [vmem:[#allocation8 + $0x3c8] sm:$0xff]
    %v220 = vld [vmem:[#allocation8 + $0x3d0] sm:$0xff]
    %v221 = vld [vmem:[#allocation8 + $0x3d8] sm:$0xff]
    %v222 = vld [vmem:[#allocation8 + $0x3e0] sm:$0xff]
    %v223 = vld [vmem:[#allocation8 + $0x3e8] sm:$0xff]
    %v224 = vld [vmem:[#allocation8 + $0x3f0] sm:$0xff]
    %v225 = vld [vmem:[#allocation8 + $0x3f8] sm:$0xff]
    %v226 = vld [vmem:[%s4] sm:$0xff]
    %v228 = vperm.slane %v226, 0
    %v229 = vperm.slane %v226, 1
    %v230 = vperm.slane %v226, 2
    %v231 = vperm.slane %v226, 3
    %v232 = vperm.slane %v226, 4
    %v233 = vperm.slane %v226, 5
    %v234 = vperm.slane %v226, 6
    %v235 = vperm.slane %v226, 7
    %244 = vmatpush.msra.mxu0 %v218
    %245 = vmatpush.msra.mxu0 %v210
    %246 = vmatpush.msra.mxu0 %v202
    %247 = vmatpush.msra.mxu0 %v194
    %248 = vmatpush.msra.mxu0 %v186
    %249 = vmatpush.msra.mxu0 %v178
    %250 = vmatpush.msra.mxu0 %v170
    %251 = vmatpush.msra.mxu0 %v162
    %252 = vmatpush.msra.mxu0 %v154
    %253 = vmatpush.msra.mxu0 %v146
    %254 = vmatpush.msra.mxu0 %v138
    %255 = vmatpush.msra.mxu0 %v130
    %256 = vmatpush.msra.mxu0 %v122
    %257 = vmatpush.msra.mxu0 %v114
    %258 = vmatpush.msra.mxu0 %v106
    %259 = vmatpush.msra.mxu0 %v98
    %260 = vmatmul.f32.gmra.mxu0 %v90
    %v261 = vpop.f32.mrf.mxu0
    %v262 = vadd.f32 %v228, %v261
    %263 = vmatmul.f32.gmra.mxu0 %v91
    %v264 = vpop.f32.mrf.mxu0
    %v265 = vadd.f32 %v228, %v264
    %266 = vmatmul.f32.gmra.mxu0 %v92
    %v267 = vpop.f32.mrf.mxu0
    %v268 = vadd.f32 %v228, %v267
    %269 = vmatmul.f32.gmra.mxu0 %v93
    %v270 = vpop.f32.mrf.mxu0
    %v271 = vadd.f32 %v228, %v270
    %272 = vmatmul.f32.gmra.mxu0 %v94
    %v273 = vpop.f32.mrf.mxu0
    %v274 = vadd.f32 %v228, %v273
    %275 = vmatmul.f32.gmra.mxu0 %v95
    %v276 = vpop.f32.mrf.mxu0
    %v277 = vadd.f32 %v228, %v276
    %278 = vmatmul.f32.gmra.mxu0 %v96
    %v279 = vpop.f32.mrf.mxu0
    %v280 = vadd.f32 %v228, %v279
    %281 = vmatmul.f32.gmra.mxu0 %v97
    %v282 = vpop.f32.mrf.mxu0
    %v283 = vadd.f32 %v228, %v282
    %284 = vdwg.mxu0
    %285 = vmatpush.msra.mxu0 %v219
    %286 = vmatpush.msra.mxu0 %v211
    %287 = vmatpush.msra.mxu0 %v203
    %288 = vmatpush.msra.mxu0 %v195
    %289 = vmatpush.msra.mxu0 %v187
    %290 = vmatpush.msra.mxu0 %v179
    %291 = vmatpush.msra.mxu0 %v171
    %292 = vmatpush.msra.mxu0 %v163
    %293 = vmatpush.msra.mxu0 %v155
    %294 = vmatpush.msra.mxu0 %v147
    %295 = vmatpush.msra.mxu0 %v139
    %296 = vmatpush.msra.mxu0 %v131
    %297 = vmatpush.msra.mxu0 %v123
    %298 = vmatpush.msra.mxu0 %v115
    %299 = vmatpush.msra.mxu0 %v107
    %300 = vmatpush.msra.mxu0 %v99
    %301 = vmatmul.f32.gmra.mxu0 %v90
    %v302 = vpop.f32.mrf.mxu0
    %v303 = vadd.f32 %v229, %v302
    %304 = vmatmul.f32.gmra.mxu0 %v91
    %v305 = vpop.f32.mrf.mxu0
    %v306 = vadd.f32 %v229, %v305
    %307 = vmatmul.f32.gmra.mxu0 %v92
    %v308 = vpop.f32.mrf.mxu0
    %v309 = vadd.f32 %v229, %v308
    %310 = vmatmul.f32.gmra.mxu0 %v93
    %v311 = vpop.f32.mrf.mxu0
    %v312 = vadd.f32 %v229, %v311
    %313 = vmatmul.f32.gmra.mxu0 %v94
    %v314 = vpop.f32.mrf.mxu0
    %v315 = vadd.f32 %v229, %v314
    %316 = vmatmul.f32.gmra.mxu0 %v95
    %v317 = vpop.f32.mrf.mxu0
    %v318 = vadd.f32 %v229, %v317
    %319 = vmatmul.f32.gmra.mxu0 %v96
    %v320 = vpop.f32.mrf.mxu0
    %v321 = vadd.f32 %v229, %v320
    %322 = vmatmul.f32.gmra.mxu0 %v97
    %v323 = vpop.f32.mrf.mxu0
    %v324 = vadd.f32 %v229, %v323
    %325 = vdwg.mxu0
    %326 = vmatpush.msra.mxu0 %v220
    %327 = vmatpush.msra.mxu0 %v212
    %328 = vmatpush.msra.mxu0 %v204
    %329 = vmatpush.msra.mxu0 %v196
    %330 = vmatpush.msra.mxu0 %v188
    %331 = vmatpush.msra.mxu0 %v180
    %332 = vmatpush.msra.mxu0 %v172
    %333 = vmatpush.msra.mxu0 %v164
    %334 = vmatpush.msra.mxu0 %v156
    %335 = vmatpush.msra.mxu0 %v148
    %336 = vmatpush.msra.mxu0 %v140
    %337 = vmatpush.msra.mxu0 %v132
    %338 = vmatpush.msra.mxu0 %v124
    %339 = vmatpush.msra.mxu0 %v116
    %340 = vmatpush.msra.mxu0 %v108
    %341 = vmatpush.msra.mxu0 %v100
    %342 = vmatmul.f32.gmra.mxu0 %v90
    %v343 = vpop.f32.mrf.mxu0
    %v344 = vadd.f32 %v230, %v343
    %345 = vmatmul.f32.gmra.mxu0 %v91
    %v346 = vpop.f32.mrf.mxu0
    %v347 = vadd.f32 %v230, %v346
    %348 = vmatmul.f32.gmra.mxu0 %v92
    %v349 = vpop.f32.mrf.mxu0
    %v350 = vadd.f32 %v230, %v349
    %351 = vmatmul.f32.gmra.mxu0 %v93
    %v352 = vpop.f32.mrf.mxu0
    %v353 = vadd.f32 %v230, %v352
    %354 = vmatmul.f32.gmra.mxu0 %v94
    %v355 = vpop.f32.mrf.mxu0
    %v356 = vadd.f32 %v230, %v355
    %357 = vmatmul.f32.gmra.mxu0 %v95
    %v358 = vpop.f32.mrf.mxu0
    %v359 = vadd.f32 %v230, %v358
    %360 = vmatmul.f32.gmra.mxu0 %v96
    %v361 = vpop.f32.mrf.mxu0
    %v362 = vadd.f32 %v230, %v361
    %363 = vmatmul.f32.gmra.mxu0 %v97
    %v364 = vpop.f32.mrf.mxu0
    %v365 = vadd.f32 %v230, %v364
    %366 = vdwg.mxu0
    %367 = vmatpush.msra.mxu0 %v221
    %368 = vmatpush.msra.mxu0 %v213
    %369 = vmatpush.msra.mxu0 %v205
    %370 = vmatpush.msra.mxu0 %v197
    %371 = vmatpush.msra.mxu0 %v189
    %372 = vmatpush.msra.mxu0 %v181
    %373 = vmatpush.msra.mxu0 %v173
    %374 = vmatpush.msra.mxu0 %v165
    %375 = vmatpush.msra.mxu0 %v157
    %376 = vmatpush.msra.mxu0 %v149
    %377 = vmatpush.msra.mxu0 %v141
    %378 = vmatpush.msra.mxu0 %v133
    %379 = vmatpush.msra.mxu0 %v125
    %380 = vmatpush.msra.mxu0 %v117
    %381 = vmatpush.msra.mxu0 %v109
    %382 = vmatpush.msra.mxu0 %v101
    %383 = vmatmul.f32.gmra.mxu0 %v90
    %v384 = vpop.f32.mrf.mxu0
    %v385 = vadd.f32 %v231, %v384
    %386 = vmatmul.f32.gmra.mxu0 %v91
    %v387 = vpop.f32.mrf.mxu0
    %v388 = vadd.f32 %v231, %v387
    %389 = vmatmul.f32.gmra.mxu0 %v92
    %v390 = vpop.f32.mrf.mxu0
    %v391 = vadd.f32 %v231, %v390
    %392 = vmatmul.f32.gmra.mxu0 %v93
    %v393 = vpop.f32.mrf.mxu0
    %v394 = vadd.f32 %v231, %v393
    %395 = vmatmul.f32.gmra.mxu0 %v94
    %v396 = vpop.f32.mrf.mxu0
    %v397 = vadd.f32 %v231, %v396
    %398 = vmatmul.f32.gmra.mxu0 %v95
    %v399 = vpop.f32.mrf.mxu0
    %v400 = vadd.f32 %v231, %v399
    %401 = vmatmul.f32.gmra.mxu0 %v96
    %v402 = vpop.f32.mrf.mxu0
    %v403 = vadd.f32 %v231, %v402
    %404 = vmatmul.f32.gmra.mxu0 %v97
    %v405 = vpop.f32.mrf.mxu0
    %v406 = vadd.f32 %v231, %v405
    %407 = vdwg.mxu0
    %408 = vmatpush.msra.mxu0 %v222
    %409 = vmatpush.msra.mxu0 %v214
    %410 = vmatpush.msra.mxu0 %v206
    %411 = vmatpush.msra.mxu0 %v198
    %412 = vmatpush.msra.mxu0 %v190
    %413 = vmatpush.msra.mxu0 %v182
    %414 = vmatpush.msra.mxu0 %v174
    %415 = vmatpush.msra.mxu0 %v166
    %416 = vmatpush.msra.mxu0 %v158
    %417 = vmatpush.msra.mxu0 %v150
    %418 = vmatpush.msra.mxu0 %v142
    %419 = vmatpush.msra.mxu0 %v134
    %420 = vmatpush.msra.mxu0 %v126
    %421 = vmatpush.msra.mxu0 %v118
    %422 = vmatpush.msra.mxu0 %v110
    %423 = vmatpush.msra.mxu0 %v102
    %424 = vmatmul.f32.gmra.mxu0 %v90
    %v425 = vpop.f32.mrf.mxu0
    %v426 = vadd.f32 %v232, %v425
    %427 = vmatmul.f32.gmra.mxu0 %v91
    %v428 = vpop.f32.mrf.mxu0
    %v429 = vadd.f32 %v232, %v428
    %430 = vmatmul.f32.gmra.mxu0 %v92
    %v431 = vpop.f32.mrf.mxu0
    %v432 = vadd.f32 %v232, %v431
    %433 = vmatmul.f32.gmra.mxu0 %v93
    %v434 = vpop.f32.mrf.mxu0
    %v435 = vadd.f32 %v232, %v434
    %436 = vmatmul.f32.gmra.mxu0 %v94
    %v437 = vpop.f32.mrf.mxu0
    %v438 = vadd.f32 %v232, %v437
    %439 = vmatmul.f32.gmra.mxu0 %v95
    %v440 = vpop.f32.mrf.mxu0
    %v441 = vadd.f32 %v232, %v440
    %442 = vmatmul.f32.gmra.mxu0 %v96
    %v443 = vpop.f32.mrf.mxu0
    %v444 = vadd.f32 %v232, %v443
    %445 = vmatmul.f32.gmra.mxu0 %v97
    %v446 = vpop.f32.mrf.mxu0
    %v447 = vadd.f32 %v232, %v446
    %448 = vdwg.mxu0
    %449 = vmatpush.msra.mxu0 %v223
    %450 = vmatpush.msra.mxu0 %v215
    %451 = vmatpush.msra.mxu0 %v207
    %452 = vmatpush.msra.mxu0 %v199
    %453 = vmatpush.msra.mxu0 %v191
    %454 = vmatpush.msra.mxu0 %v183
    %455 = vmatpush.msra.mxu0 %v175
    %456 = vmatpush.msra.mxu0 %v167
    %457 = vmatpush.msra.mxu0 %v159
    %458 = vmatpush.msra.mxu0 %v151
    %459 = vmatpush.msra.mxu0 %v143
    %460 = vmatpush.msra.mxu0 %v135
    %461 = vmatpush.msra.mxu0 %v127
    %462 = vmatpush.msra.mxu0 %v119
    %463 = vmatpush.msra.mxu0 %v111
    %464 = vmatpush.msra.mxu0 %v103
    %465 = vmatmul.f32.gmra.mxu0 %v90
    %v466 = vpop.f32.mrf.mxu0
    %v467 = vadd.f32 %v233, %v466
    %468 = vmatmul.f32.gmra.mxu0 %v91
    %v469 = vpop.f32.mrf.mxu0
    %v470 = vadd.f32 %v233, %v469
    %471 = vmatmul.f32.gmra.mxu0 %v92
    %v472 = vpop.f32.mrf.mxu0
    %v473 = vadd.f32 %v233, %v472
    %474 = vmatmul.f32.gmra.mxu0 %v93
    %v475 = vpop.f32.mrf.mxu0
    %v476 = vadd.f32 %v233, %v475
    %477 = vmatmul.f32.gmra.mxu0 %v94
    %v478 = vpop.f32.mrf.mxu0
    %v479 = vadd.f32 %v233, %v478
    %480 = vmatmul.f32.gmra.mxu0 %v95
    %v481 = vpop.f32.mrf.mxu0
    %v482 = vadd.f32 %v233, %v481
    %483 = vmatmul.f32.gmra.mxu0 %v96
    %v484 = vpop.f32.mrf.mxu0
    %v485 = vadd.f32 %v233, %v484
    %486 = vmatmul.f32.gmra.mxu0 %v97
    %v487 = vpop.f32.mrf.mxu0
    %v488 = vadd.f32 %v233, %v487
    %489 = vdwg.mxu0
    %490 = vmatpush.msra.mxu0 %v224
    %491 = vmatpush.msra.mxu0 %v216
    %492 = vmatpush.msra.mxu0 %v208
    %493 = vmatpush.msra.mxu0 %v200
    %494 = vmatpush.msra.mxu0 %v192
    %495 = vmatpush.msra.mxu0 %v184
    %496 = vmatpush.msra.mxu0 %v176
    %497 = vmatpush.msra.mxu0 %v168
    %498 = vmatpush.msra.mxu0 %v160
    %499 = vmatpush.msra.mxu0 %v152
    %500 = vmatpush.msra.mxu0 %v144
    %501 = vmatpush.msra.mxu0 %v136
    %502 = vmatpush.msra.mxu0 %v128
    %503 = vmatpush.msra.mxu0 %v120
    %504 = vmatpush.msra.mxu0 %v112
    %505 = vmatpush.msra.mxu0 %v104
    %506 = vmatmul.f32.gmra.mxu0 %v90
    %v507 = vpop.f32.mrf.mxu0
    %v508 = vadd.f32 %v234, %v507
    %509 = vmatmul.f32.gmra.mxu0 %v91
    %v510 = vpop.f32.mrf.mxu0
    %v511 = vadd.f32 %v234, %v510
    %512 = vmatmul.f32.gmra.mxu0 %v92
    %v513 = vpop.f32.mrf.mxu0
    %v514 = vadd.f32 %v234, %v513
    %515 = vmatmul.f32.gmra.mxu0 %v93
    %v516 = vpop.f32.mrf.mxu0
    %v517 = vadd.f32 %v234, %v516
    %518 = vmatmul.f32.gmra.mxu0 %v94
    %v519 = vpop.f32.mrf.mxu0
    %v520 = vadd.f32 %v234, %v519
    %521 = vmatmul.f32.gmra.mxu0 %v95
    %v522 = vpop.f32.mrf.mxu0
    %v523 = vadd.f32 %v234, %v522
    %524 = vmatmul.f32.gmra.mxu0 %v96
    %v525 = vpop.f32.mrf.mxu0
    %v526 = vadd.f32 %v234, %v525
    %527 = vmatmul.f32.gmra.mxu0 %v97
    %v528 = vpop.f32.mrf.mxu0
    %v529 = vadd.f32 %v234, %v528
    %530 = vdwg.mxu0
    %531 = vmatpush.msra.mxu0 %v225
    %532 = vmatpush.msra.mxu0 %v217
    %533 = vmatpush.msra.mxu0 %v209
    %534 = vmatpush.msra.mxu0 %v201
    %535 = vmatpush.msra.mxu0 %v193
    %536 = vmatpush.msra.mxu0 %v185
    %537 = vmatpush.msra.mxu0 %v177
    %538 = vmatpush.msra.mxu0 %v169
    %539 = vmatpush.msra.mxu0 %v161
    %540 = vmatpush.msra.mxu0 %v153
    %541 = vmatpush.msra.mxu0 %v145
    %542 = vmatpush.msra.mxu0 %v137
    %543 = vmatpush.msra.mxu0 %v129
    %544 = vmatpush.msra.mxu0 %v121
    %545 = vmatpush.msra.mxu0 %v113
    %546 = vmatpush.msra.mxu0 %v105
    %547 = vmatmul.f32.gmra.mxu0 %v90
    %v548 = vpop.f32.mrf.mxu0
    %v549 = vadd.f32 %v235, %v548
    %550 = vmatmul.f32.gmra.mxu0 %v91
    %v551 = vpop.f32.mrf.mxu0
    %v552 = vadd.f32 %v235, %v551
    %553 = vmatmul.f32.gmra.mxu0 %v92
    %v554 = vpop.f32.mrf.mxu0
    %v555 = vadd.f32 %v235, %v554
    %556 = vmatmul.f32.gmra.mxu0 %v93
    %v557 = vpop.f32.mrf.mxu0
    %v558 = vadd.f32 %v235, %v557
    %559 = vmatmul.f32.gmra.mxu0 %v94
    %v560 = vpop.f32.mrf.mxu0
    %v561 = vadd.f32 %v235, %v560
    %562 = vmatmul.f32.gmra.mxu0 %v95
    %v563 = vpop.f32.mrf.mxu0
    %v564 = vadd.f32 %v235, %v563
    %565 = vmatmul.f32.gmra.mxu0 %v96
    %v566 = vpop.f32.mrf.mxu0
    %v567 = vadd.f32 %v235, %v566
    %568 = vmatmul.f32.gmra.mxu0 %v97
    %v569 = vpop.f32.mrf.mxu0
    %v570 = vadd.f32 %v235, %v569
    %571 = vdwg.mxu0
    %572 = vst [vmem:[#allocation2] sm:$0xff] %v262
    %573 = vst [vmem:[#allocation2 + $0x8] sm:$0xff] %v303
    %574 = vst [vmem:[#allocation2 + $0x10] sm:$0xff] %v344
    %575 = vst [vmem:[#allocation2 + $0x18] sm:$0xff] %v385
    %576 = vst [vmem:[#allocation2 + $0x20] sm:$0xff] %v426
    %577 = vst [vmem:[#allocation2 + $0x28] sm:$0xff] %v467
    %578 = vst [vmem:[#allocation2 + $0x30] sm:$0xff] %v508
    %579 = vst [vmem:[#allocation2 + $0x38] sm:$0xff] %v549
    %580 = vst [vmem:[#allocation2 + $0x40] sm:$0xff] %v265
    %581 = vst [vmem:[#allocation2 + $0x48] sm:$0xff] %v306
    %582 = vst [vmem:[#allocation2 + $0x50] sm:$0xff] %v347
    %583 = vst [vmem:[#allocation2 + $0x58] sm:$0xff] %v388
    %584 = vst [vmem:[#allocation2 + $0x60] sm:$0xff] %v429
    %585 = vst [vmem:[#allocation2 + $0x68] sm:$0xff] %v470
    %586 = vst [vmem:[#allocation2 + $0x70] sm:$0xff] %v511
    %587 = vst [vmem:[#allocation2 + $0x78] sm:$0xff] %v552
    %588 = vst [vmem:[#allocation2 + $0x80] sm:$0xff] %v268
    %589 = vst [vmem:[#allocation2 + $0x88] sm:$0xff] %v309
    %590 = vst [vmem:[#allocation2 + $0x90] sm:$0xff] %v350
    %591 = vst [vmem:[#allocation2 + $0x98] sm:$0xff] %v391
    %592 = vst [vmem:[#allocation2 + $0xa0] sm:$0xff] %v432
    %593 = vst [vmem:[#allocation2 + $0xa8] sm:$0xff] %v473
    %594 = vst [vmem:[#allocation2 + $0xb0] sm:$0xff] %v514
    %595 = vst [vmem:[#allocation2 + $0xb8] sm:$0xff] %v555
    %596 = vst [vmem:[#allocation2 + $0xc0] sm:$0xff] %v271
    %597 = vst [vmem:[#allocation2 + $0xc8] sm:$0xff] %v312
    %598 = vst [vmem:[#allocation2 + $0xd0] sm:$0xff] %v353
    %599 = vst [vmem:[#allocation2 + $0xd8] sm:$0xff] %v394
    %600 = vst [vmem:[#allocation2 + $0xe0] sm:$0xff] %v435
    %601 = vst [vmem:[#allocation2 + $0xe8] sm:$0xff] %v476
    %602 = vst [vmem:[#allocation2 + $0xf0] sm:$0xff] %v517
    %603 = vst [vmem:[#allocation2 + $0xf8] sm:$0xff] %v558
    %604 = vst [vmem:[#allocation2 + $0x100] sm:$0xff] %v274
    %605 = vst [vmem:[#allocation2 + $0x108] sm:$0xff] %v315
    %606 = vst [vmem:[#allocation2 + $0x110] sm:$0xff] %v356
    %607 = vst [vmem:[#allocation2 + $0x118] sm:$0xff] %v397
    %608 = vst [vmem:[#allocation2 + $0x120] sm:$0xff] %v438
    %609 = vst [vmem:[#allocation2 + $0x128] sm:$0xff] %v479
    %610 = vst [vmem:[#allocation2 + $0x130] sm:$0xff] %v520
    %611 = vst [vmem:[#allocation2 + $0x138] sm:$0xff] %v561
    %612 = vst [vmem:[#allocation2 + $0x140] sm:$0xff] %v277
    %613 = vst [vmem:[#allocation2 + $0x148] sm:$0xff] %v318
    %614 = vst [vmem:[#allocation2 + $0x150] sm:$0xff] %v359
    %615 = vst [vmem:[#allocation2 + $0x158] sm:$0xff] %v400
    %616 = vst [vmem:[#allocation2 + $0x160] sm:$0xff] %v441
    %617 = vst [vmem:[#allocation2 + $0x168] sm:$0xff] %v482
    %618 = vst [vmem:[#allocation2 + $0x170] sm:$0xff] %v523
    %619 = vst [vmem:[#allocation2 + $0x178] sm:$0xff] %v564
    %620 = vst [vmem:[#allocation2 + $0x180] sm:$0xff] %v280
    %621 = vst [vmem:[#allocation2 + $0x188] sm:$0xff] %v321
    %622 = vst [vmem:[#allocation2 + $0x190] sm:$0xff] %v362
    %623 = vst [vmem:[#allocation2 + $0x198] sm:$0xff] %v403
    %624 = vst [vmem:[#allocation2 + $0x1a0] sm:$0xff] %v444
    %625 = vst [vmem:[#allocation2 + $0x1a8] sm:$0xff] %v485
    %626 = vst [vmem:[#allocation2 + $0x1b0] sm:$0xff] %v526
    %627 = vst [vmem:[#allocation2 + $0x1b8] sm:$0xff] %v567
    %628 = vst [vmem:[#allocation2 + $0x1c0] sm:$0xff] %v283
    %629 = vst [vmem:[#allocation2 + $0x1c8] sm:$0xff] %v324
    %630 = vst [vmem:[#allocation2 + $0x1d0] sm:$0xff] %v365
    %631 = vst [vmem:[#allocation2 + $0x1d8] sm:$0xff] %v406
    %632 = vst [vmem:[#allocation2 + $0x1e0] sm:$0xff] %v447
    %633 = vst [vmem:[#allocation2 + $0x1e8] sm:$0xff] %v488
    %634 = vst [vmem:[#allocation2 + $0x1f0] sm:$0xff] %v529
    %635 = vst [vmem:[#allocation2 + $0x1f8] sm:$0xff] %v570
    %v636 = vld [vmem:[#allocation10] sm:$0xff]
    %v637 = vld [vmem:[#allocation10 + $0x8] sm:$0xff]
    %v638 = vld [vmem:[#allocation10 + $0x10] sm:$0xff]
    %v639 = vld [vmem:[#allocation10 + $0x18] sm:$0xff]
    %v640 = vld [vmem:[#allocation10 + $0x20] sm:$0xff]
    %v641 = vld [vmem:[#allocation10 + $0x28] sm:$0xff]
    %v642 = vld [vmem:[#allocation10 + $0x30] sm:$0xff]
    %v643 = vld [vmem:[#allocation10 + $0x38] sm:$0xff]
    %v644 = vld [vmem:[#allocation10 + $0x40] sm:$0xff]
    %v645 = vld [vmem:[#allocation10 + $0x48] sm:$0xff]
    %v646 = vld [vmem:[#allocation10 + $0x50] sm:$0xff]
    %v647 = vld [vmem:[#allocation10 + $0x58] sm:$0xff]
    %v648 = vld [vmem:[#allocation10 + $0x60] sm:$0xff]
    %v649 = vld [vmem:[#allocation10 + $0x68] sm:$0xff]
    %v650 = vld [vmem:[#allocation10 + $0x70] sm:$0xff]
    %v651 = vld [vmem:[#allocation10 + $0x78] sm:$0xff]
    %v652 = vld [vmem:[#allocation10 + $0x80] sm:$0xff]
    %v653 = vld [vmem:[#allocation10 + $0x88] sm:$0xff]
    %v654 = vld [vmem:[#allocation10 + $0x90] sm:$0xff]
    %v655 = vld [vmem:[#allocation10 + $0x98] sm:$0xff]
    %v656 = vld [vmem:[#allocation10 + $0xa0] sm:$0xff]
    %v657 = vld [vmem:[#allocation10 + $0xa8] sm:$0xff]
    %v658 = vld [vmem:[#allocation10 + $0xb0] sm:$0xff]
    %v659 = vld [vmem:[#allocation10 + $0xb8] sm:$0xff]
    %v660 = vld [vmem:[#allocation10 + $0xc0] sm:$0xff]
    %v661 = vld [vmem:[#allocation10 + $0xc8] sm:$0xff]
    %v662 = vld [vmem:[#allocation10 + $0xd0] sm:$0xff]
    %v663 = vld [vmem:[#allocation10 + $0xd8] sm:$0xff]
    %v664 = vld [vmem:[#allocation10 + $0xe0] sm:$0xff]
    %v665 = vld [vmem:[#allocation10 + $0xe8] sm:$0xff]
    %v666 = vld [vmem:[#allocation10 + $0xf0] sm:$0xff]
    %v667 = vld [vmem:[#allocation10 + $0xf8] sm:$0xff]
    %v668 = vld [vmem:[#allocation10 + $0x100] sm:$0xff]
    %v669 = vld [vmem:[#allocation10 + $0x108] sm:$0xff]
    %v670 = vld [vmem:[#allocation10 + $0x110] sm:$0xff]
    %v671 = vld [vmem:[#allocation10 + $0x118] sm:$0xff]
    %v672 = vld [vmem:[#allocation10 + $0x120] sm:$0xff]
    %v673 = vld [vmem:[#allocation10 + $0x128] sm:$0xff]
    %v674 = vld [vmem:[#allocation10 + $0x130] sm:$0xff]
    %v675 = vld [vmem:[#allocation10 + $0x138] sm:$0xff]
    %v676 = vld [vmem:[#allocation10 + $0x140] sm:$0xff]
    %v677 = vld [vmem:[#allocation10 + $0x148] sm:$0xff]
    %v678 = vld [vmem:[#allocation10 + $0x150] sm:$0xff]
    %v679 = vld [vmem:[#allocation10 + $0x158] sm:$0xff]
    %v680 = vld [vmem:[#allocation10 + $0x160] sm:$0xff]
    %v681 = vld [vmem:[#allocation10 + $0x168] sm:$0xff]
    %v682 = vld [vmem:[#allocation10 + $0x170] sm:$0xff]
    %v683 = vld [vmem:[#allocation10 + $0x178] sm:$0xff]
    %v684 = vld [vmem:[#allocation10 + $0x180] sm:$0xff]
    %v685 = vld [vmem:[#allocation10 + $0x188] sm:$0xff]
    %v686 = vld [vmem:[#allocation10 + $0x190] sm:$0xff]
    %v687 = vld [vmem:[#allocation10 + $0x198] sm:$0xff]
    %v688 = vld [vmem:[#allocation10 + $0x1a0] sm:$0xff]
    %v689 = vld [vmem:[#allocation10 + $0x1a8] sm:$0xff]
    %v690 = vld [vmem:[#allocation10 + $0x1b0] sm:$0xff]
    %v691 = vld [vmem:[#allocation10 + $0x1b8] sm:$0xff]
    %v692 = vld [vmem:[#allocation10 + $0x1c0] sm:$0xff]
    %v693 = vld [vmem:[#allocation10 + $0x1c8] sm:$0xff]
    %v694 = vld [vmem:[#allocation10 + $0x1d0] sm:$0xff]
    %v695 = vld [vmem:[#allocation10 + $0x1d8] sm:$0xff]
    %v696 = vld [vmem:[#allocation10 + $0x1e0] sm:$0xff]
    %v697 = vld [vmem:[#allocation10 + $0x1e8] sm:$0xff]
    %v698 = vld [vmem:[#allocation10 + $0x1f0] sm:$0xff]
    %v699 = vld [vmem:[#allocation10 + $0x1f8] sm:$0xff]
    %v700 = vld [vmem:[#allocation11] sm:$0xff]
    %v701 = vld [vmem:[#allocation11 + $0x8] sm:$0xff]
    %v702 = vld [vmem:[#allocation11 + $0x10] sm:$0xff]
    %v703 = vld [vmem:[#allocation11 + $0x18] sm:$0xff]
    %v704 = vld [vmem:[#allocation11 + $0x20] sm:$0xff]
    %v705 = vld [vmem:[#allocation11 + $0x28] sm:$0xff]
    %v706 = vld [vmem:[#allocation11 + $0x30] sm:$0xff]
    %v707 = vld [vmem:[#allocation11 + $0x38] sm:$0xff]
    %v708 = vld [vmem:[#allocation11 + $0x40] sm:$0xff]
    %v709 = vld [vmem:[#allocation11 + $0x48] sm:$0xff]
    %v710 = vld [vmem:[#allocation11 + $0x50] sm:$0xff]
    %v711 = vld [vmem:[#allocation11 + $0x58] sm:$0xff]
    %v712 = vld [vmem:[#allocation11 + $0x60] sm:$0xff]
    %v713 = vld [vmem:[#allocation11 + $0x68] sm:$0xff]
    %v714 = vld [vmem:[#allocation11 + $0x70] sm:$0xff]
    %v715 = vld [vmem:[#allocation11 + $0x78] sm:$0xff]
    %v716 = vld [vmem:[#allocation11 + $0x80] sm:$0xff]
    %v717 = vld [vmem:[#allocation11 + $0x88] sm:$0xff]
    %v718 = vld [vmem:[#allocation11 + $0x90] sm:$0xff]
    %v719 = vld [vmem:[#allocation11 + $0x98] sm:$0xff]
    %v720 = vld [vmem:[#allocation11 + $0xa0] sm:$0xff]
    %v721 = vld [vmem:[#allocation11 + $0xa8] sm:$0xff]
    %v722 = vld [vmem:[#allocation11 + $0xb0] sm:$0xff]
    %v723 = vld [vmem:[#allocation11 + $0xb8] sm:$0xff]
    %v724 = vld [vmem:[#allocation11 + $0xc0] sm:$0xff]
    %v725 = vld [vmem:[#allocation11 + $0xc8] sm:$0xff]
    %v726 = vld [vmem:[#allocation11 + $0xd0] sm:$0xff]
    %v727 = vld [vmem:[#allocation11 + $0xd8] sm:$0xff]
    %v728 = vld [vmem:[#allocation11 + $0xe0] sm:$0xff]
    %v729 = vld [vmem:[#allocation11 + $0xe8] sm:$0xff]
    %v730 = vld [vmem:[#allocation11 + $0xf0] sm:$0xff]
    %v731 = vld [vmem:[#allocation11 + $0xf8] sm:$0xff]
    %v732 = vld [vmem:[#allocation11 + $0x100] sm:$0xff]
    %v733 = vld [vmem:[#allocation11 + $0x108] sm:$0xff]
    %v734 = vld [vmem:[#allocation11 + $0x110] sm:$0xff]
    %v735 = vld [vmem:[#allocation11 + $0x118] sm:$0xff]
    %v736 = vld [vmem:[#allocation11 + $0x120] sm:$0xff]
    %v737 = vld [vmem:[#allocation11 + $0x128] sm:$0xff]
    %v738 = vld [vmem:[#allocation11 + $0x130] sm:$0xff]
    %v739 = vld [vmem:[#allocation11 + $0x138] sm:$0xff]
    %v740 = vld [vmem:[#allocation11 + $0x140] sm:$0xff]
    %v741 = vld [vmem:[#allocation11 + $0x148] sm:$0xff]
    %v742 = vld [vmem:[#allocation11 + $0x150] sm:$0xff]
    %v743 = vld [vmem:[#allocation11 + $0x158] sm:$0xff]
    %v744 = vld [vmem:[#allocation11 + $0x160] sm:$0xff]
    %v745 = vld [vmem:[#allocation11 + $0x168] sm:$0xff]
    %v746 = vld [vmem:[#allocation11 + $0x170] sm:$0xff]
    %v747 = vld [vmem:[#allocation11 + $0x178] sm:$0xff]
    %v748 = vld [vmem:[#allocation11 + $0x180] sm:$0xff]
    %v749 = vld [vmem:[#allocation11 + $0x188] sm:$0xff]
    %v750 = vld [vmem:[#allocation11 + $0x190] sm:$0xff]
    %v751 = vld [vmem:[#allocation11 + $0x198] sm:$0xff]
    %v752 = vld [vmem:[#allocation11 + $0x1a0] sm:$0xff]
    %v753 = vld [vmem:[#allocation11 + $0x1a8] sm:$0xff]
    %v754 = vld [vmem:[#allocation11 + $0x1b0] sm:$0xff]
    %v755 = vld [vmem:[#allocation11 + $0x1b8] sm:$0xff]
    %v756 = vld [vmem:[#allocation11 + $0x1c0] sm:$0xff]
    %v757 = vld [vmem:[#allocation11 + $0x1c8] sm:$0xff]
    %v758 = vld [vmem:[#allocation11 + $0x1d0] sm:$0xff]
    %v759 = vld [vmem:[#allocation11 + $0x1d8] sm:$0xff]
    %v760 = vld [vmem:[#allocation11 + $0x1e0] sm:$0xff]
    %v761 = vld [vmem:[#allocation11 + $0x1e8] sm:$0xff]
    %v762 = vld [vmem:[#allocation11 + $0x1f0] sm:$0xff]
    %v763 = vld [vmem:[#allocation11 + $0x1f8] sm:$0xff]
    %v764 = vld [vmem:[%s5] sm:$0xff]
    %v765 = vld [vmem:[#allocation2] sm:$0xff]
    %v766 = vld [vmem:[#allocation2 + $0x8] sm:$0xff]
    %v767 = vld [vmem:[#allocation2 + $0x10] sm:$0xff]
    %v768 = vld [vmem:[#allocation2 + $0x18] sm:$0xff]
    %769 = vmatpush.msra.mxu0 %v696
    %770 = vmatpush.msra.mxu0 %v692
    %771 = vmatpush.msra.mxu0 %v688
    %772 = vmatpush.msra.mxu0 %v684
    %773 = vmatpush.msra.mxu0 %v680
    %774 = vmatpush.msra.mxu0 %v676
    %775 = vmatpush.msra.mxu0 %v672
    %776 = vmatpush.msra.mxu0 %v668
    %777 = vmatpush.msra.mxu0 %v664
    %778 = vmatpush.msra.mxu0 %v660
    %779 = vmatpush.msra.mxu0 %v656
    %780 = vmatpush.msra.mxu0 %v652
    %781 = vmatpush.msra.mxu0 %v648
    %782 = vmatpush.msra.mxu0 %v644
    %783 = vmatpush.msra.mxu0 %v640
    %784 = vmatpush.msra.mxu0 %v636
    %785 = vmatmul.f32.gmra.mxu0 0.0
    %v786 = vpop.f32.mrf.mxu0
    %v787 = vadd.f32 0.0, %v786
    %788 = vdwg.mxu0
    %789 = vmatpush.msra.mxu0 %v697
    %790 = vmatpush.msra.mxu0 %v693
    %791 = vmatpush.msra.mxu0 %v689
    %792 = vmatpush.msra.mxu0 %v685
    %793 = vmatpush.msra.mxu0 %v681
    %794 = vmatpush.msra.mxu0 %v677
    %795 = vmatpush.msra.mxu0 %v673
    %796 = vmatpush.msra.mxu0 %v669
    %797 = vmatpush.msra.mxu0 %v665
    %798 = vmatpush.msra.mxu0 %v661
    %799 = vmatpush.msra.mxu0 %v657
    %800 = vmatpush.msra.mxu0 %v653
    %801 = vmatpush.msra.mxu0 %v649
    %802 = vmatpush.msra.mxu0 %v645
    %803 = vmatpush.msra.mxu0 %v641
    %804 = vmatpush.msra.mxu0 %v637
    %805 = vmatmul.f32.gmra.mxu0 0.0
    %v806 = vpop.f32.mrf.mxu0
    %v807 = vadd.f32 0.0, %v806
    %808 = vdwg.mxu0
    %809 = vmatpush.msra.mxu0 %v698
    %810 = vmatpush.msra.mxu0 %v694
    %811 = vmatpush.msra.mxu0 %v690
    %812 = vmatpush.msra.mxu0 %v686
    %813 = vmatpush.msra.mxu0 %v682
    %814 = vmatpush.msra.mxu0 %v678
    %815 = vmatpush.msra.mxu0 %v674
    %816 = vmatpush.msra.mxu0 %v670
    %817 = vmatpush.msra.mxu0 %v666
    %818 = vmatpush.msra.mxu0 %v662
    %819 = vmatpush.msra.mxu0 %v658
    %820 = vmatpush.msra.mxu0 %v654
    %821 = vmatpush.msra.mxu0 %v650
    %822 = vmatpush.msra.mxu0 %v646
    %823 = vmatpush.msra.mxu0 %v642
    %824 = vmatpush.msra.mxu0 %v638
    %825 = vmatmul.f32.gmra.mxu0 0.0
    %v826 = vpop.f32.mrf.mxu0
    %v827 = vadd.f32 0.0, %v826
    %828 = vdwg.mxu0
    %829 = vmatpush.msra.mxu0 %v699
    %830 = vmatpush.msra.mxu0 %v695
    %831 = vmatpush.msra.mxu0 %v691
    %832 = vmatpush.msra.mxu0 %v687
    %833 = vmatpush.msra.mxu0 %v683
    %834 = vmatpush.msra.mxu0 %v679
    %835 = vmatpush.msra.mxu0 %v675
    %836 = vmatpush.msra.mxu0 %v671
    %837 = vmatpush.msra.mxu0 %v667
    %838 = vmatpush.msra.mxu0 %v663
    %839 = vmatpush.msra.mxu0 %v659
    %840 = vmatpush.msra.mxu0 %v655
    %841 = vmatpush.msra.mxu0 %v651
    %842 = vmatpush.msra.mxu0 %v647
    %843 = vmatpush.msra.mxu0 %v643
    %844 = vmatpush.msra.mxu0 %v639
    %845 = vmatmul.f32.gmra.mxu0 0.0
    %v846 = vpop.f32.mrf.mxu0
    %v847 = vadd.f32 0.0, %v846
    %848 = vdwg.mxu0
    %v849 = vadd.f32 %v765, %v787
    %v850 = vadd.f32 %v766, %v807
    %v851 = vadd.f32 %v767, %v827
    %v852 = vadd.f32 %v768, %v847
    %s853 = scalar_lea.vmem [#allocation2], 448
    %v854 = vld [vmem:[%s853 + $0x20] sm:$0xff]
    %v855 = vld [vmem:[%s853 + $0x28] sm:$0xff]
    %v856 = vld [vmem:[%s853 + $0x30] sm:$0xff]
    %v857 = vld [vmem:[%s853 + $0x38] sm:$0xff]
    %858 = vmatpush.msra.mxu0 %v760
    %859 = vmatpush.msra.mxu0 %v756
    %860 = vmatpush.msra.mxu0 %v752
    %861 = vmatpush.msra.mxu0 %v748
    %862 = vmatpush.msra.mxu0 %v744
    %863 = vmatpush.msra.mxu0 %v740
    %864 = vmatpush.msra.mxu0 %v736
    %865 = vmatpush.msra.mxu0 %v732
    %866 = vmatpush.msra.mxu0 %v728
    %867 = vmatpush.msra.mxu0 %v724
    %868 = vmatpush.msra.mxu0 %v720
    %869 = vmatpush.msra.mxu0 %v716
    %870 = vmatpush.msra.mxu0 %v712
    %871 = vmatpush.msra.mxu0 %v708
    %872 = vmatpush.msra.mxu0 %v704
    %873 = vmatpush.msra.mxu0 %v700
    %874 = vmatmul.f32.gmra.mxu0 0.0
    %v875 = vpop.f32.mrf.mxu0
    %v876 = vadd.f32 0.0, %v875
    %877 = vdwg.mxu0
    %878 = vmatpush.msra.mxu0 %v761
    %879 = vmatpush.msra.mxu0 %v757
    %880 = vmatpush.msra.mxu0 %v753
    %881 = vmatpush.msra.mxu0 %v749
    %882 = vmatpush.msra.mxu0 %v745
    %883 = vmatpush.msra.mxu0 %v741
    %884 = vmatpush.msra.mxu0 %v737
    %885 = vmatpush.msra.mxu0 %v733
    %886 = vmatpush.msra.mxu0 %v729
    %887 = vmatpush.msra.mxu0 %v725
    %888 = vmatpush.msra.mxu0 %v721
    %889 = vmatpush.msra.mxu0 %v717
    %890 = vmatpush.msra.mxu0 %v713
    %891 = vmatpush.msra.mxu0 %v709
    %892 = vmatpush.msra.mxu0 %v705
    %893 = vmatpush.msra.mxu0 %v701
    %894 = vmatmul.f32.gmra.mxu0 0.0
    %v895 = vpop.f32.mrf.mxu0
    %v896 = vadd.f32 0.0, %v895
    %897 = vdwg.mxu0
    %898 = vmatpush.msra.mxu0 %v762
    %899 = vmatpush.msra.mxu0 %v758
    %900 = vmatpush.msra.mxu0 %v754
    %901 = vmatpush.msra.mxu0 %v750
    %902 = vmatpush.msra.mxu0 %v746
    %903 = vmatpush.msra.mxu0 %v742
    %904 = vmatpush.msra.mxu0 %v738
    %905 = vmatpush.msra.mxu0 %v734
    %906 = vmatpush.msra.mxu0 %v730
    %907 = vmatpush.msra.mxu0 %v726
    %908 = vmatpush.msra.mxu0 %v722
    %909 = vmatpush.msra.mxu0 %v718
    %910 = vmatpush.msra.mxu0 %v714
    %911 = vmatpush.msra.mxu0 %v710
    %912 = vmatpush.msra.mxu0 %v706
    %913 = vmatpush.msra.mxu0 %v702
    %914 = vmatmul.f32.gmra.mxu0 0.0
    %v915 = vpop.f32.mrf.mxu0
    %v916 = vadd.f32 0.0, %v915
    %917 = vdwg.mxu0
    %918 = vmatpush.msra.mxu0 %v763
    %919 = vmatpush.msra.mxu0 %v759
    %920 = vmatpush.msra.mxu0 %v755
    %921 = vmatpush.msra.mxu0 %v751
    %922 = vmatpush.msra.mxu0 %v747
    %923 = vmatpush.msra.mxu0 %v743
    %924 = vmatpush.msra.mxu0 %v739
    %925 = vmatpush.msra.mxu0 %v735
    %926 = vmatpush.msra.mxu0 %v731
    %927 = vmatpush.msra.mxu0 %v727
    %928 = vmatpush.msra.mxu0 %v723
    %929 = vmatpush.msra.mxu0 %v719
    %930 = vmatpush.msra.mxu0 %v715
    %931 = vmatpush.msra.mxu0 %v711
    %932 = vmatpush.msra.mxu0 %v707
    %933 = vmatpush.msra.mxu0 %v703
    %934 = vmatmul.f32.gmra.mxu0 0.0
    %v935 = vpop.f32.mrf.mxu0
    %v936 = vadd.f32 0.0, %v935
    %937 = vdwg.mxu0
    %v938 = vadd.f32 %v854, %v876
    %v939 = vadd.f32 %v855, %v896
    %v940 = vadd.f32 %v856, %v916
    %v941 = vadd.f32 %v857, %v936
    %v942 = vxor.u32 %v849, 2147483648
    %v943 = vmul.f32 %v942, 1.442695
    %v944 = vpow.pop %v943
    %v945 = vadd.f32 %v944, 1.0
    %v946 = vrcp.pop %v945
    %v947 = vmul.f32 %v945, %v946
    %v948 = vsub.f32 1.0, %v947
    %v949 = vmul.f32 %v946, %v948
    %v950 = vadd.f32 %v946, %v949
    %vm951 = vweird.f32 %v945
    %vm952 = vweird.f32 %v946
    %vm953 = vmor %vm951, %vm952
    %v954 = vsel %vm953, %v946, %v950
    %v955 = vand.u32 2147483647, %v945
    %vm956 = vcmp.eq.f32.partialorder %v955, 8.507059e+37
    %v957 = vand.u32 %v945, 2147483648
    %v958 = vor.u32 1.1754944e-38, %v957
    %v959 = vsel %vm956, %v958, %v954
    %v960 = vmul.f32 1.0, %v959
    %v961 = vxor.u32 %v850, 2147483648
    %v962 = vmul.f32 %v961, 1.442695
    %v963 = vpow.pop %v962
    %v964 = vadd.f32 %v963, 1.0
    %v965 = vrcp.pop %v964
    %v966 = vmul.f32 %v964, %v965
    %v967 = vsub.f32 1.0, %v966
    %v968 = vmul.f32 %v965, %v967
    %v969 = vadd.f32 %v965, %v968
    %vm970 = vweird.f32 %v964
    %vm971 = vweird.f32 %v965
    %vm972 = vmor %vm970, %vm971
    %v973 = vsel %vm972, %v965, %v969
    %v974 = vand.u32 2147483647, %v964
    %vm975 = vcmp.eq.f32.partialorder %v974, 8.507059e+37
    %v976 = vand.u32 %v964, 2147483648
    %v977 = vor.u32 1.1754944e-38, %v976
    %v978 = vsel %vm975, %v977, %v973
    %v979 = vmul.f32 1.0, %v978
    %v980 = vtanh.pop %v851
    %v981 = vxor.u32 %v852, 2147483648
    %v982 = vmul.f32 %v981, 1.442695
    %v983 = vpow.pop %v982
    %v984 = vadd.f32 %v983, 1.0
    %v985 = vrcp.pop %v984
    %v986 = vmul.f32 %v984, %v985
    %v987 = vsub.f32 1.0, %v986
    %v988 = vmul.f32 %v985, %v987
    %v989 = vadd.f32 %v985, %v988
    %vm990 = vweird.f32 %v984
    %vm991 = vweird.f32 %v985
    %vm992 = vmor %vm990, %vm991
    %v993 = vsel %vm992, %v985, %v989
    %v994 = vand.u32 2147483647, %v984
    %vm995 = vcmp.eq.f32.partialorder %v994, 8.507059e+37
    %v996 = vand.u32 %v984, 2147483648
    %v997 = vor.u32 1.1754944e-38, %v996
    %v998 = vsel %vm995, %v997, %v993
    %v999 = vmul.f32 1.0, %v998
    %v1000 = vmul.f32 %v979, 0.0
    %v1001 = vmul.f32 %v960, %v980
    %v1002 = vadd.f32 %v1000, %v1001
    %v1003 = vtanh.pop %v1002
    %v1004 = vmul.f32 %v999, %v1003
    %v1005 = vxor.u32 %v938, 2147483648
    %v1006 = vmul.f32 %v1005, 1.442695
    %v1007 = vpow.pop %v1006
    %v1008 = vadd.f32 %v1007, 1.0
    %v1009 = vrcp.pop %v1008
    %v1010 = vmul.f32 %v1008, %v1009
    %v1011 = vsub.f32 1.0, %v1010
    %v1012 = vmul.f32 %v1009, %v1011
    %v1013 = vadd.f32 %v1009, %v1012
    %vm1014 = vweird.f32 %v1008
    %vm1015 = vweird.f32 %v1009
    %vm1016 = vmor %vm1014, %vm1015
    %v1017 = vsel %vm1016, %v1009, %v1013
    %v1018 = vand.u32 2147483647, %v1008
    %vm1019 = vcmp.eq.f32.partialorder %v1018, 8.507059e+37
    %v1020 = vand.u32 %v1008, 2147483648
    %v1021 = vor.u32 1.1754944e-38, %v1020
    %v1022 = vsel %vm1019, %v1021, %v1017
    %v1023 = vmul.f32 1.0, %v1022
    %v1024 = vxor.u32 %v939, 2147483648
    %v1025 = vmul.f32 %v1024, 1.442695
    %v1026 = vpow.pop %v1025
    %v1027 = vadd.f32 %v1026, 1.0
    %v1028 = vrcp.pop %v1027
    %v1029 = vmul.f32 %v1027, %v1028
    %v1030 = vsub.f32 1.0, %v1029
    %v1031 = vmul.f32 %v1028, %v1030
    %v1032 = vadd.f32 %v1028, %v1031
    %vm1033 = vweird.f32 %v1027
    %vm1034 = vweird.f32 %v1028
    %vm1035 = vmor %vm1033, %vm1034
    %v1036 = vsel %vm1035, %v1028, %v1032
    %v1037 = vand.u32 2147483647, %v1027
    %vm1038 = vcmp.eq.f32.partialorder %v1037, 8.507059e+37
    %v1039 = vand.u32 %v1027, 2147483648
    %v1040 = vor.u32 1.1754944e-38, %v1039
    %v1041 = vsel %vm1038, %v1040, %v1036
    %v1042 = vmul.f32 1.0, %v1041
    %v1043 = vtanh.pop %v940
    %v1044 = vxor.u32 %v941, 2147483648
    %v1045 = vmul.f32 %v1044, 1.442695
    %v1046 = vpow.pop %v1045
    %v1047 = vadd.f32 %v1046, 1.0
    %v1048 = vrcp.pop %v1047
    %v1049 = vmul.f32 %v1047, %v1048
    %v1050 = vsub.f32 1.0, %v1049
    %v1051 = vmul.f32 %v1048, %v1050
    %v1052 = vadd.f32 %v1048, %v1051
    %vm1053 = vweird.f32 %v1047
    %vm1054 = vweird.f32 %v1048
    %vm1055 = vmor %vm1053, %vm1054
    %v1056 = vsel %vm1055, %v1048, %v1052
    %v1057 = vand.u32 2147483647, %v1047
    %vm1058 = vcmp.eq.f32.partialorder %v1057, 8.507059e+37
    %v1059 = vand.u32 %v1047, 2147483648
    %v1060 = vor.u32 1.1754944e-38, %v1059
    %v1061 = vsel %vm1058, %v1060, %v1056
    %v1062 = vmul.f32 1.0, %v1061
    %v1063 = vmul.f32 %v1042, 0.0
    %v1064 = vmul.f32 %v1023, %v1043
    %v1065 = vadd.f32 %v1063, %v1064
    %v1066 = vtanh.pop %v1065
    %v1067 = vmul.f32 %v1062, %v1066
    %vm1068 = vcmp.gt.s32.totalorder %v764, 0
    %vm1069 = vcmp.gt.s32.totalorder %v764, 7
    %v1070 = vsel %vm1068, 1, 0
    %1071 = vset.pattern.permute.xlu0 0
    %1072 = vperm.xlu0 %1071, %v1070
    %v1073 = vpop.permute.xlu0 %1072
    %vm1074 = vcmp.eq.s32.totalorder %v1073, 1
    %v1075 = vsel %vm1074, %v1004, 0.0
    %1076 = vst [vmem:[#allocation3] sm:$0xff] %v1075
    %v1077 = vsel %vm1069, 1, 0
    %1078 = vset.pattern.permute.xlu0 0
    %1079 = vperm.xlu0 %1078, %v1077
    %v1080 = vpop.permute.xlu0 %1079
    %vm1081 = vcmp.eq.s32.totalorder %v1080, 1
    %v1082 = vsel %vm1081, %v1067, 0.0
    %s1083 = scalar_lea.vmem [#allocation4], 56
    %1084 = vst [vmem:[%s1083] sm:$0xff] %v1082
    %v1085 = vsel %vm1074, %v1002, 0.0
    %v1086 = vsel %vm1081, %v1065, 0.0
    %s1087 = scalar_lea.vmem [#allocation2], 64
    %v1088 = vld [vmem:[%s1087] sm:$0xff]
    %v1089 = vld [vmem:[%s1087 + $0x8] sm:$0xff]
    %v1090 = vld [vmem:[%s1087 + $0x10] sm:$0xff]
    %v1091 = vld [vmem:[%s1087 + $0x18] sm:$0xff]
    %1092 = vmatpush.msra.mxu0 %v696
    %1093 = vmatpush.msra.mxu0 %v692
    %1094 = vmatpush.msra.mxu0 %v688
    %1095 = vmatpush.msra.mxu0 %v684
    %1096 = vmatpush.msra.mxu0 %v680
    %1097 = vmatpush.msra.mxu0 %v676
    %1098 = vmatpush.msra.mxu0 %v672
    %1099 = vmatpush.msra.mxu0 %v668
    %1100 = vmatpush.msra.mxu0 %v664
    %1101 = vmatpush.msra.mxu0 %v660
    %1102 = vmatpush.msra.mxu0 %v656
    %1103 = vmatpush.msra.mxu0 %v652
    %1104 = vmatpush.msra.mxu0 %v648
    %1105 = vmatpush.msra.mxu0 %v644
    %1106 = vmatpush.msra.mxu0 %v640
    %1107 = vmatpush.msra.mxu0 %v636
    %1108 = vmatmul.f32.gmra.mxu0 %v1075
    %v1109 = vpop.f32.mrf.mxu0
    %v1110 = vadd.f32 0.0, %v1109
    %1111 = vdwg.mxu0
    %1112 = vmatpush.msra.mxu0 %v697
    %1113 = vmatpush.msra.mxu0 %v693
    %1114 = vmatpush.msra.mxu0 %v689
    %1115 = vmatpush.msra.mxu0 %v685
    %1116 = vmatpush.msra.mxu0 %v681
    %1117 = vmatpush.msra.mxu0 %v677
    %1118 = vmatpush.msra.mxu0 %v673
    %1119 = vmatpush.msra.mxu0 %v669
    %1120 = vmatpush.msra.mxu0 %v665
    %1121 = vmatpush.msra.mxu0 %v661
    %1122 = vmatpush.msra.mxu0 %v657
    %1123 = vmatpush.msra.mxu0 %v653
    %1124 = vmatpush.msra.mxu0 %v649
    %1125 = vmatpush.msra.mxu0 %v645
    %1126 = vmatpush.msra.mxu0 %v641
    %1127 = vmatpush.msra.mxu0 %v637
    %1128 = vmatmul.f32.gmra.mxu0 %v1075
    %v1129 = vpop.f32.mrf.mxu0
    %v1130 = vadd.f32 0.0, %v1129
    %1131 = vdwg.mxu0
    %1132 = vmatpush.msra.mxu0 %v698
    %1133 = vmatpush.msra.mxu0 %v694
    %1134 = vmatpush.msra.mxu0 %v690
    %1135 = vmatpush.msra.mxu0 %v686
    %1136 = vmatpush.msra.mxu0 %v682
    %1137 = vmatpush.msra.mxu0 %v678
    %1138 = vmatpush.msra.mxu0 %v674
    %1139 = vmatpush.msra.mxu0 %v670
    %1140 = vmatpush.msra.mxu0 %v666
    %1141 = vmatpush.msra.mxu0 %v662
    %1142 = vmatpush.msra.mxu0 %v658
    %1143 = vmatpush.msra.mxu0 %v654
    %1144 = vmatpush.msra.mxu0 %v650
    %1145 = vmatpush.msra.mxu0 %v646
    %1146 = vmatpush.msra.mxu0 %v642
    %1147 = vmatpush.msra.mxu0 %v638
    %1148 = vmatmul.f32.gmra.mxu0 %v1075
    %v1149 = vpop.f32.mrf.mxu0
    %v1150 = vadd.f32 0.0, %v1149
    %1151 = vdwg.mxu0
    %1152 = vmatpush.msra.mxu0 %v699
    %1153 = vmatpush.msra.mxu0 %v695
    %1154 = vmatpush.msra.mxu0 %v691
    %1155 = vmatpush.msra.mxu0 %v687
    %1156 = vmatpush.msra.mxu0 %v683
    %1157 = vmatpush.msra.mxu0 %v679
    %1158 = vmatpush.msra.mxu0 %v675
    %1159 = vmatpush.msra.mxu0 %v671
    %1160 = vmatpush.msra.mxu0 %v667
    %1161 = vmatpush.msra.mxu0 %v663
    %1162 = vmatpush.msra.mxu0 %v659
    %1163 = vmatpush.msra.mxu0 %v655
    %1164 = vmatpush.msra.mxu0 %v651
    %1165 = vmatpush.msra.mxu0 %v647
    %1166 = vmatpush.msra.mxu0 %v643
    %1167 = vmatpush.msra.mxu0 %v639
    %1168 = vmatmul.f32.gmra.mxu0 %v1075
    %v1169 = vpop.f32.mrf.mxu0
    %v1170 = vadd.f32 0.0, %v1169
    %1171 = vdwg.mxu0
    %v1172 = vadd.f32 %v1088, %v1110
    %v1173 = vadd.f32 %v1089, %v1130
    %v1174 = vadd.f32 %v1090, %v1150
    %v1175 = vadd.f32 %v1091, %v1170
    %s1176 = scalar_lea.vmem [#allocation2], 384
    %v1177 = vld [vmem:[%s1176 + $0x20] sm:$0xff]
    %v1178 = vld [vmem:[%s1176 + $0x28] sm:$0xff]
    %v1179 = vld [vmem:[%s1176 + $0x30] sm:$0xff]
    %v1180 = vld [vmem:[%s1176 + $0x38] sm:$0xff]
    %1181 = vmatpush.msra.mxu0 %v760
    %1182 = vmatpush.msra.mxu0 %v756
    %1183 = vmatpush.msra.mxu0 %v752
    %1184 = vmatpush.msra.mxu0 %v748
    %1185 = vmatpush.msra.mxu0 %v744
    %1186 = vmatpush.msra.mxu0 %v740
    %1187 = vmatpush.msra.mxu0 %v736
    %1188 = vmatpush.msra.mxu0 %v732
    %1189 = vmatpush.msra.mxu0 %v728
    %1190 = vmatpush.msra.mxu0 %v724
    %1191 = vmatpush.msra.mxu0 %v720
    %1192 = vmatpush.msra.mxu0 %v716
    %1193 = vmatpush.msra.mxu0 %v712
    %1194 = vmatpush.msra.mxu0 %v708
    %1195 = vmatpush.msra.mxu0 %v704
    %1196 = vmatpush.msra.mxu0 %v700
    %1197 = vmatmul.f32.gmra.mxu0 %v1082
    %v1198 = vpop.f32.mrf.mxu0
    %v1199 = vadd.f32 0.0, %v1198
    %1200 = vdwg.mxu0
    %1201 = vmatpush.msra.mxu0 %v761
    %1202 = vmatpush.msra.mxu0 %v757
    %1203 = vmatpush.msra.mxu0 %v753
    %1204 = vmatpush.msra.mxu0 %v749
    %1205 = vmatpush.msra.mxu0 %v745
    %1206 = vmatpush.msra.mxu0 %v741
    %1207 = vmatpush.msra.mxu0 %v737
    %1208 = vmatpush.msra.mxu0 %v733
    %1209 = vmatpush.msra.mxu0 %v729
    %1210 = vmatpush.msra.mxu0 %v725
    %1211 = vmatpush.msra.mxu0 %v721
    %1212 = vmatpush.msra.mxu0 %v717
    %1213 = vmatpush.msra.mxu0 %v713
    %1214 = vmatpush.msra.mxu0 %v709
    %1215 = vmatpush.msra.mxu0 %v705
    %1216 = vmatpush.msra.mxu0 %v701
    %1217 = vmatmul.f32.gmra.mxu0 %v1082
    %v1218 = vpop.f32.mrf.mxu0
    %v1219 = vadd.f32 0.0, %v1218
    %1220 = vdwg.mxu0
    %1221 = vmatpush.msra.mxu0 %v762
    %1222 = vmatpush.msra.mxu0 %v758
    %1223 = vmatpush.msra.mxu0 %v754
    %1224 = vmatpush.msra.mxu0 %v750
    %1225 = vmatpush.msra.mxu0 %v746
    %1226 = vmatpush.msra.mxu0 %v742
    %1227 = vmatpush.msra.mxu0 %v738
    %1228 = vmatpush.msra.mxu0 %v734
    %1229 = vmatpush.msra.mxu0 %v730
    %1230 = vmatpush.msra.mxu0 %v726
    %1231 = vmatpush.msra.mxu0 %v722
    %1232 = vmatpush.msra.mxu0 %v718
    %1233 = vmatpush.msra.mxu0 %v714
    %1234 = vmatpush.msra.mxu0 %v710
    %1235 = vmatpush.msra.mxu0 %v706
    %1236 = vmatpush.msra.mxu0 %v702
    %1237 = vmatmul.f32.gmra.mxu0 %v1082
    %v1238 = vpop.f32.mrf.mxu0
    %v1239 = vadd.f32 0.0, %v1238
    %1240 = vdwg.mxu0
    %1241 = vmatpush.msra.mxu0 %v763
    %1242 = vmatpush.msra.mxu0 %v759
    %1243 = vmatpush.msra.mxu0 %v755
    %1244 = vmatpush.msra.mxu0 %v751
    %1245 = vmatpush.msra.mxu0 %v747
    %1246 = vmatpush.msra.mxu0 %v743
    %1247 = vmatpush.msra.mxu0 %v739
    %1248 = vmatpush.msra.mxu0 %v735
    %1249 = vmatpush.msra.mxu0 %v731
    %1250 = vmatpush.msra.mxu0 %v727
    %1251 = vmatpush.msra.mxu0 %v723
    %1252 = vmatpush.msra.mxu0 %v719
    %1253 = vmatpush.msra.mxu0 %v715
    %1254 = vmatpush.msra.mxu0 %v711
    %1255 = vmatpush.msra.mxu0 %v707
    %1256 = vmatpush.msra.mxu0 %v703
    %1257 = vmatmul.f32.gmra.mxu0 %v1082
    %v1258 = vpop.f32.mrf.mxu0
    %v1259 = vadd.f32 0.0, %v1258
    %1260 = vdwg.mxu0
    %v1261 = vadd.f32 %v1177, %v1199
    %v1262 = vadd.f32 %v1178, %v1219
    %v1263 = vadd.f32 %v1179, %v1239
    %v1264 = vadd.f32 %v1180, %v1259
    %v1265 = vxor.u32 %v1172, 2147483648
    %v1266 = vmul.f32 %v1265, 1.442695
    %v1267 = vpow.pop %v1266
    %v1268 = vadd.f32 %v1267, 1.0
    %v1269 = vrcp.pop %v1268
    %v1270 = vmul.f32 %v1268, %v1269
    %v1271 = vsub.f32 1.0, %v1270
    %v1272 = vmul.f32 %v1269, %v1271
    %v1273 = vadd.f32 %v1269, %v1272
    %vm1274 = vweird.f32 %v1268
    %vm1275 = vweird.f32 %v1269
    %vm1276 = vmor %vm1274, %vm1275
    %v1277 = vsel %vm1276, %v1269, %v1273
    %v1278 = vand.u32 2147483647, %v1268
    %vm1279 = vcmp.eq.f32.partialorder %v1278, 8.507059e+37
    %v1280 = vand.u32 %v1268, 2147483648
    %v1281 = vor.u32 1.1754944e-38, %v1280
    %v1282 = vsel %vm1279, %v1281, %v1277
    %v1283 = vmul.f32 1.0, %v1282
    %v1284 = vxor.u32 %v1173, 2147483648
    %v1285 = vmul.f32 %v1284, 1.442695
    %v1286 = vpow.pop %v1285
    %v1287 = vadd.f32 %v1286, 1.0
    %v1288 = vrcp.pop %v1287
    %v1289 = vmul.f32 %v1287, %v1288
    %v1290 = vsub.f32 1.0, %v1289
    %v1291 = vmul.f32 %v1288, %v1290
    %v1292 = vadd.f32 %v1288, %v1291
    %vm1293 = vweird.f32 %v1287
    %vm1294 = vweird.f32 %v1288
    %vm1295 = vmor %vm1293, %vm1294
    %v1296 = vsel %vm1295, %v1288, %v1292
    %v1297 = vand.u32 2147483647, %v1287
    %vm1298 = vcmp.eq.f32.partialorder %v1297, 8.507059e+37
    %v1299 = vand.u32 %v1287, 2147483648
    %v1300 = vor.u32 1.1754944e-38, %v1299
    %v1301 = vsel %vm1298, %v1300, %v1296
    %v1302 = vmul.f32 1.0, %v1301
    %v1303 = vtanh.pop %v1174
    %v1304 = vxor.u32 %v1175, 2147483648
    %v1305 = vmul.f32 %v1304, 1.442695
    %v1306 = vpow.pop %v1305
    %v1307 = vadd.f32 %v1306, 1.0
    %v1308 = vrcp.pop %v1307
    %v1309 = vmul.f32 %v1307, %v1308
    %v1310 = vsub.f32 1.0, %v1309
    %v1311 = vmul.f32 %v1308, %v1310
    %v1312 = vadd.f32 %v1308, %v1311
    %vm1313 = vweird.f32 %v1307
    %vm1314 = vweird.f32 %v1308
    %vm1315 = vmor %vm1313, %vm1314
    %v1316 = vsel %vm1315, %v1308, %v1312
    %v1317 = vand.u32 2147483647, %v1307
    %vm1318 = vcmp.eq.f32.partialorder %v1317, 8.507059e+37
    %v1319 = vand.u32 %v1307, 2147483648
    %v1320 = vor.u32 1.1754944e-38, %v1319
    %v1321 = vsel %vm1318, %v1320, %v1316
    %v1322 = vmul.f32 1.0, %v1321
    %v1323 = vmul.f32 %v1302, %v1085
    %v1324 = vmul.f32 %v1283, %v1303
    %v1325 = vadd.f32 %v1323, %v1324
    %v1326 = vtanh.pop %v1325
    %v1327 = vmul.f32 %v1322, %v1326
    %v1328 = vxor.u32 %v1261, 2147483648
    %v1329 = vmul.f32 %v1328, 1.442695
    %v1330 = vpow.pop %v1329
    %v1331 = vadd.f32 %v1330, 1.0
    %v1332 = vrcp.pop %v1331
    %v1333 = vmul.f32 %v1331, %v1332
    %v1334 = vsub.f32 1.0, %v1333
    %v1335 = vmul.f32 %v1332, %v1334
    %v1336 = vadd.f32 %v1332, %v1335
    %vm1337 = vweird.f32 %v1331
    %vm1338 = vweird.f32 %v1332
    %vm1339 = vmor %vm1337, %vm1338
    %v1340 = vsel %vm1339, %v1332, %v1336
    %v1341 = vand.u32 2147483647, %v1331
    %vm1342 = vcmp.eq.f32.partialorder %v1341, 8.507059e+37
    %v1343 = vand.u32 %v1331, 2147483648
    %v1344 = vor.u32 1.1754944e-38, %v1343
    %v1345 = vsel %vm1342, %v1344, %v1340
    %v1346 = vmul.f32 1.0, %v1345
    %v1347 = vxor.u32 %v1262, 2147483648
    %v1348 = vmul.f32 %v1347, 1.442695
    %v1349 = vpow.pop %v1348
    %v1350 = vadd.f32 %v1349, 1.0
    %v1351 = vrcp.pop %v1350
    %v1352 = vmul.f32 %v1350, %v1351
    %v1353 = vsub.f32 1.0, %v1352
    %v1354 = vmul.f32 %v1351, %v1353
    %v1355 = vadd.f32 %v1351, %v1354
    %vm1356 = vweird.f32 %v1350
    %vm1357 = vweird.f32 %v1351
    %vm1358 = vmor %vm1356, %vm1357
    %v1359 = vsel %vm1358, %v1351, %v1355
    %v1360 = vand.u32 2147483647, %v1350
    %vm1361 = vcmp.eq.f32.partialorder %v1360, 8.507059e+37
    %v1362 = vand.u32 %v1350, 2147483648
    %v1363 = vor.u32 1.1754944e-38, %v1362
    %v1364 = vsel %vm1361, %v1363, %v1359
    %v1365 = vmul.f32 1.0, %v1364
    %v1366 = vtanh.pop %v1263
    %v1367 = vxor.u32 %v1264, 2147483648
    %v1368 = vmul.f32 %v1367, 1.442695
    %v1369 = vpow.pop %v1368
    %v1370 = vadd.f32 %v1369, 1.0
    %v1371 = vrcp.pop %v1370
    %v1372 = vmul.f32 %v1370, %v1371
    %v1373 = vsub.f32 1.0, %v1372
    %v1374 = vmul.f32 %v1371, %v1373
    %v1375 = vadd.f32 %v1371, %v1374
    %vm1376 = vweird.f32 %v1370
    %vm1377 = vweird.f32 %v1371
    %vm1378 = vmor %vm1376, %vm1377
    %v1379 = vsel %vm1378, %v1371, %v1375
    %v1380 = vand.u32 2147483647, %v1370
    %vm1381 = vcmp.eq.f32.partialorder %v1380, 8.507059e+37
    %v1382 = vand.u32 %v1370, 2147483648
    %v1383 = vor.u32 1.1754944e-38, %v1382
    %v1384 = vsel %vm1381, %v1383, %v1379
    %v1385 = vmul.f32 1.0, %v1384
    %v1386 = vmul.f32 %v1365, %v1086
    %v1387 = vmul.f32 %v1346, %v1366
    %v1388 = vadd.f32 %v1386, %v1387
    %v1389 = vtanh.pop %v1388
    %v1390 = vmul.f32 %v1385, %v1389
    %vm1391 = vcmp.gt.s32.totalorder %v764, 1
    %vm1392 = vcmp.gt.s32.totalorder %v764, 6
    %v1393 = vsel %vm1391, 1, 0
    %1394 = vset.pattern.permute.xlu0 0
    %1395 = vperm.xlu0 %1394, %v1393
    %v1396 = vpop.permute.xlu0 %1395
    %vm1397 = vcmp.eq.s32.totalorder %v1396, 1
    %v1398 = vsel %vm1397, %v1327, 0.0
    %s1399 = scalar_lea.vmem [#allocation3], 8
    %1400 = vst [vmem:[%s1399] sm:$0xff] %v1398
    %v1401 = vsel %vm1392, 1, 0
    %1402 = vset.pattern.permute.xlu0 0
    %1403 = vperm.xlu0 %1402, %v1401
    %v1404 = vpop.permute.xlu0 %1403
    %vm1405 = vcmp.eq.s32.totalorder %v1404, 1
    %v1406 = vsel %vm1405, %v1390, 0.0
    %s1407 = scalar_lea.vmem [#allocation4], 48
    %1408 = vst [vmem:[%s1407] sm:$0xff] %v1406
    %v1409 = vsel %vm1397, %v1327, %v1075
    %v1410 = vsel %vm1397, %v1325, %v1085
    %v1411 = vsel %vm1405, %v1390, %v1082
    %v1412 = vsel %vm1405, %v1388, %v1086
    %s1413 = scalar_lea.vmem [#allocation2], 128
    %v1414 = vld [vmem:[%s1413] sm:$0xff]
    %v1415 = vld [vmem:[%s1413 + $0x8] sm:$0xff]
    %v1416 = vld [vmem:[%s1413 + $0x10] sm:$0xff]
    %v1417 = vld [vmem:[%s1413 + $0x18] sm:$0xff]
    %1418 = vmatpush.msra.mxu0 %v696
    %1419 = vmatpush.msra.mxu0 %v692
    %1420 = vmatpush.msra.mxu0 %v688
    %1421 = vmatpush.msra.mxu0 %v684
    %1422 = vmatpush.msra.mxu0 %v680
    %1423 = vmatpush.msra.mxu0 %v676
    %1424 = vmatpush.msra.mxu0 %v672
    %1425 = vmatpush.msra.mxu0 %v668
    %1426 = vmatpush.msra.mxu0 %v664
    %1427 = vmatpush.msra.mxu0 %v660
    %1428 = vmatpush.msra.mxu0 %v656
    %1429 = vmatpush.msra.mxu0 %v652
    %1430 = vmatpush.msra.mxu0 %v648
    %1431 = vmatpush.msra.mxu0 %v644
    %1432 = vmatpush.msra.mxu0 %v640
    %1433 = vmatpush.msra.mxu0 %v636
    %1434 = vmatmul.f32.gmra.mxu0 %v1409
    %v1435 = vpop.f32.mrf.mxu0
    %v1436 = vadd.f32 0.0, %v1435
    %1437 = vdwg.mxu0
    %1438 = vmatpush.msra.mxu0 %v697
    %1439 = vmatpush.msra.mxu0 %v693
    %1440 = vmatpush.msra.mxu0 %v689
    %1441 = vmatpush.msra.mxu0 %v685
    %1442 = vmatpush.msra.mxu0 %v681
    %1443 = vmatpush.msra.mxu0 %v677
    %1444 = vmatpush.msra.mxu0 %v673
    %1445 = vmatpush.msra.mxu0 %v669
    %1446 = vmatpush.msra.mxu0 %v665
    %1447 = vmatpush.msra.mxu0 %v661
    %1448 = vmatpush.msra.mxu0 %v657
    %1449 = vmatpush.msra.mxu0 %v653
    %1450 = vmatpush.msra.mxu0 %v649
    %1451 = vmatpush.msra.mxu0 %v645
    %1452 = vmatpush.msra.mxu0 %v641
    %1453 = vmatpush.msra.mxu0 %v637
    %1454 = vmatmul.f32.gmra.mxu0 %v1409
    %v1455 = vpop.f32.mrf.mxu0
    %v1456 = vadd.f32 0.0, %v1455
    %1457 = vdwg.mxu0
    %1458 = vmatpush.msra.mxu0 %v698
    %1459 = vmatpush.msra.mxu0 %v694
    %1460 = vmatpush.msra.mxu0 %v690
    %1461 = vmatpush.msra.mxu0 %v686
    %1462 = vmatpush.msra.mxu0 %v682
    %1463 = vmatpush.msra.mxu0 %v678
    %1464 = vmatpush.msra.mxu0 %v674
    %1465 = vmatpush.msra.mxu0 %v670
    %1466 = vmatpush.msra.mxu0 %v666
    %1467 = vmatpush.msra.mxu0 %v662
    %1468 = vmatpush.msra.mxu0 %v658
    %1469 = vmatpush.msra.mxu0 %v654
    %1470 = vmatpush.msra.mxu0 %v650
    %1471 = vmatpush.msra.mxu0 %v646
    %1472 = vmatpush.msra.mxu0 %v642
    %1473 = vmatpush.msra.mxu0 %v638
    %1474 = vmatmul.f32.gmra.mxu0 %v1409
    %v1475 = vpop.f32.mrf.mxu0
    %v1476 = vadd.f32 0.0, %v1475
    %1477 = vdwg.mxu0
    %1478 = vmatpush.msra.mxu0 %v699
    %1479 = vmatpush.msra.mxu0 %v695
    %1480 = vmatpush.msra.mxu0 %v691
    %1481 = vmatpush.msra.mxu0 %v687
    %1482 = vmatpush.msra.mxu0 %v683
    %1483 = vmatpush.msra.mxu0 %v679
    %1484 = vmatpush.msra.mxu0 %v675
    %1485 = vmatpush.msra.mxu0 %v671
    %1486 = vmatpush.msra.mxu0 %v667
    %1487 = vmatpush.msra.mxu0 %v663
    %1488 = vmatpush.msra.mxu0 %v659
    %1489 = vmatpush.msra.mxu0 %v655
    %1490 = vmatpush.msra.mxu0 %v651
    %1491 = vmatpush.msra.mxu0 %v647
    %1492 = vmatpush.msra.mxu0 %v643
    %1493 = vmatpush.msra.mxu0 %v639
    %1494 = vmatmul.f32.gmra.mxu0 %v1409
    %v1495 = vpop.f32.mrf.mxu0
    %v1496 = vadd.f32 0.0, %v1495
    %1497 = vdwg.mxu0
    %v1498 = vadd.f32 %v1414, %v1436
    %v1499 = vadd.f32 %v1415, %v1456
    %v1500 = vadd.f32 %v1416, %v1476
    %v1501 = vadd.f32 %v1417, %v1496
    %s1502 = scalar_lea.vmem [#allocation2], 320
    %v1503 = vld [vmem:[%s1502 + $0x20] sm:$0xff]
    %v1504 = vld [vmem:[%s1502 + $0x28] sm:$0xff]
    %v1505 = vld [vmem:[%s1502 + $0x30] sm:$0xff]
    %v1506 = vld [vmem:[%s1502 + $0x38] sm:$0xff]
    %1507 = vmatpush.msra.mxu0 %v760
    %1508 = vmatpush.msra.mxu0 %v756
    %1509 = vmatpush.msra.mxu0 %v752
    %1510 = vmatpush.msra.mxu0 %v748
    %1511 = vmatpush.msra.mxu0 %v744
    %1512 = vmatpush.msra.mxu0 %v740
    %1513 = vmatpush.msra.mxu0 %v736
    %1514 = vmatpush.msra.mxu0 %v732
    %1515 = vmatpush.msra.mxu0 %v728
    %1516 = vmatpush.msra.mxu0 %v724
    %1517 = vmatpush.msra.mxu0 %v720
    %1518 = vmatpush.msra.mxu0 %v716
    %1519 = vmatpush.msra.mxu0 %v712
    %1520 = vmatpush.msra.mxu0 %v708
    %1521 = vmatpush.msra.mxu0 %v704
    %1522 = vmatpush.msra.mxu0 %v700
    %1523 = vmatmul.f32.gmra.mxu0 %v1411
    %v1524 = vpop.f32.mrf.mxu0
    %v1525 = vadd.f32 0.0, %v1524
    %1526 = vdwg.mxu0
    %1527 = vmatpush.msra.mxu0 %v761
    %1528 = vmatpush.msra.mxu0 %v757
    %1529 = vmatpush.msra.mxu0 %v753
    %1530 = vmatpush.msra.mxu0 %v749
    %1531 = vmatpush.msra.mxu0 %v745
    %1532 = vmatpush.msra.mxu0 %v741
    %1533 = vmatpush.msra.mxu0 %v737
    %1534 = vmatpush.msra.mxu0 %v733
    %1535 = vmatpush.msra.mxu0 %v729
    %1536 = vmatpush.msra.mxu0 %v725
    %1537 = vmatpush.msra.mxu0 %v721
    %1538 = vmatpush.msra.mxu0 %v717
    %1539 = vmatpush.msra.mxu0 %v713
    %1540 = vmatpush.msra.mxu0 %v709
    %1541 = vmatpush.msra.mxu0 %v705
    %1542 = vmatpush.msra.mxu0 %v701
    %1543 = vmatmul.f32.gmra.mxu0 %v1411
    %v1544 = vpop.f32.mrf.mxu0
    %v1545 = vadd.f32 0.0, %v1544
    %1546 = vdwg.mxu0
    %1547 = vmatpush.msra.mxu0 %v762
    %1548 = vmatpush.msra.mxu0 %v758
    %1549 = vmatpush.msra.mxu0 %v754
    %1550 = vmatpush.msra.mxu0 %v750
    %1551 = vmatpush.msra.mxu0 %v746
    %1552 = vmatpush.msra.mxu0 %v742
    %1553 = vmatpush.msra.mxu0 %v738
    %1554 = vmatpush.msra.mxu0 %v734
    %1555 = vmatpush.msra.mxu0 %v730
    %1556 = vmatpush.msra.mxu0 %v726
    %1557 = vmatpush.msra.mxu0 %v722
    %1558 = vmatpush.msra.mxu0 %v718
    %1559 = vmatpush.msra.mxu0 %v714
    %1560 = vmatpush.msra.mxu0 %v710
    %1561 = vmatpush.msra.mxu0 %v706
    %1562 = vmatpush.msra.mxu0 %v702
    %1563 = vmatmul.f32.gmra.mxu0 %v1411
    %v1564 = vpop.f32.mrf.mxu0
    %v1565 = vadd.f32 0.0, %v1564
    %1566 = vdwg.mxu0
    %1567 = vmatpush.msra.mxu0 %v763
    %1568 = vmatpush.msra.mxu0 %v759
    %1569 = vmatpush.msra.mxu0 %v755
    %1570 = vmatpush.msra.mxu0 %v751
    %1571 = vmatpush.msra.mxu0 %v747
    %1572 = vmatpush.msra.mxu0 %v743
    %1573 = vmatpush.msra.mxu0 %v739
    %1574 = vmatpush.msra.mxu0 %v735
    %1575 = vmatpush.msra.mxu0 %v731
    %1576 = vmatpush.msra.mxu0 %v727
    %1577 = vmatpush.msra.mxu0 %v723
    %1578 = vmatpush.msra.mxu0 %v719
    %1579 = vmatpush.msra.mxu0 %v715
    %1580 = vmatpush.msra.mxu0 %v711
    %1581 = vmatpush.msra.mxu0 %v707
    %1582 = vmatpush.msra.mxu0 %v703
    %1583 = vmatmul.f32.gmra.mxu0 %v1411
    %v1584 = vpop.f32.mrf.mxu0
    %v1585 = vadd.f32 0.0, %v1584
    %1586 = vdwg.mxu0
    %v1587 = vadd.f32 %v1503, %v1525
    %v1588 = vadd.f32 %v1504, %v1545
    %v1589 = vadd.f32 %v1505, %v1565
    %v1590 = vadd.f32 %v1506, %v1585
    %v1591 = vxor.u32 %v1498, 2147483648
    %v1592 = vmul.f32 %v1591, 1.442695
    %v1593 = vpow.pop %v1592
    %v1594 = vadd.f32 %v1593, 1.0
    %v1595 = vrcp.pop %v1594
    %v1596 = vmul.f32 %v1594, %v1595
    %v1597 = vsub.f32 1.0, %v1596
    %v1598 = vmul.f32 %v1595, %v1597
    %v1599 = vadd.f32 %v1595, %v1598
    %vm1600 = vweird.f32 %v1594
    %vm1601 = vweird.f32 %v1595
    %vm1602 = vmor %vm1600, %vm1601
    %v1603 = vsel %vm1602, %v1595, %v1599
    %v1604 = vand.u32 2147483647, %v1594
    %vm1605 = vcmp.eq.f32.partialorder %v1604, 8.507059e+37
    %v1606 = vand.u32 %v1594, 2147483648
    %v1607 = vor.u32 1.1754944e-38, %v1606
    %v1608 = vsel %vm1605, %v1607, %v1603
    %v1609 = vmul.f32 1.0, %v1608
    %v1610 = vxor.u32 %v1499, 2147483648
    %v1611 = vmul.f32 %v1610, 1.442695
    %v1612 = vpow.pop %v1611
    %v1613 = vadd.f32 %v1612, 1.0
    %v1614 = vrcp.pop %v1613
    %v1615 = vmul.f32 %v1613, %v1614
    %v1616 = vsub.f32 1.0, %v1615
    %v1617 = vmul.f32 %v1614, %v1616
    %v1618 = vadd.f32 %v1614, %v1617
    %vm1619 = vweird.f32 %v1613
    %vm1620 = vweird.f32 %v1614
    %vm1621 = vmor %vm1619, %vm1620
    %v1622 = vsel %vm1621, %v1614, %v1618
    %v1623 = vand.u32 2147483647, %v1613
    %vm1624 = vcmp.eq.f32.partialorder %v1623, 8.507059e+37
    %v1625 = vand.u32 %v1613, 2147483648
    %v1626 = vor.u32 1.1754944e-38, %v1625
    %v1627 = vsel %vm1624, %v1626, %v1622
    %v1628 = vmul.f32 1.0, %v1627
    %v1629 = vtanh.pop %v1500
    %v1630 = vxor.u32 %v1501, 2147483648
    %v1631 = vmul.f32 %v1630, 1.442695
    %v1632 = vpow.pop %v1631
    %v1633 = vadd.f32 %v1632, 1.0
    %v1634 = vrcp.pop %v1633
    %v1635 = vmul.f32 %v1633, %v1634
    %v1636 = vsub.f32 1.0, %v1635
    %v1637 = vmul.f32 %v1634, %v1636
    %v1638 = vadd.f32 %v1634, %v1637
    %vm1639 = vweird.f32 %v1633
    %vm1640 = vweird.f32 %v1634
    %vm1641 = vmor %vm1639, %vm1640
    %v1642 = vsel %vm1641, %v1634, %v1638
    %v1643 = vand.u32 2147483647, %v1633
    %vm1644 = vcmp.eq.f32.partialorder %v1643, 8.507059e+37
    %v1645 = vand.u32 %v1633, 2147483648
    %v1646 = vor.u32 1.1754944e-38, %v1645
    %v1647 = vsel %vm1644, %v1646, %v1642
    %v1648 = vmul.f32 1.0, %v1647
    %v1649 = vmul.f32 %v1628, %v1410
    %v1650 = vmul.f32 %v1609, %v1629
    %v1651 = vadd.f32 %v1649, %v1650
    %v1652 = vtanh.pop %v1651
    %v1653 = vmul.f32 %v1648, %v1652
    %v1654 = vxor.u32 %v1587, 2147483648
    %v1655 = vmul.f32 %v1654, 1.442695
    %v1656 = vpow.pop %v1655
    %v1657 = vadd.f32 %v1656, 1.0
    %v1658 = vrcp.pop %v1657
    %v1659 = vmul.f32 %v1657, %v1658
    %v1660 = vsub.f32 1.0, %v1659
    %v1661 = vmul.f32 %v1658, %v1660
    %v1662 = vadd.f32 %v1658, %v1661
    %vm1663 = vweird.f32 %v1657
    %vm1664 = vweird.f32 %v1658
    %vm1665 = vmor %vm1663, %vm1664
    %v1666 = vsel %vm1665, %v1658, %v1662
    %v1667 = vand.u32 2147483647, %v1657
    %vm1668 = vcmp.eq.f32.partialorder %v1667, 8.507059e+37
    %v1669 = vand.u32 %v1657, 2147483648
    %v1670 = vor.u32 1.1754944e-38, %v1669
    %v1671 = vsel %vm1668, %v1670, %v1666
    %v1672 = vmul.f32 1.0, %v1671
    %v1673 = vxor.u32 %v1588, 2147483648
    %v1674 = vmul.f32 %v1673, 1.442695
    %v1675 = vpow.pop %v1674
    %v1676 = vadd.f32 %v1675, 1.0
    %v1677 = vrcp.pop %v1676
    %v1678 = vmul.f32 %v1676, %v1677
    %v1679 = vsub.f32 1.0, %v1678
    %v1680 = vmul.f32 %v1677, %v1679
    %v1681 = vadd.f32 %v1677, %v1680
    %vm1682 = vweird.f32 %v1676
    %vm1683 = vweird.f32 %v1677
    %vm1684 = vmor %vm1682, %vm1683
    %v1685 = vsel %vm1684, %v1677, %v1681
    %v1686 = vand.u32 2147483647, %v1676
    %vm1687 = vcmp.eq.f32.partialorder %v1686, 8.507059e+37
    %v1688 = vand.u32 %v1676, 2147483648
    %v1689 = vor.u32 1.1754944e-38, %v1688
    %v1690 = vsel %vm1687, %v1689, %v1685
    %v1691 = vmul.f32 1.0, %v1690
    %v1692 = vtanh.pop %v1589
    %v1693 = vxor.u32 %v1590, 2147483648
    %v1694 = vmul.f32 %v1693, 1.442695
    %v1695 = vpow.pop %v1694
    %v1696 = vadd.f32 %v1695, 1.0
    %v1697 = vrcp.pop %v1696
    %v1698 = vmul.f32 %v1696, %v1697
    %v1699 = vsub.f32 1.0, %v1698
    %v1700 = vmul.f32 %v1697, %v1699
    %v1701 = vadd.f32 %v1697, %v1700
    %vm1702 = vweird.f32 %v1696
    %vm1703 = vweird.f32 %v1697
    %vm1704 = vmor %vm1702, %vm1703
    %v1705 = vsel %vm1704, %v1697, %v1701
    %v1706 = vand.u32 2147483647, %v1696
    %vm1707 = vcmp.eq.f32.partialorder %v1706, 8.507059e+37
    %v1708 = vand.u32 %v1696, 2147483648
    %v1709 = vor.u32 1.1754944e-38, %v1708
    %v1710 = vsel %vm1707, %v1709, %v1705
    %v1711 = vmul.f32 1.0, %v1710
    %v1712 = vmul.f32 %v1691, %v1412
    %v1713 = vmul.f32 %v1672, %v1692
    %v1714 = vadd.f32 %v1712, %v1713
    %v1715 = vtanh.pop %v1714
    %v1716 = vmul.f32 %v1711, %v1715
    %vm1717 = vcmp.gt.s32.totalorder %v764, 2
    %vm1718 = vcmp.gt.s32.totalorder %v764, 5
    %v1719 = vsel %vm1717, 1, 0
    %1720 = vset.pattern.permute.xlu0 0
    %1721 = vperm.xlu0 %1720, %v1719
    %v1722 = vpop.permute.xlu0 %1721
    %vm1723 = vcmp.eq.s32.totalorder %v1722, 1
    %v1724 = vsel %vm1723, %v1653, 0.0
    %s1725 = scalar_lea.vmem [#allocation3], 16
    %1726 = vst [vmem:[%s1725] sm:$0xff] %v1724
    %v1727 = vsel %vm1718, 1, 0
    %1728 = vset.pattern.permute.xlu0 0
    %1729 = vperm.xlu0 %1728, %v1727
    %v1730 = vpop.permute.xlu0 %1729
    %vm1731 = vcmp.eq.s32.totalorder %v1730, 1
    %v1732 = vsel %vm1731, %v1716, 0.0
    %s1733 = scalar_lea.vmem [#allocation4], 40
    %1734 = vst [vmem:[%s1733] sm:$0xff] %v1732
    %v1735 = vsel %vm1723, %v1653, %v1409
    %v1736 = vsel %vm1723, %v1651, %v1410
    %v1737 = vsel %vm1731, %v1716, %v1411
    %v1738 = vsel %vm1731, %v1714, %v1412
    %s1739 = scalar_lea.vmem [#allocation2], 192
    %v1740 = vld [vmem:[%s1739] sm:$0xff]
    %v1741 = vld [vmem:[%s1739 + $0x8] sm:$0xff]
    %v1742 = vld [vmem:[%s1739 + $0x10] sm:$0xff]
    %v1743 = vld [vmem:[%s1739 + $0x18] sm:$0xff]
    %1744 = vmatpush.msra.mxu0 %v696
    %1745 = vmatpush.msra.mxu0 %v692
    %1746 = vmatpush.msra.mxu0 %v688
    %1747 = vmatpush.msra.mxu0 %v684
    %1748 = vmatpush.msra.mxu0 %v680
    %1749 = vmatpush.msra.mxu0 %v676
    %1750 = vmatpush.msra.mxu0 %v672
    %1751 = vmatpush.msra.mxu0 %v668
    %1752 = vmatpush.msra.mxu0 %v664
    %1753 = vmatpush.msra.mxu0 %v660
    %1754 = vmatpush.msra.mxu0 %v656
    %1755 = vmatpush.msra.mxu0 %v652
    %1756 = vmatpush.msra.mxu0 %v648
    %1757 = vmatpush.msra.mxu0 %v644
    %1758 = vmatpush.msra.mxu0 %v640
    %1759 = vmatpush.msra.mxu0 %v636
    %1760 = vmatmul.f32.gmra.mxu0 %v1735
    %v1761 = vpop.f32.mrf.mxu0
    %v1762 = vadd.f32 0.0, %v1761
    %1763 = vdwg.mxu0
    %1764 = vmatpush.msra.mxu0 %v697
    %1765 = vmatpush.msra.mxu0 %v693
    %1766 = vmatpush.msra.mxu0 %v689
    %1767 = vmatpush.msra.mxu0 %v685
    %1768 = vmatpush.msra.mxu0 %v681
    %1769 = vmatpush.msra.mxu0 %v677
    %1770 = vmatpush.msra.mxu0 %v673
    %1771 = vmatpush.msra.mxu0 %v669
    %1772 = vmatpush.msra.mxu0 %v665
    %1773 = vmatpush.msra.mxu0 %v661
    %1774 = vmatpush.msra.mxu0 %v657
    %1775 = vmatpush.msra.mxu0 %v653
    %1776 = vmatpush.msra.mxu0 %v649
    %1777 = vmatpush.msra.mxu0 %v645
    %1778 = vmatpush.msra.mxu0 %v641
    %1779 = vmatpush.msra.mxu0 %v637
    %1780 = vmatmul.f32.gmra.mxu0 %v1735
    %v1781 = vpop.f32.mrf.mxu0
    %v1782 = vadd.f32 0.0, %v1781
    %1783 = vdwg.mxu0
    %1784 = vmatpush.msra.mxu0 %v698
    %1785 = vmatpush.msra.mxu0 %v694
    %1786 = vmatpush.msra.mxu0 %v690
    %1787 = vmatpush.msra.mxu0 %v686
    %1788 = vmatpush.msra.mxu0 %v682
    %1789 = vmatpush.msra.mxu0 %v678
    %1790 = vmatpush.msra.mxu0 %v674
    %1791 = vmatpush.msra.mxu0 %v670
    %1792 = vmatpush.msra.mxu0 %v666
    %1793 = vmatpush.msra.mxu0 %v662
    %1794 = vmatpush.msra.mxu0 %v658
    %1795 = vmatpush.msra.mxu0 %v654
    %1796 = vmatpush.msra.mxu0 %v650
    %1797 = vmatpush.msra.mxu0 %v646
    %1798 = vmatpush.msra.mxu0 %v642
    %1799 = vmatpush.msra.mxu0 %v638
    %1800 = vmatmul.f32.gmra.mxu0 %v1735
    %v1801 = vpop.f32.mrf.mxu0
    %v1802 = vadd.f32 0.0, %v1801
    %1803 = vdwg.mxu0
    %1804 = vmatpush.msra.mxu0 %v699
    %1805 = vmatpush.msra.mxu0 %v695
    %1806 = vmatpush.msra.mxu0 %v691
    %1807 = vmatpush.msra.mxu0 %v687
    %1808 = vmatpush.msra.mxu0 %v683
    %1809 = vmatpush.msra.mxu0 %v679
    %1810 = vmatpush.msra.mxu0 %v675
    %1811 = vmatpush.msra.mxu0 %v671
    %1812 = vmatpush.msra.mxu0 %v667
    %1813 = vmatpush.msra.mxu0 %v663
    %1814 = vmatpush.msra.mxu0 %v659
    %1815 = vmatpush.msra.mxu0 %v655
    %1816 = vmatpush.msra.mxu0 %v651
    %1817 = vmatpush.msra.mxu0 %v647
    %1818 = vmatpush.msra.mxu0 %v643
    %1819 = vmatpush.msra.mxu0 %v639
    %1820 = vmatmul.f32.gmra.mxu0 %v1735
    %v1821 = vpop.f32.mrf.mxu0
    %v1822 = vadd.f32 0.0, %v1821
    %1823 = vdwg.mxu0
    %v1824 = vadd.f32 %v1740, %v1762
    %v1825 = vadd.f32 %v1741, %v1782
    %v1826 = vadd.f32 %v1742, %v1802
    %v1827 = vadd.f32 %v1743, %v1822
    %s1828 = scalar_lea.vmem [#allocation2], 256
    %v1829 = vld [vmem:[%s1828 + $0x20] sm:$0xff]
    %v1830 = vld [vmem:[%s1828 + $0x28] sm:$0xff]
    %v1831 = vld [vmem:[%s1828 + $0x30] sm:$0xff]
    %v1832 = vld [vmem:[%s1828 + $0x38] sm:$0xff]
    %1833 = vmatpush.msra.mxu0 %v760
    %1834 = vmatpush.msra.mxu0 %v756
    %1835 = vmatpush.msra.mxu0 %v752
    %1836 = vmatpush.msra.mxu0 %v748
    %1837 = vmatpush.msra.mxu0 %v744
    %1838 = vmatpush.msra.mxu0 %v740
    %1839 = vmatpush.msra.mxu0 %v736
    %1840 = vmatpush.msra.mxu0 %v732
    %1841 = vmatpush.msra.mxu0 %v728
    %1842 = vmatpush.msra.mxu0 %v724
    %1843 = vmatpush.msra.mxu0 %v720
    %1844 = vmatpush.msra.mxu0 %v716
    %1845 = vmatpush.msra.mxu0 %v712
    %1846 = vmatpush.msra.mxu0 %v708
    %1847 = vmatpush.msra.mxu0 %v704
    %1848 = vmatpush.msra.mxu0 %v700
    %1849 = vmatmul.f32.gmra.mxu0 %v1737
    %v1850 = vpop.f32.mrf.mxu0
    %v1851 = vadd.f32 0.0, %v1850
    %1852 = vdwg.mxu0
    %1853 = vmatpush.msra.mxu0 %v761
    %1854 = vmatpush.msra.mxu0 %v757
    %1855 = vmatpush.msra.mxu0 %v753
    %1856 = vmatpush.msra.mxu0 %v749
    %1857 = vmatpush.msra.mxu0 %v745
    %1858 = vmatpush.msra.mxu0 %v741
    %1859 = vmatpush.msra.mxu0 %v737
    %1860 = vmatpush.msra.mxu0 %v733
    %1861 = vmatpush.msra.mxu0 %v729
    %1862 = vmatpush.msra.mxu0 %v725
    %1863 = vmatpush.msra.mxu0 %v721
    %1864 = vmatpush.msra.mxu0 %v717
    %1865 = vmatpush.msra.mxu0 %v713
    %1866 = vmatpush.msra.mxu0 %v709
    %1867 = vmatpush.msra.mxu0 %v705
    %1868 = vmatpush.msra.mxu0 %v701
    %1869 = vmatmul.f32.gmra.mxu0 %v1737
    %v1870 = vpop.f32.mrf.mxu0
    %v1871 = vadd.f32 0.0, %v1870
    %1872 = vdwg.mxu0
    %1873 = vmatpush.msra.mxu0 %v762
    %1874 = vmatpush.msra.mxu0 %v758
    %1875 = vmatpush.msra.mxu0 %v754
    %1876 = vmatpush.msra.mxu0 %v750
    %1877 = vmatpush.msra.mxu0 %v746
    %1878 = vmatpush.msra.mxu0 %v742
    %1879 = vmatpush.msra.mxu0 %v738
    %1880 = vmatpush.msra.mxu0 %v734
    %1881 = vmatpush.msra.mxu0 %v730
    %1882 = vmatpush.msra.mxu0 %v726
    %1883 = vmatpush.msra.mxu0 %v722
    %1884 = vmatpush.msra.mxu0 %v718
    %1885 = vmatpush.msra.mxu0 %v714
    %1886 = vmatpush.msra.mxu0 %v710
    %1887 = vmatpush.msra.mxu0 %v706
    %1888 = vmatpush.msra.mxu0 %v702
    %1889 = vmatmul.f32.gmra.mxu0 %v1737
    %v1890 = vpop.f32.mrf.mxu0
    %v1891 = vadd.f32 0.0, %v1890
    %1892 = vdwg.mxu0
    %1893 = vmatpush.msra.mxu0 %v763
    %1894 = vmatpush.msra.mxu0 %v759
    %1895 = vmatpush.msra.mxu0 %v755
    %1896 = vmatpush.msra.mxu0 %v751
    %1897 = vmatpush.msra.mxu0 %v747
    %1898 = vmatpush.msra.mxu0 %v743
    %1899 = vmatpush.msra.mxu0 %v739
    %1900 = vmatpush.msra.mxu0 %v735
    %1901 = vmatpush.msra.mxu0 %v731
    %1902 = vmatpush.msra.mxu0 %v727
    %1903 = vmatpush.msra.mxu0 %v723
    %1904 = vmatpush.msra.mxu0 %v719
    %1905 = vmatpush.msra.mxu0 %v715
    %1906 = vmatpush.msra.mxu0 %v711
    %1907 = vmatpush.msra.mxu0 %v707
    %1908 = vmatpush.msra.mxu0 %v703
    %1909 = vmatmul.f32.gmra.mxu0 %v1737
    %v1910 = vpop.f32.mrf.mxu0
    %v1911 = vadd.f32 0.0, %v1910
    %1912 = vdwg.mxu0
    %v1913 = vadd.f32 %v1829, %v1851
    %v1914 = vadd.f32 %v1830, %v1871
    %v1915 = vadd.f32 %v1831, %v1891
    %v1916 = vadd.f32 %v1832, %v1911
    %v1917 = vxor.u32 %v1824, 2147483648
    %v1918 = vmul.f32 %v1917, 1.442695
    %v1919 = vpow.pop %v1918
    %v1920 = vadd.f32 %v1919, 1.0
    %v1921 = vrcp.pop %v1920
    %v1922 = vmul.f32 %v1920, %v1921
    %v1923 = vsub.f32 1.0, %v1922
    %v1924 = vmul.f32 %v1921, %v1923
    %v1925 = vadd.f32 %v1921, %v1924
    %vm1926 = vweird.f32 %v1920
    %vm1927 = vweird.f32 %v1921
    %vm1928 = vmor %vm1926, %vm1927
    %v1929 = vsel %vm1928, %v1921, %v1925
    %v1930 = vand.u32 2147483647, %v1920
    %vm1931 = vcmp.eq.f32.partialorder %v1930, 8.507059e+37
    %v1932 = vand.u32 %v1920, 2147483648
    %v1933 = vor.u32 1.1754944e-38, %v1932
    %v1934 = vsel %vm1931, %v1933, %v1929
    %v1935 = vmul.f32 1.0, %v1934
    %v1936 = vxor.u32 %v1825, 2147483648
    %v1937 = vmul.f32 %v1936, 1.442695
    %v1938 = vpow.pop %v1937
    %v1939 = vadd.f32 %v1938, 1.0
    %v1940 = vrcp.pop %v1939
    %v1941 = vmul.f32 %v1939, %v1940
    %v1942 = vsub.f32 1.0, %v1941
    %v1943 = vmul.f32 %v1940, %v1942
    %v1944 = vadd.f32 %v1940, %v1943
    %vm1945 = vweird.f32 %v1939
    %vm1946 = vweird.f32 %v1940
    %vm1947 = vmor %vm1945, %vm1946
    %v1948 = vsel %vm1947, %v1940, %v1944
    %v1949 = vand.u32 2147483647, %v1939
    %vm1950 = vcmp.eq.f32.partialorder %v1949, 8.507059e+37
    %v1951 = vand.u32 %v1939, 2147483648
    %v1952 = vor.u32 1.1754944e-38, %v1951
    %v1953 = vsel %vm1950, %v1952, %v1948
    %v1954 = vmul.f32 1.0, %v1953
    %v1955 = vtanh.pop %v1826
    %v1956 = vxor.u32 %v1827, 2147483648
    %v1957 = vmul.f32 %v1956, 1.442695
    %v1958 = vpow.pop %v1957
    %v1959 = vadd.f32 %v1958, 1.0
    %v1960 = vrcp.pop %v1959
    %v1961 = vmul.f32 %v1959, %v1960
    %v1962 = vsub.f32 1.0, %v1961
    %v1963 = vmul.f32 %v1960, %v1962
    %v1964 = vadd.f32 %v1960, %v1963
    %vm1965 = vweird.f32 %v1959
    %vm1966 = vweird.f32 %v1960
    %vm1967 = vmor %vm1965, %vm1966
    %v1968 = vsel %vm1967, %v1960, %v1964
    %v1969 = vand.u32 2147483647, %v1959
    %vm1970 = vcmp.eq.f32.partialorder %v1969, 8.507059e+37
    %v1971 = vand.u32 %v1959, 2147483648
    %v1972 = vor.u32 1.1754944e-38, %v1971
    %v1973 = vsel %vm1970, %v1972, %v1968
    %v1974 = vmul.f32 1.0, %v1973
    %v1975 = vmul.f32 %v1954, %v1736
    %v1976 = vmul.f32 %v1935, %v1955
    %v1977 = vadd.f32 %v1975, %v1976
    %v1978 = vtanh.pop %v1977
    %v1979 = vmul.f32 %v1974, %v1978
    %v1980 = vxor.u32 %v1913, 2147483648
    %v1981 = vmul.f32 %v1980, 1.442695
    %v1982 = vpow.pop %v1981
    %v1983 = vadd.f32 %v1982, 1.0
    %v1984 = vrcp.pop %v1983
    %v1985 = vmul.f32 %v1983, %v1984
    %v1986 = vsub.f32 1.0, %v1985
    %v1987 = vmul.f32 %v1984, %v1986
    %v1988 = vadd.f32 %v1984, %v1987
    %vm1989 = vweird.f32 %v1983
    %vm1990 = vweird.f32 %v1984
    %vm1991 = vmor %vm1989, %vm1990
    %v1992 = vsel %vm1991, %v1984, %v1988
    %v1993 = vand.u32 2147483647, %v1983
    %vm1994 = vcmp.eq.f32.partialorder %v1993, 8.507059e+37
    %v1995 = vand.u32 %v1983, 2147483648
    %v1996 = vor.u32 1.1754944e-38, %v1995
    %v1997 = vsel %vm1994, %v1996, %v1992
    %v1998 = vmul.f32 1.0, %v1997
    %v1999 = vxor.u32 %v1914, 2147483648
    %v2000 = vmul.f32 %v1999, 1.442695
    %v2001 = vpow.pop %v2000
    %v2002 = vadd.f32 %v2001, 1.0
    %v2003 = vrcp.pop %v2002
    %v2004 = vmul.f32 %v2002, %v2003
    %v2005 = vsub.f32 1.0, %v2004
    %v2006 = vmul.f32 %v2003, %v2005
    %v2007 = vadd.f32 %v2003, %v2006
    %vm2008 = vweird.f32 %v2002
    %vm2009 = vweird.f32 %v2003
    %vm2010 = vmor %vm2008, %vm2009
    %v2011 = vsel %vm2010, %v2003, %v2007
    %v2012 = vand.u32 2147483647, %v2002
    %vm2013 = vcmp.eq.f32.partialorder %v2012, 8.507059e+37
    %v2014 = vand.u32 %v2002, 2147483648
    %v2015 = vor.u32 1.1754944e-38, %v2014
    %v2016 = vsel %vm2013, %v2015, %v2011
    %v2017 = vmul.f32 1.0, %v2016
    %v2018 = vtanh.pop %v1915
    %v2019 = vxor.u32 %v1916, 2147483648
    %v2020 = vmul.f32 %v2019, 1.442695
    %v2021 = vpow.pop %v2020
    %v2022 = vadd.f32 %v2021, 1.0
    %v2023 = vrcp.pop %v2022
    %v2024 = vmul.f32 %v2022, %v2023
    %v2025 = vsub.f32 1.0, %v2024
    %v2026 = vmul.f32 %v2023, %v2025
    %v2027 = vadd.f32 %v2023, %v2026
    %vm2028 = vweird.f32 %v2022
    %vm2029 = vweird.f32 %v2023
    %vm2030 = vmor %vm2028, %vm2029
    %v2031 = vsel %vm2030, %v2023, %v2027
    %v2032 = vand.u32 2147483647, %v2022
    %vm2033 = vcmp.eq.f32.partialorder %v2032, 8.507059e+37
    %v2034 = vand.u32 %v2022, 2147483648
    %v2035 = vor.u32 1.1754944e-38, %v2034
    %v2036 = vsel %vm2033, %v2035, %v2031
    %v2037 = vmul.f32 1.0, %v2036
    %v2038 = vmul.f32 %v2017, %v1738
    %v2039 = vmul.f32 %v1998, %v2018
    %v2040 = vadd.f32 %v2038, %v2039
    %v2041 = vtanh.pop %v2040
    %v2042 = vmul.f32 %v2037, %v2041
    %vm2043 = vcmp.gt.s32.totalorder %v764, 3
    %vm2044 = vcmp.gt.s32.totalorder %v764, 4
    %v2045 = vsel %vm2043, 1, 0
    %2046 = vset.pattern.permute.xlu0 0
    %2047 = vperm.xlu0 %2046, %v2045
    %v2048 = vpop.permute.xlu0 %2047
    %vm2049 = vcmp.eq.s32.totalorder %v2048, 1
    %v2050 = vsel %vm2049, %v1979, 0.0
    %s2051 = scalar_lea.vmem [#allocation3], 24
    %2052 = vst [vmem:[%s2051] sm:$0xff] %v2050
    %v2053 = vsel %vm2044, 1, 0
    %2054 = vset.pattern.permute.xlu0 0
    %2055 = vperm.xlu0 %2054, %v2053
    %v2056 = vpop.permute.xlu0 %2055
    %vm2057 = vcmp.eq.s32.totalorder %v2056, 1
    %v2058 = vsel %vm2057, %v2042, 0.0
    %s2059 = scalar_lea.vmem [#allocation4], 32
    %2060 = vst [vmem:[%s2059] sm:$0xff] %v2058
    %v2061 = vsel %vm2049, %v1979, %v1735
    %v2062 = vsel %vm2049, %v1977, %v1736
    %v2063 = vsel %vm2057, %v2042, %v1737
    %v2064 = vsel %vm2057, %v2040, %v1738
    %v2065 = vld [vmem:[%s1828] sm:$0xff]
    %v2066 = vld [vmem:[%s1828 + $0x8] sm:$0xff]
    %v2067 = vld [vmem:[%s1828 + $0x10] sm:$0xff]
    %v2068 = vld [vmem:[%s1828 + $0x18] sm:$0xff]
    %2069 = vmatpush.msra.mxu0 %v696
    %2070 = vmatpush.msra.mxu0 %v692
    %2071 = vmatpush.msra.mxu0 %v688
    %2072 = vmatpush.msra.mxu0 %v684
    %2073 = vmatpush.msra.mxu0 %v680
    %2074 = vmatpush.msra.mxu0 %v676
    %2075 = vmatpush.msra.mxu0 %v672
    %2076 = vmatpush.msra.mxu0 %v668
    %2077 = vmatpush.msra.mxu0 %v664
    %2078 = vmatpush.msra.mxu0 %v660
    %2079 = vmatpush.msra.mxu0 %v656
    %2080 = vmatpush.msra.mxu0 %v652
    %2081 = vmatpush.msra.mxu0 %v648
    %2082 = vmatpush.msra.mxu0 %v644
    %2083 = vmatpush.msra.mxu0 %v640
    %2084 = vmatpush.msra.mxu0 %v636
    %2085 = vmatmul.f32.gmra.mxu0 %v2061
    %v2086 = vpop.f32.mrf.mxu0
    %v2087 = vadd.f32 0.0, %v2086
    %2088 = vdwg.mxu0
    %2089 = vmatpush.msra.mxu0 %v697
    %2090 = vmatpush.msra.mxu0 %v693
    %2091 = vmatpush.msra.mxu0 %v689
    %2092 = vmatpush.msra.mxu0 %v685
    %2093 = vmatpush.msra.mxu0 %v681
    %2094 = vmatpush.msra.mxu0 %v677
    %2095 = vmatpush.msra.mxu0 %v673
    %2096 = vmatpush.msra.mxu0 %v669
    %2097 = vmatpush.msra.mxu0 %v665
    %2098 = vmatpush.msra.mxu0 %v661
    %2099 = vmatpush.msra.mxu0 %v657
    %2100 = vmatpush.msra.mxu0 %v653
    %2101 = vmatpush.msra.mxu0 %v649
    %2102 = vmatpush.msra.mxu0 %v645
    %2103 = vmatpush.msra.mxu0 %v641
    %2104 = vmatpush.msra.mxu0 %v637
    %2105 = vmatmul.f32.gmra.mxu0 %v2061
    %v2106 = vpop.f32.mrf.mxu0
    %v2107 = vadd.f32 0.0, %v2106
    %2108 = vdwg.mxu0
    %2109 = vmatpush.msra.mxu0 %v698
    %2110 = vmatpush.msra.mxu0 %v694
    %2111 = vmatpush.msra.mxu0 %v690
    %2112 = vmatpush.msra.mxu0 %v686
    %2113 = vmatpush.msra.mxu0 %v682
    %2114 = vmatpush.msra.mxu0 %v678
    %2115 = vmatpush.msra.mxu0 %v674
    %2116 = vmatpush.msra.mxu0 %v670
    %2117 = vmatpush.msra.mxu0 %v666
    %2118 = vmatpush.msra.mxu0 %v662
    %2119 = vmatpush.msra.mxu0 %v658
    %2120 = vmatpush.msra.mxu0 %v654
    %2121 = vmatpush.msra.mxu0 %v650
    %2122 = vmatpush.msra.mxu0 %v646
    %2123 = vmatpush.msra.mxu0 %v642
    %2124 = vmatpush.msra.mxu0 %v638
    %2125 = vmatmul.f32.gmra.mxu0 %v2061
    %v2126 = vpop.f32.mrf.mxu0
    %v2127 = vadd.f32 0.0, %v2126
    %2128 = vdwg.mxu0
    %2129 = vmatpush.msra.mxu0 %v699
    %2130 = vmatpush.msra.mxu0 %v695
    %2131 = vmatpush.msra.mxu0 %v691
    %2132 = vmatpush.msra.mxu0 %v687
    %2133 = vmatpush.msra.mxu0 %v683
    %2134 = vmatpush.msra.mxu0 %v679
    %2135 = vmatpush.msra.mxu0 %v675
    %2136 = vmatpush.msra.mxu0 %v671
    %2137 = vmatpush.msra.mxu0 %v667
    %2138 = vmatpush.msra.mxu0 %v663
    %2139 = vmatpush.msra.mxu0 %v659
    %2140 = vmatpush.msra.mxu0 %v655
    %2141 = vmatpush.msra.mxu0 %v651
    %2142 = vmatpush.msra.mxu0 %v647
    %2143 = vmatpush.msra.mxu0 %v643
    %2144 = vmatpush.msra.mxu0 %v639
    %2145 = vmatmul.f32.gmra.mxu0 %v2061
    %v2146 = vpop.f32.mrf.mxu0
    %v2147 = vadd.f32 0.0, %v2146
    %2148 = vdwg.mxu0
    %v2149 = vadd.f32 %v2065, %v2087
    %v2150 = vadd.f32 %v2066, %v2107
    %v2151 = vadd.f32 %v2067, %v2127
    %v2152 = vadd.f32 %v2068, %v2147
    %v2153 = vld [vmem:[%s1739 + $0x20] sm:$0xff]
    %v2154 = vld [vmem:[%s1739 + $0x28] sm:$0xff]
    %v2155 = vld [vmem:[%s1739 + $0x30] sm:$0xff]
    %v2156 = vld [vmem:[%s1739 + $0x38] sm:$0xff]
    %2157 = vmatpush.msra.mxu0 %v760
    %2158 = vmatpush.msra.mxu0 %v756
    %2159 = vmatpush.msra.mxu0 %v752
    %2160 = vmatpush.msra.mxu0 %v748
    %2161 = vmatpush.msra.mxu0 %v744
    %2162 = vmatpush.msra.mxu0 %v740
    %2163 = vmatpush.msra.mxu0 %v736
    %2164 = vmatpush.msra.mxu0 %v732
    %2165 = vmatpush.msra.mxu0 %v728
    %2166 = vmatpush.msra.mxu0 %v724
    %2167 = vmatpush.msra.mxu0 %v720
    %2168 = vmatpush.msra.mxu0 %v716
    %2169 = vmatpush.msra.mxu0 %v712
    %2170 = vmatpush.msra.mxu0 %v708
    %2171 = vmatpush.msra.mxu0 %v704
    %2172 = vmatpush.msra.mxu0 %v700
    %2173 = vmatmul.f32.gmra.mxu0 %v2063
    %v2174 = vpop.f32.mrf.mxu0
    %v2175 = vadd.f32 0.0, %v2174
    %2176 = vdwg.mxu0
    %2177 = vmatpush.msra.mxu0 %v761
    %2178 = vmatpush.msra.mxu0 %v757
    %2179 = vmatpush.msra.mxu0 %v753
    %2180 = vmatpush.msra.mxu0 %v749
    %2181 = vmatpush.msra.mxu0 %v745
    %2182 = vmatpush.msra.mxu0 %v741
    %2183 = vmatpush.msra.mxu0 %v737
    %2184 = vmatpush.msra.mxu0 %v733
    %2185 = vmatpush.msra.mxu0 %v729
    %2186 = vmatpush.msra.mxu0 %v725
    %2187 = vmatpush.msra.mxu0 %v721
    %2188 = vmatpush.msra.mxu0 %v717
    %2189 = vmatpush.msra.mxu0 %v713
    %2190 = vmatpush.msra.mxu0 %v709
    %2191 = vmatpush.msra.mxu0 %v705
    %2192 = vmatpush.msra.mxu0 %v701
    %2193 = vmatmul.f32.gmra.mxu0 %v2063
    %v2194 = vpop.f32.mrf.mxu0
    %v2195 = vadd.f32 0.0, %v2194
    %2196 = vdwg.mxu0
    %2197 = vmatpush.msra.mxu0 %v762
    %2198 = vmatpush.msra.mxu0 %v758
    %2199 = vmatpush.msra.mxu0 %v754
    %2200 = vmatpush.msra.mxu0 %v750
    %2201 = vmatpush.msra.mxu0 %v746
    %2202 = vmatpush.msra.mxu0 %v742
    %2203 = vmatpush.msra.mxu0 %v738
    %2204 = vmatpush.msra.mxu0 %v734
    %2205 = vmatpush.msra.mxu0 %v730
    %2206 = vmatpush.msra.mxu0 %v726
    %2207 = vmatpush.msra.mxu0 %v722
    %2208 = vmatpush.msra.mxu0 %v718
    %2209 = vmatpush.msra.mxu0 %v714
    %2210 = vmatpush.msra.mxu0 %v710
    %2211 = vmatpush.msra.mxu0 %v706
    %2212 = vmatpush.msra.mxu0 %v702
    %2213 = vmatmul.f32.gmra.mxu0 %v2063
    %v2214 = vpop.f32.mrf.mxu0
    %v2215 = vadd.f32 0.0, %v2214
    %2216 = vdwg.mxu0
    %2217 = vmatpush.msra.mxu0 %v763
    %2218 = vmatpush.msra.mxu0 %v759
    %2219 = vmatpush.msra.mxu0 %v755
    %2220 = vmatpush.msra.mxu0 %v751
    %2221 = vmatpush.msra.mxu0 %v747
    %2222 = vmatpush.msra.mxu0 %v743
    %2223 = vmatpush.msra.mxu0 %v739
    %2224 = vmatpush.msra.mxu0 %v735
    %2225 = vmatpush.msra.mxu0 %v731
    %2226 = vmatpush.msra.mxu0 %v727
    %2227 = vmatpush.msra.mxu0 %v723
    %2228 = vmatpush.msra.mxu0 %v719
    %2229 = vmatpush.msra.mxu0 %v715
    %2230 = vmatpush.msra.mxu0 %v711
    %2231 = vmatpush.msra.mxu0 %v707
    %2232 = vmatpush.msra.mxu0 %v703
    %2233 = vmatmul.f32.gmra.mxu0 %v2063
    %v2234 = vpop.f32.mrf.mxu0
    %v2235 = vadd.f32 0.0, %v2234
    %2236 = vdwg.mxu0
    %v2237 = vadd.f32 %v2153, %v2175
    %v2238 = vadd.f32 %v2154, %v2195
    %v2239 = vadd.f32 %v2155, %v2215
    %v2240 = vadd.f32 %v2156, %v2235
    %v2241 = vxor.u32 %v2149, 2147483648
    %v2242 = vmul.f32 %v2241, 1.442695
    %v2243 = vpow.pop %v2242
    %v2244 = vadd.f32 %v2243, 1.0
    %v2245 = vrcp.pop %v2244
    %v2246 = vmul.f32 %v2244, %v2245
    %v2247 = vsub.f32 1.0, %v2246
    %v2248 = vmul.f32 %v2245, %v2247
    %v2249 = vadd.f32 %v2245, %v2248
    %vm2250 = vweird.f32 %v2244
    %vm2251 = vweird.f32 %v2245
    %vm2252 = vmor %vm2250, %vm2251
    %v2253 = vsel %vm2252, %v2245, %v2249
    %v2254 = vand.u32 2147483647, %v2244
    %vm2255 = vcmp.eq.f32.partialorder %v2254, 8.507059e+37
    %v2256 = vand.u32 %v2244, 2147483648
    %v2257 = vor.u32 1.1754944e-38, %v2256
    %v2258 = vsel %vm2255, %v2257, %v2253
    %v2259 = vmul.f32 1.0, %v2258
    %v2260 = vxor.u32 %v2150, 2147483648
    %v2261 = vmul.f32 %v2260, 1.442695
    %v2262 = vpow.pop %v2261
    %v2263 = vadd.f32 %v2262, 1.0
    %v2264 = vrcp.pop %v2263
    %v2265 = vmul.f32 %v2263, %v2264
    %v2266 = vsub.f32 1.0, %v2265
    %v2267 = vmul.f32 %v2264, %v2266
    %v2268 = vadd.f32 %v2264, %v2267
    %vm2269 = vweird.f32 %v2263
    %vm2270 = vweird.f32 %v2264
    %vm2271 = vmor %vm2269, %vm2270
    %v2272 = vsel %vm2271, %v2264, %v2268
    %v2273 = vand.u32 2147483647, %v2263
    %vm2274 = vcmp.eq.f32.partialorder %v2273, 8.507059e+37
    %v2275 = vand.u32 %v2263, 2147483648
    %v2276 = vor.u32 1.1754944e-38, %v2275
    %v2277 = vsel %vm2274, %v2276, %v2272
    %v2278 = vmul.f32 1.0, %v2277
    %v2279 = vtanh.pop %v2151
    %v2280 = vxor.u32 %v2152, 2147483648
    %v2281 = vmul.f32 %v2280, 1.442695
    %v2282 = vpow.pop %v2281
    %v2283 = vadd.f32 %v2282, 1.0
    %v2284 = vrcp.pop %v2283
    %v2285 = vmul.f32 %v2283, %v2284
    %v2286 = vsub.f32 1.0, %v2285
    %v2287 = vmul.f32 %v2284, %v2286
    %v2288 = vadd.f32 %v2284, %v2287
    %vm2289 = vweird.f32 %v2283
    %vm2290 = vweird.f32 %v2284
    %vm2291 = vmor %vm2289, %vm2290
    %v2292 = vsel %vm2291, %v2284, %v2288
    %v2293 = vand.u32 2147483647, %v2283
    %vm2294 = vcmp.eq.f32.partialorder %v2293, 8.507059e+37
    %v2295 = vand.u32 %v2283, 2147483648
    %v2296 = vor.u32 1.1754944e-38, %v2295
    %v2297 = vsel %vm2294, %v2296, %v2292
    %v2298 = vmul.f32 1.0, %v2297
    %v2299 = vmul.f32 %v2278, %v2062
    %v2300 = vmul.f32 %v2259, %v2279
    %v2301 = vadd.f32 %v2299, %v2300
    %v2302 = vtanh.pop %v2301
    %v2303 = vmul.f32 %v2298, %v2302
    %v2304 = vxor.u32 %v2237, 2147483648
    %v2305 = vmul.f32 %v2304, 1.442695
    %v2306 = vpow.pop %v2305
    %v2307 = vadd.f32 %v2306, 1.0
    %v2308 = vrcp.pop %v2307
    %v2309 = vmul.f32 %v2307, %v2308
    %v2310 = vsub.f32 1.0, %v2309
    %v2311 = vmul.f32 %v2308, %v2310
    %v2312 = vadd.f32 %v2308, %v2311
    %vm2313 = vweird.f32 %v2307
    %vm2314 = vweird.f32 %v2308
    %vm2315 = vmor %vm2313, %vm2314
    %v2316 = vsel %vm2315, %v2308, %v2312
    %v2317 = vand.u32 2147483647, %v2307
    %vm2318 = vcmp.eq.f32.partialorder %v2317, 8.507059e+37
    %v2319 = vand.u32 %v2307, 2147483648
    %v2320 = vor.u32 1.1754944e-38, %v2319
    %v2321 = vsel %vm2318, %v2320, %v2316
    %v2322 = vmul.f32 1.0, %v2321
    %v2323 = vxor.u32 %v2238, 2147483648
    %v2324 = vmul.f32 %v2323, 1.442695
    %v2325 = vpow.pop %v2324
    %v2326 = vadd.f32 %v2325, 1.0
    %v2327 = vrcp.pop %v2326
    %v2328 = vmul.f32 %v2326, %v2327
    %v2329 = vsub.f32 1.0, %v2328
    %v2330 = vmul.f32 %v2327, %v2329
    %v2331 = vadd.f32 %v2327, %v2330
    %vm2332 = vweird.f32 %v2326
    %vm2333 = vweird.f32 %v2327
    %vm2334 = vmor %vm2332, %vm2333
    %v2335 = vsel %vm2334, %v2327, %v2331
    %v2336 = vand.u32 2147483647, %v2326
    %vm2337 = vcmp.eq.f32.partialorder %v2336, 8.507059e+37
    %v2338 = vand.u32 %v2326, 2147483648
    %v2339 = vor.u32 1.1754944e-38, %v2338
    %v2340 = vsel %vm2337, %v2339, %v2335
    %v2341 = vmul.f32 1.0, %v2340
    %v2342 = vtanh.pop %v2239
    %v2343 = vxor.u32 %v2240, 2147483648
    %v2344 = vmul.f32 %v2343, 1.442695
    %v2345 = vpow.pop %v2344
    %v2346 = vadd.f32 %v2345, 1.0
    %v2347 = vrcp.pop %v2346
    %v2348 = vmul.f32 %v2346, %v2347
    %v2349 = vsub.f32 1.0, %v2348
    %v2350 = vmul.f32 %v2347, %v2349
    %v2351 = vadd.f32 %v2347, %v2350
    %vm2352 = vweird.f32 %v2346
    %vm2353 = vweird.f32 %v2347
    %vm2354 = vmor %vm2352, %vm2353
    %v2355 = vsel %vm2354, %v2347, %v2351
    %v2356 = vand.u32 2147483647, %v2346
    %vm2357 = vcmp.eq.f32.partialorder %v2356, 8.507059e+37
    %v2358 = vand.u32 %v2346, 2147483648
    %v2359 = vor.u32 1.1754944e-38, %v2358
    %v2360 = vsel %vm2357, %v2359, %v2355
    %v2361 = vmul.f32 1.0, %v2360
    %v2362 = vmul.f32 %v2341, %v2064
    %v2363 = vmul.f32 %v2322, %v2342
    %v2364 = vadd.f32 %v2362, %v2363
    %v2365 = vtanh.pop %v2364
    %v2366 = vmul.f32 %v2361, %v2365
    %v2367 = vsel %vm2057, %v2303, 0.0
    %s2368 = scalar_lea.vmem [#allocation3], 32
    %2369 = vst [vmem:[%s2368] sm:$0xff] %v2367
    %v2370 = vsel %vm2049, %v2366, 0.0
    %s2371 = scalar_lea.vmem [#allocation4], 24
    %2372 = vst [vmem:[%s2371] sm:$0xff] %v2370
    %v2373 = vsel %vm2057, %v2303, %v2061
    %v2374 = vsel %vm2057, %v2301, %v2062
    %v2375 = vsel %vm2049, %v2366, %v2063
    %v2376 = vsel %vm2049, %v2364, %v2064
    %v2377 = vld [vmem:[%s1502] sm:$0xff]
    %v2378 = vld [vmem:[%s1502 + $0x8] sm:$0xff]
    %v2379 = vld [vmem:[%s1502 + $0x10] sm:$0xff]
    %v2380 = vld [vmem:[%s1502 + $0x18] sm:$0xff]
    %2381 = vmatpush.msra.mxu0 %v696
    %2382 = vmatpush.msra.mxu0 %v692
    %2383 = vmatpush.msra.mxu0 %v688
    %2384 = vmatpush.msra.mxu0 %v684
    %2385 = vmatpush.msra.mxu0 %v680
    %2386 = vmatpush.msra.mxu0 %v676
    %2387 = vmatpush.msra.mxu0 %v672
    %2388 = vmatpush.msra.mxu0 %v668
    %2389 = vmatpush.msra.mxu0 %v664
    %2390 = vmatpush.msra.mxu0 %v660
    %2391 = vmatpush.msra.mxu0 %v656
    %2392 = vmatpush.msra.mxu0 %v652
    %2393 = vmatpush.msra.mxu0 %v648
    %2394 = vmatpush.msra.mxu0 %v644
    %2395 = vmatpush.msra.mxu0 %v640
    %2396 = vmatpush.msra.mxu0 %v636
    %2397 = vmatmul.f32.gmra.mxu0 %v2373
    %v2398 = vpop.f32.mrf.mxu0
    %v2399 = vadd.f32 0.0, %v2398
    %2400 = vdwg.mxu0
    %2401 = vmatpush.msra.mxu0 %v697
    %2402 = vmatpush.msra.mxu0 %v693
    %2403 = vmatpush.msra.mxu0 %v689
    %2404 = vmatpush.msra.mxu0 %v685
    %2405 = vmatpush.msra.mxu0 %v681
    %2406 = vmatpush.msra.mxu0 %v677
    %2407 = vmatpush.msra.mxu0 %v673
    %2408 = vmatpush.msra.mxu0 %v669
    %2409 = vmatpush.msra.mxu0 %v665
    %2410 = vmatpush.msra.mxu0 %v661
    %2411 = vmatpush.msra.mxu0 %v657
    %2412 = vmatpush.msra.mxu0 %v653
    %2413 = vmatpush.msra.mxu0 %v649
    %2414 = vmatpush.msra.mxu0 %v645
    %2415 = vmatpush.msra.mxu0 %v641
    %2416 = vmatpush.msra.mxu0 %v637
    %2417 = vmatmul.f32.gmra.mxu0 %v2373
    %v2418 = vpop.f32.mrf.mxu0
    %v2419 = vadd.f32 0.0, %v2418
    %2420 = vdwg.mxu0
    %2421 = vmatpush.msra.mxu0 %v698
    %2422 = vmatpush.msra.mxu0 %v694
    %2423 = vmatpush.msra.mxu0 %v690
    %2424 = vmatpush.msra.mxu0 %v686
    %2425 = vmatpush.msra.mxu0 %v682
    %2426 = vmatpush.msra.mxu0 %v678
    %2427 = vmatpush.msra.mxu0 %v674
    %2428 = vmatpush.msra.mxu0 %v670
    %2429 = vmatpush.msra.mxu0 %v666
    %2430 = vmatpush.msra.mxu0 %v662
    %2431 = vmatpush.msra.mxu0 %v658
    %2432 = vmatpush.msra.mxu0 %v654
    %2433 = vmatpush.msra.mxu0 %v650
    %2434 = vmatpush.msra.mxu0 %v646
    %2435 = vmatpush.msra.mxu0 %v642
    %2436 = vmatpush.msra.mxu0 %v638
    %2437 = vmatmul.f32.gmra.mxu0 %v2373
    %v2438 = vpop.f32.mrf.mxu0
    %v2439 = vadd.f32 0.0, %v2438
    %2440 = vdwg.mxu0
    %2441 = vmatpush.msra.mxu0 %v699
    %2442 = vmatpush.msra.mxu0 %v695
    %2443 = vmatpush.msra.mxu0 %v691
    %2444 = vmatpush.msra.mxu0 %v687
    %2445 = vmatpush.msra.mxu0 %v683
    %2446 = vmatpush.msra.mxu0 %v679
    %2447 = vmatpush.msra.mxu0 %v675
    %2448 = vmatpush.msra.mxu0 %v671
    %2449 = vmatpush.msra.mxu0 %v667
    %2450 = vmatpush.msra.mxu0 %v663
    %2451 = vmatpush.msra.mxu0 %v659
    %2452 = vmatpush.msra.mxu0 %v655
    %2453 = vmatpush.msra.mxu0 %v651
    %2454 = vmatpush.msra.mxu0 %v647
    %2455 = vmatpush.msra.mxu0 %v643
    %2456 = vmatpush.msra.mxu0 %v639
    %2457 = vmatmul.f32.gmra.mxu0 %v2373
    %v2458 = vpop.f32.mrf.mxu0
    %v2459 = vadd.f32 0.0, %v2458
    %2460 = vdwg.mxu0
    %v2461 = vadd.f32 %v2377, %v2399
    %v2462 = vadd.f32 %v2378, %v2419
    %v2463 = vadd.f32 %v2379, %v2439
    %v2464 = vadd.f32 %v2380, %v2459
    %v2465 = vld [vmem:[%s1413 + $0x20] sm:$0xff]
    %v2466 = vld [vmem:[%s1413 + $0x28] sm:$0xff]
    %v2467 = vld [vmem:[%s1413 + $0x30] sm:$0xff]
    %v2468 = vld [vmem:[%s1413 + $0x38] sm:$0xff]
    %2469 = vmatpush.msra.mxu0 %v760
    %2470 = vmatpush.msra.mxu0 %v756
    %2471 = vmatpush.msra.mxu0 %v752
    %2472 = vmatpush.msra.mxu0 %v748
    %2473 = vmatpush.msra.mxu0 %v744
    %2474 = vmatpush.msra.mxu0 %v740
    %2475 = vmatpush.msra.mxu0 %v736
    %2476 = vmatpush.msra.mxu0 %v732
    %2477 = vmatpush.msra.mxu0 %v728
    %2478 = vmatpush.msra.mxu0 %v724
    %2479 = vmatpush.msra.mxu0 %v720
    %2480 = vmatpush.msra.mxu0 %v716
    %2481 = vmatpush.msra.mxu0 %v712
    %2482 = vmatpush.msra.mxu0 %v708
    %2483 = vmatpush.msra.mxu0 %v704
    %2484 = vmatpush.msra.mxu0 %v700
    %2485 = vmatmul.f32.gmra.mxu0 %v2375
    %v2486 = vpop.f32.mrf.mxu0
    %v2487 = vadd.f32 0.0, %v2486
    %2488 = vdwg.mxu0
    %2489 = vmatpush.msra.mxu0 %v761
    %2490 = vmatpush.msra.mxu0 %v757
    %2491 = vmatpush.msra.mxu0 %v753
    %2492 = vmatpush.msra.mxu0 %v749
    %2493 = vmatpush.msra.mxu0 %v745
    %2494 = vmatpush.msra.mxu0 %v741
    %2495 = vmatpush.msra.mxu0 %v737
    %2496 = vmatpush.msra.mxu0 %v733
    %2497 = vmatpush.msra.mxu0 %v729
    %2498 = vmatpush.msra.mxu0 %v725
    %2499 = vmatpush.msra.mxu0 %v721
    %2500 = vmatpush.msra.mxu0 %v717
    %2501 = vmatpush.msra.mxu0 %v713
    %2502 = vmatpush.msra.mxu0 %v709
    %2503 = vmatpush.msra.mxu0 %v705
    %2504 = vmatpush.msra.mxu0 %v701
    %2505 = vmatmul.f32.gmra.mxu0 %v2375
    %v2506 = vpop.f32.mrf.mxu0
    %v2507 = vadd.f32 0.0, %v2506
    %2508 = vdwg.mxu0
    %2509 = vmatpush.msra.mxu0 %v762
    %2510 = vmatpush.msra.mxu0 %v758
    %2511 = vmatpush.msra.mxu0 %v754
    %2512 = vmatpush.msra.mxu0 %v750
    %2513 = vmatpush.msra.mxu0 %v746
    %2514 = vmatpush.msra.mxu0 %v742
    %2515 = vmatpush.msra.mxu0 %v738
    %2516 = vmatpush.msra.mxu0 %v734
    %2517 = vmatpush.msra.mxu0 %v730
    %2518 = vmatpush.msra.mxu0 %v726
    %2519 = vmatpush.msra.mxu0 %v722
    %2520 = vmatpush.msra.mxu0 %v718
    %2521 = vmatpush.msra.mxu0 %v714
    %2522 = vmatpush.msra.mxu0 %v710
    %2523 = vmatpush.msra.mxu0 %v706
    %2524 = vmatpush.msra.mxu0 %v702
    %2525 = vmatmul.f32.gmra.mxu0 %v2375
    %v2526 = vpop.f32.mrf.mxu0
    %v2527 = vadd.f32 0.0, %v2526
    %2528 = vdwg.mxu0
    %2529 = vmatpush.msra.mxu0 %v763
    %2530 = vmatpush.msra.mxu0 %v759
    %2531 = vmatpush.msra.mxu0 %v755
    %2532 = vmatpush.msra.mxu0 %v751
    %2533 = vmatpush.msra.mxu0 %v747
    %2534 = vmatpush.msra.mxu0 %v743
    %2535 = vmatpush.msra.mxu0 %v739
    %2536 = vmatpush.msra.mxu0 %v735
    %2537 = vmatpush.msra.mxu0 %v731
    %2538 = vmatpush.msra.mxu0 %v727
    %2539 = vmatpush.msra.mxu0 %v723
    %2540 = vmatpush.msra.mxu0 %v719
    %2541 = vmatpush.msra.mxu0 %v715
    %2542 = vmatpush.msra.mxu0 %v711
    %2543 = vmatpush.msra.mxu0 %v707
    %2544 = vmatpush.msra.mxu0 %v703
    %2545 = vmatmul.f32.gmra.mxu0 %v2375
    %v2546 = vpop.f32.mrf.mxu0
    %v2547 = vadd.f32 0.0, %v2546
    %2548 = vdwg.mxu0
    %v2549 = vadd.f32 %v2465, %v2487
    %v2550 = vadd.f32 %v2466, %v2507
    %v2551 = vadd.f32 %v2467, %v2527
    %v2552 = vadd.f32 %v2468, %v2547
    %v2553 = vxor.u32 %v2461, 2147483648
    %v2554 = vmul.f32 %v2553, 1.442695
    %v2555 = vpow.pop %v2554
    %v2556 = vadd.f32 %v2555, 1.0
    %v2557 = vrcp.pop %v2556
    %v2558 = vmul.f32 %v2556, %v2557
    %v2559 = vsub.f32 1.0, %v2558
    %v2560 = vmul.f32 %v2557, %v2559
    %v2561 = vadd.f32 %v2557, %v2560
    %vm2562 = vweird.f32 %v2556
    %vm2563 = vweird.f32 %v2557
    %vm2564 = vmor %vm2562, %vm2563
    %v2565 = vsel %vm2564, %v2557, %v2561
    %v2566 = vand.u32 2147483647, %v2556
    %vm2567 = vcmp.eq.f32.partialorder %v2566, 8.507059e+37
    %v2568 = vand.u32 %v2556, 2147483648
    %v2569 = vor.u32 1.1754944e-38, %v2568
    %v2570 = vsel %vm2567, %v2569, %v2565
    %v2571 = vmul.f32 1.0, %v2570
    %v2572 = vxor.u32 %v2462, 2147483648
    %v2573 = vmul.f32 %v2572, 1.442695
    %v2574 = vpow.pop %v2573
    %v2575 = vadd.f32 %v2574, 1.0
    %v2576 = vrcp.pop %v2575
    %v2577 = vmul.f32 %v2575, %v2576
    %v2578 = vsub.f32 1.0, %v2577
    %v2579 = vmul.f32 %v2576, %v2578
    %v2580 = vadd.f32 %v2576, %v2579
    %vm2581 = vweird.f32 %v2575
    %vm2582 = vweird.f32 %v2576
    %vm2583 = vmor %vm2581, %vm2582
    %v2584 = vsel %vm2583, %v2576, %v2580
    %v2585 = vand.u32 2147483647, %v2575
    %vm2586 = vcmp.eq.f32.partialorder %v2585, 8.507059e+37
    %v2587 = vand.u32 %v2575, 2147483648
    %v2588 = vor.u32 1.1754944e-38, %v2587
    %v2589 = vsel %vm2586, %v2588, %v2584
    %v2590 = vmul.f32 1.0, %v2589
    %v2591 = vtanh.pop %v2463
    %v2592 = vxor.u32 %v2464, 2147483648
    %v2593 = vmul.f32 %v2592, 1.442695
    %v2594 = vpow.pop %v2593
    %v2595 = vadd.f32 %v2594, 1.0
    %v2596 = vrcp.pop %v2595
    %v2597 = vmul.f32 %v2595, %v2596
    %v2598 = vsub.f32 1.0, %v2597
    %v2599 = vmul.f32 %v2596, %v2598
    %v2600 = vadd.f32 %v2596, %v2599
    %vm2601 = vweird.f32 %v2595
    %vm2602 = vweird.f32 %v2596
    %vm2603 = vmor %vm2601, %vm2602
    %v2604 = vsel %vm2603, %v2596, %v2600
    %v2605 = vand.u32 2147483647, %v2595
    %vm2606 = vcmp.eq.f32.partialorder %v2605, 8.507059e+37
    %v2607 = vand.u32 %v2595, 2147483648
    %v2608 = vor.u32 1.1754944e-38, %v2607
    %v2609 = vsel %vm2606, %v2608, %v2604
    %v2610 = vmul.f32 1.0, %v2609
    %v2611 = vmul.f32 %v2590, %v2374
    %v2612 = vmul.f32 %v2571, %v2591
    %v2613 = vadd.f32 %v2611, %v2612
    %v2614 = vtanh.pop %v2613
    %v2615 = vmul.f32 %v2610, %v2614
    %v2616 = vxor.u32 %v2549, 2147483648
    %v2617 = vmul.f32 %v2616, 1.442695
    %v2618 = vpow.pop %v2617
    %v2619 = vadd.f32 %v2618, 1.0
    %v2620 = vrcp.pop %v2619
    %v2621 = vmul.f32 %v2619, %v2620
    %v2622 = vsub.f32 1.0, %v2621
    %v2623 = vmul.f32 %v2620, %v2622
    %v2624 = vadd.f32 %v2620, %v2623
    %vm2625 = vweird.f32 %v2619
    %vm2626 = vweird.f32 %v2620
    %vm2627 = vmor %vm2625, %vm2626
    %v2628 = vsel %vm2627, %v2620, %v2624
    %v2629 = vand.u32 2147483647, %v2619
    %vm2630 = vcmp.eq.f32.partialorder %v2629, 8.507059e+37
    %v2631 = vand.u32 %v2619, 2147483648
    %v2632 = vor.u32 1.1754944e-38, %v2631
    %v2633 = vsel %vm2630, %v2632, %v2628
    %v2634 = vmul.f32 1.0, %v2633
    %v2635 = vxor.u32 %v2550, 2147483648
    %v2636 = vmul.f32 %v2635, 1.442695
    %v2637 = vpow.pop %v2636
    %v2638 = vadd.f32 %v2637, 1.0
    %v2639 = vrcp.pop %v2638
    %v2640 = vmul.f32 %v2638, %v2639
    %v2641 = vsub.f32 1.0, %v2640
    %v2642 = vmul.f32 %v2639, %v2641
    %v2643 = vadd.f32 %v2639, %v2642
    %vm2644 = vweird.f32 %v2638
    %vm2645 = vweird.f32 %v2639
    %vm2646 = vmor %vm2644, %vm2645
    %v2647 = vsel %vm2646, %v2639, %v2643
    %v2648 = vand.u32 2147483647, %v2638
    %vm2649 = vcmp.eq.f32.partialorder %v2648, 8.507059e+37
    %v2650 = vand.u32 %v2638, 2147483648
    %v2651 = vor.u32 1.1754944e-38, %v2650
    %v2652 = vsel %vm2649, %v2651, %v2647
    %v2653 = vmul.f32 1.0, %v2652
    %v2654 = vtanh.pop %v2551
    %v2655 = vxor.u32 %v2552, 2147483648
    %v2656 = vmul.f32 %v2655, 1.442695
    %v2657 = vpow.pop %v2656
    %v2658 = vadd.f32 %v2657, 1.0
    %v2659 = vrcp.pop %v2658
    %v2660 = vmul.f32 %v2658, %v2659
    %v2661 = vsub.f32 1.0, %v2660
    %v2662 = vmul.f32 %v2659, %v2661
    %v2663 = vadd.f32 %v2659, %v2662
    %vm2664 = vweird.f32 %v2658
    %vm2665 = vweird.f32 %v2659
    %vm2666 = vmor %vm2664, %vm2665
    %v2667 = vsel %vm2666, %v2659, %v2663
    %v2668 = vand.u32 2147483647, %v2658
    %vm2669 = vcmp.eq.f32.partialorder %v2668, 8.507059e+37
    %v2670 = vand.u32 %v2658, 2147483648
    %v2671 = vor.u32 1.1754944e-38, %v2670
    %v2672 = vsel %vm2669, %v2671, %v2667
    %v2673 = vmul.f32 1.0, %v2672
    %v2674 = vmul.f32 %v2653, %v2376
    %v2675 = vmul.f32 %v2634, %v2654
    %v2676 = vadd.f32 %v2674, %v2675
    %v2677 = vtanh.pop %v2676
    %v2678 = vmul.f32 %v2673, %v2677
    %v2679 = vsel %vm1731, %v2615, 0.0
    %s2680 = scalar_lea.vmem [#allocation3], 40
    %2681 = vst [vmem:[%s2680] sm:$0xff] %v2679
    %v2682 = vsel %vm1723, %v2678, 0.0
    %s2683 = scalar_lea.vmem [#allocation4], 16
    %2684 = vst [vmem:[%s2683] sm:$0xff] %v2682
    %v2685 = vsel %vm1731, %v2615, %v2373
    %v2686 = vsel %vm1731, %v2613, %v2374
    %v2687 = vsel %vm1723, %v2678, %v2375
    %v2688 = vsel %vm1723, %v2676, %v2376
    %v2689 = vld [vmem:[%s1176] sm:$0xff]
    %v2690 = vld [vmem:[%s1176 + $0x8] sm:$0xff]
    %v2691 = vld [vmem:[%s1176 + $0x10] sm:$0xff]
    %v2692 = vld [vmem:[%s1176 + $0x18] sm:$0xff]
    %2693 = vmatpush.msra.mxu0 %v696
    %2694 = vmatpush.msra.mxu0 %v692
    %2695 = vmatpush.msra.mxu0 %v688
    %2696 = vmatpush.msra.mxu0 %v684
    %2697 = vmatpush.msra.mxu0 %v680
    %2698 = vmatpush.msra.mxu0 %v676
    %2699 = vmatpush.msra.mxu0 %v672
    %2700 = vmatpush.msra.mxu0 %v668
    %2701 = vmatpush.msra.mxu0 %v664
    %2702 = vmatpush.msra.mxu0 %v660
    %2703 = vmatpush.msra.mxu0 %v656
    %2704 = vmatpush.msra.mxu0 %v652
    %2705 = vmatpush.msra.mxu0 %v648
    %2706 = vmatpush.msra.mxu0 %v644
    %2707 = vmatpush.msra.mxu0 %v640
    %2708 = vmatpush.msra.mxu0 %v636
    %2709 = vmatmul.f32.gmra.mxu0 %v2685
    %v2710 = vpop.f32.mrf.mxu0
    %v2711 = vadd.f32 0.0, %v2710
    %2712 = vdwg.mxu0
    %2713 = vmatpush.msra.mxu0 %v697
    %2714 = vmatpush.msra.mxu0 %v693
    %2715 = vmatpush.msra.mxu0 %v689
    %2716 = vmatpush.msra.mxu0 %v685
    %2717 = vmatpush.msra.mxu0 %v681
    %2718 = vmatpush.msra.mxu0 %v677
    %2719 = vmatpush.msra.mxu0 %v673
    %2720 = vmatpush.msra.mxu0 %v669
    %2721 = vmatpush.msra.mxu0 %v665
    %2722 = vmatpush.msra.mxu0 %v661
    %2723 = vmatpush.msra.mxu0 %v657
    %2724 = vmatpush.msra.mxu0 %v653
    %2725 = vmatpush.msra.mxu0 %v649
    %2726 = vmatpush.msra.mxu0 %v645
    %2727 = vmatpush.msra.mxu0 %v641
    %2728 = vmatpush.msra.mxu0 %v637
    %2729 = vmatmul.f32.gmra.mxu0 %v2685
    %v2730 = vpop.f32.mrf.mxu0
    %v2731 = vadd.f32 0.0, %v2730
    %2732 = vdwg.mxu0
    %2733 = vmatpush.msra.mxu0 %v698
    %2734 = vmatpush.msra.mxu0 %v694
    %2735 = vmatpush.msra.mxu0 %v690
    %2736 = vmatpush.msra.mxu0 %v686
    %2737 = vmatpush.msra.mxu0 %v682
    %2738 = vmatpush.msra.mxu0 %v678
    %2739 = vmatpush.msra.mxu0 %v674
    %2740 = vmatpush.msra.mxu0 %v670
    %2741 = vmatpush.msra.mxu0 %v666
    %2742 = vmatpush.msra.mxu0 %v662
    %2743 = vmatpush.msra.mxu0 %v658
    %2744 = vmatpush.msra.mxu0 %v654
    %2745 = vmatpush.msra.mxu0 %v650
    %2746 = vmatpush.msra.mxu0 %v646
    %2747 = vmatpush.msra.mxu0 %v642
    %2748 = vmatpush.msra.mxu0 %v638
    %2749 = vmatmul.f32.gmra.mxu0 %v2685
    %v2750 = vpop.f32.mrf.mxu0
    %v2751 = vadd.f32 0.0, %v2750
    %2752 = vdwg.mxu0
    %2753 = vmatpush.msra.mxu0 %v699
    %2754 = vmatpush.msra.mxu0 %v695
    %2755 = vmatpush.msra.mxu0 %v691
    %2756 = vmatpush.msra.mxu0 %v687
    %2757 = vmatpush.msra.mxu0 %v683
    %2758 = vmatpush.msra.mxu0 %v679
    %2759 = vmatpush.msra.mxu0 %v675
    %2760 = vmatpush.msra.mxu0 %v671
    %2761 = vmatpush.msra.mxu0 %v667
    %2762 = vmatpush.msra.mxu0 %v663
    %2763 = vmatpush.msra.mxu0 %v659
    %2764 = vmatpush.msra.mxu0 %v655
    %2765 = vmatpush.msra.mxu0 %v651
    %2766 = vmatpush.msra.mxu0 %v647
    %2767 = vmatpush.msra.mxu0 %v643
    %2768 = vmatpush.msra.mxu0 %v639
    %2769 = vmatmul.f32.gmra.mxu0 %v2685
    %v2770 = vpop.f32.mrf.mxu0
    %v2771 = vadd.f32 0.0, %v2770
    %2772 = vdwg.mxu0
    %v2773 = vadd.f32 %v2689, %v2711
    %v2774 = vadd.f32 %v2690, %v2731
    %v2775 = vadd.f32 %v2691, %v2751
    %v2776 = vadd.f32 %v2692, %v2771
    %v2777 = vld [vmem:[%s1087 + $0x20] sm:$0xff]
    %v2778 = vld [vmem:[%s1087 + $0x28] sm:$0xff]
    %v2779 = vld [vmem:[%s1087 + $0x30] sm:$0xff]
    %v2780 = vld [vmem:[%s1087 + $0x38] sm:$0xff]
    %2781 = vmatpush.msra.mxu0 %v760
    %2782 = vmatpush.msra.mxu0 %v756
    %2783 = vmatpush.msra.mxu0 %v752
    %2784 = vmatpush.msra.mxu0 %v748
    %2785 = vmatpush.msra.mxu0 %v744
    %2786 = vmatpush.msra.mxu0 %v740
    %2787 = vmatpush.msra.mxu0 %v736
    %2788 = vmatpush.msra.mxu0 %v732
    %2789 = vmatpush.msra.mxu0 %v728
    %2790 = vmatpush.msra.mxu0 %v724
    %2791 = vmatpush.msra.mxu0 %v720
    %2792 = vmatpush.msra.mxu0 %v716
    %2793 = vmatpush.msra.mxu0 %v712
    %2794 = vmatpush.msra.mxu0 %v708
    %2795 = vmatpush.msra.mxu0 %v704
    %2796 = vmatpush.msra.mxu0 %v700
    %2797 = vmatmul.f32.gmra.mxu0 %v2687
    %v2798 = vpop.f32.mrf.mxu0
    %v2799 = vadd.f32 0.0, %v2798
    %2800 = vdwg.mxu0
    %2801 = vmatpush.msra.mxu0 %v761
    %2802 = vmatpush.msra.mxu0 %v757
    %2803 = vmatpush.msra.mxu0 %v753
    %2804 = vmatpush.msra.mxu0 %v749
    %2805 = vmatpush.msra.mxu0 %v745
    %2806 = vmatpush.msra.mxu0 %v741
    %2807 = vmatpush.msra.mxu0 %v737
    %2808 = vmatpush.msra.mxu0 %v733
    %2809 = vmatpush.msra.mxu0 %v729
    %2810 = vmatpush.msra.mxu0 %v725
    %2811 = vmatpush.msra.mxu0 %v721
    %2812 = vmatpush.msra.mxu0 %v717
    %2813 = vmatpush.msra.mxu0 %v713
    %2814 = vmatpush.msra.mxu0 %v709
    %2815 = vmatpush.msra.mxu0 %v705
    %2816 = vmatpush.msra.mxu0 %v701
    %2817 = vmatmul.f32.gmra.mxu0 %v2687
    %v2818 = vpop.f32.mrf.mxu0
    %v2819 = vadd.f32 0.0, %v2818
    %2820 = vdwg.mxu0
    %2821 = vmatpush.msra.mxu0 %v762
    %2822 = vmatpush.msra.mxu0 %v758
    %2823 = vmatpush.msra.mxu0 %v754
    %2824 = vmatpush.msra.mxu0 %v750
    %2825 = vmatpush.msra.mxu0 %v746
    %2826 = vmatpush.msra.mxu0 %v742
    %2827 = vmatpush.msra.mxu0 %v738
    %2828 = vmatpush.msra.mxu0 %v734
    %2829 = vmatpush.msra.mxu0 %v730
    %2830 = vmatpush.msra.mxu0 %v726
    %2831 = vmatpush.msra.mxu0 %v722
    %2832 = vmatpush.msra.mxu0 %v718
    %2833 = vmatpush.msra.mxu0 %v714
    %2834 = vmatpush.msra.mxu0 %v710
    %2835 = vmatpush.msra.mxu0 %v706
    %2836 = vmatpush.msra.mxu0 %v702
    %2837 = vmatmul.f32.gmra.mxu0 %v2687
    %v2838 = vpop.f32.mrf.mxu0
    %v2839 = vadd.f32 0.0, %v2838
    %2840 = vdwg.mxu0
    %2841 = vmatpush.msra.mxu0 %v763
    %2842 = vmatpush.msra.mxu0 %v759
    %2843 = vmatpush.msra.mxu0 %v755
    %2844 = vmatpush.msra.mxu0 %v751
    %2845 = vmatpush.msra.mxu0 %v747
    %2846 = vmatpush.msra.mxu0 %v743
    %2847 = vmatpush.msra.mxu0 %v739
    %2848 = vmatpush.msra.mxu0 %v735
    %2849 = vmatpush.msra.mxu0 %v731
    %2850 = vmatpush.msra.mxu0 %v727
    %2851 = vmatpush.msra.mxu0 %v723
    %2852 = vmatpush.msra.mxu0 %v719
    %2853 = vmatpush.msra.mxu0 %v715
    %2854 = vmatpush.msra.mxu0 %v711
    %2855 = vmatpush.msra.mxu0 %v707
    %2856 = vmatpush.msra.mxu0 %v703
    %2857 = vmatmul.f32.gmra.mxu0 %v2687
    %v2858 = vpop.f32.mrf.mxu0
    %v2859 = vadd.f32 0.0, %v2858
    %2860 = vdwg.mxu0
    %v2861 = vadd.f32 %v2777, %v2799
    %v2862 = vadd.f32 %v2778, %v2819
    %v2863 = vadd.f32 %v2779, %v2839
    %v2864 = vadd.f32 %v2780, %v2859
    %v2865 = vxor.u32 %v2773, 2147483648
    %v2866 = vmul.f32 %v2865, 1.442695
    %v2867 = vpow.pop %v2866
    %v2868 = vadd.f32 %v2867, 1.0
    %v2869 = vrcp.pop %v2868
    %v2870 = vmul.f32 %v2868, %v2869
    %v2871 = vsub.f32 1.0, %v2870
    %v2872 = vmul.f32 %v2869, %v2871
    %v2873 = vadd.f32 %v2869, %v2872
    %vm2874 = vweird.f32 %v2868
    %vm2875 = vweird.f32 %v2869
    %vm2876 = vmor %vm2874, %vm2875
    %v2877 = vsel %vm2876, %v2869, %v2873
    %v2878 = vand.u32 2147483647, %v2868
    %vm2879 = vcmp.eq.f32.partialorder %v2878, 8.507059e+37
    %v2880 = vand.u32 %v2868, 2147483648
    %v2881 = vor.u32 1.1754944e-38, %v2880
    %v2882 = vsel %vm2879, %v2881, %v2877
    %v2883 = vmul.f32 1.0, %v2882
    %v2884 = vxor.u32 %v2774, 2147483648
    %v2885 = vmul.f32 %v2884, 1.442695
    %v2886 = vpow.pop %v2885
    %v2887 = vadd.f32 %v2886, 1.0
    %v2888 = vrcp.pop %v2887
    %v2889 = vmul.f32 %v2887, %v2888
    %v2890 = vsub.f32 1.0, %v2889
    %v2891 = vmul.f32 %v2888, %v2890
    %v2892 = vadd.f32 %v2888, %v2891
    %vm2893 = vweird.f32 %v2887
    %vm2894 = vweird.f32 %v2888
    %vm2895 = vmor %vm2893, %vm2894
    %v2896 = vsel %vm2895, %v2888, %v2892
    %v2897 = vand.u32 2147483647, %v2887
    %vm2898 = vcmp.eq.f32.partialorder %v2897, 8.507059e+37
    %v2899 = vand.u32 %v2887, 2147483648
    %v2900 = vor.u32 1.1754944e-38, %v2899
    %v2901 = vsel %vm2898, %v2900, %v2896
    %v2902 = vmul.f32 1.0, %v2901
    %v2903 = vtanh.pop %v2775
    %v2904 = vxor.u32 %v2776, 2147483648
    %v2905 = vmul.f32 %v2904, 1.442695
    %v2906 = vpow.pop %v2905
    %v2907 = vadd.f32 %v2906, 1.0
    %v2908 = vrcp.pop %v2907
    %v2909 = vmul.f32 %v2907, %v2908
    %v2910 = vsub.f32 1.0, %v2909
    %v2911 = vmul.f32 %v2908, %v2910
    %v2912 = vadd.f32 %v2908, %v2911
    %vm2913 = vweird.f32 %v2907
    %vm2914 = vweird.f32 %v2908
    %vm2915 = vmor %vm2913, %vm2914
    %v2916 = vsel %vm2915, %v2908, %v2912
    %v2917 = vand.u32 2147483647, %v2907
    %vm2918 = vcmp.eq.f32.partialorder %v2917, 8.507059e+37
    %v2919 = vand.u32 %v2907, 2147483648
    %v2920 = vor.u32 1.1754944e-38, %v2919
    %v2921 = vsel %vm2918, %v2920, %v2916
    %v2922 = vmul.f32 1.0, %v2921
    %v2923 = vmul.f32 %v2902, %v2686
    %v2924 = vmul.f32 %v2883, %v2903
    %v2925 = vadd.f32 %v2923, %v2924
    %v2926 = vtanh.pop %v2925
    %v2927 = vmul.f32 %v2922, %v2926
    %v2928 = vxor.u32 %v2861, 2147483648
    %v2929 = vmul.f32 %v2928, 1.442695
    %v2930 = vpow.pop %v2929
    %v2931 = vadd.f32 %v2930, 1.0
    %v2932 = vrcp.pop %v2931
    %v2933 = vmul.f32 %v2931, %v2932
    %v2934 = vsub.f32 1.0, %v2933
    %v2935 = vmul.f32 %v2932, %v2934
    %v2936 = vadd.f32 %v2932, %v2935
    %vm2937 = vweird.f32 %v2931
    %vm2938 = vweird.f32 %v2932
    %vm2939 = vmor %vm2937, %vm2938
    %v2940 = vsel %vm2939, %v2932, %v2936
    %v2941 = vand.u32 2147483647, %v2931
    %vm2942 = vcmp.eq.f32.partialorder %v2941, 8.507059e+37
    %v2943 = vand.u32 %v2931, 2147483648
    %v2944 = vor.u32 1.1754944e-38, %v2943
    %v2945 = vsel %vm2942, %v2944, %v2940
    %v2946 = vmul.f32 1.0, %v2945
    %v2947 = vxor.u32 %v2862, 2147483648
    %v2948 = vmul.f32 %v2947, 1.442695
    %v2949 = vpow.pop %v2948
    %v2950 = vadd.f32 %v2949, 1.0
    %v2951 = vrcp.pop %v2950
    %v2952 = vmul.f32 %v2950, %v2951
    %v2953 = vsub.f32 1.0, %v2952
    %v2954 = vmul.f32 %v2951, %v2953
    %v2955 = vadd.f32 %v2951, %v2954
    %vm2956 = vweird.f32 %v2950
    %vm2957 = vweird.f32 %v2951
    %vm2958 = vmor %vm2956, %vm2957
    %v2959 = vsel %vm2958, %v2951, %v2955
    %v2960 = vand.u32 2147483647, %v2950
    %vm2961 = vcmp.eq.f32.partialorder %v2960, 8.507059e+37
    %v2962 = vand.u32 %v2950, 2147483648
    %v2963 = vor.u32 1.1754944e-38, %v2962
    %v2964 = vsel %vm2961, %v2963, %v2959
    %v2965 = vmul.f32 1.0, %v2964
    %v2966 = vtanh.pop %v2863
    %v2967 = vxor.u32 %v2864, 2147483648
    %v2968 = vmul.f32 %v2967, 1.442695
    %v2969 = vpow.pop %v2968
    %v2970 = vadd.f32 %v2969, 1.0
    %v2971 = vrcp.pop %v2970
    %v2972 = vmul.f32 %v2970, %v2971
    %v2973 = vsub.f32 1.0, %v2972
    %v2974 = vmul.f32 %v2971, %v2973
    %v2975 = vadd.f32 %v2971, %v2974
    %vm2976 = vweird.f32 %v2970
    %vm2977 = vweird.f32 %v2971
    %vm2978 = vmor %vm2976, %vm2977
    %v2979 = vsel %vm2978, %v2971, %v2975
    %v2980 = vand.u32 2147483647, %v2970
    %vm2981 = vcmp.eq.f32.partialorder %v2980, 8.507059e+37
    %v2982 = vand.u32 %v2970, 2147483648
    %v2983 = vor.u32 1.1754944e-38, %v2982
    %v2984 = vsel %vm2981, %v2983, %v2979
    %v2985 = vmul.f32 1.0, %v2984
    %v2986 = vmul.f32 %v2965, %v2688
    %v2987 = vmul.f32 %v2946, %v2966
    %v2988 = vadd.f32 %v2986, %v2987
    %v2989 = vtanh.pop %v2988
    %v2990 = vmul.f32 %v2985, %v2989
    %v2991 = vsel %vm1405, %v2927, 0.0
    %s2992 = scalar_lea.vmem [#allocation3], 48
    %2993 = vst [vmem:[%s2992] sm:$0xff] %v2991
    %v2994 = vsel %vm1397, %v2990, 0.0
    %s2995 = scalar_lea.vmem [#allocation4], 8
    %2996 = vst [vmem:[%s2995] sm:$0xff] %v2994
    %v2997 = vsel %vm1405, %v2927, %v2685
    %v2998 = vsel %vm1405, %v2925, %v2686
    %v2999 = vsel %vm1397, %v2990, %v2687
    %v3000 = vsel %vm1397, %v2988, %v2688
    %v3001 = vld [vmem:[%s853] sm:$0xff]
    %v3002 = vld [vmem:[%s853 + $0x8] sm:$0xff]
    %v3003 = vld [vmem:[%s853 + $0x10] sm:$0xff]
    %v3004 = vld [vmem:[%s853 + $0x18] sm:$0xff]
    %3005 = vmatpush.msra.mxu0 %v696
    %3006 = vmatpush.msra.mxu0 %v692
    %3007 = vmatpush.msra.mxu0 %v688
    %3008 = vmatpush.msra.mxu0 %v684
    %3009 = vmatpush.msra.mxu0 %v680
    %3010 = vmatpush.msra.mxu0 %v676
    %3011 = vmatpush.msra.mxu0 %v672
    %3012 = vmatpush.msra.mxu0 %v668
    %3013 = vmatpush.msra.mxu0 %v664
    %3014 = vmatpush.msra.mxu0 %v660
    %3015 = vmatpush.msra.mxu0 %v656
    %3016 = vmatpush.msra.mxu0 %v652
    %3017 = vmatpush.msra.mxu0 %v648
    %3018 = vmatpush.msra.mxu0 %v644
    %3019 = vmatpush.msra.mxu0 %v640
    %3020 = vmatpush.msra.mxu0 %v636
    %3021 = vmatmul.f32.gmra.mxu0 %v2997
    %v3022 = vpop.f32.mrf.mxu0
    %v3023 = vadd.f32 0.0, %v3022
    %3024 = vdwg.mxu0
    %3025 = vmatpush.msra.mxu0 %v697
    %3026 = vmatpush.msra.mxu0 %v693
    %3027 = vmatpush.msra.mxu0 %v689
    %3028 = vmatpush.msra.mxu0 %v685
    %3029 = vmatpush.msra.mxu0 %v681
    %3030 = vmatpush.msra.mxu0 %v677
    %3031 = vmatpush.msra.mxu0 %v673
    %3032 = vmatpush.msra.mxu0 %v669
    %3033 = vmatpush.msra.mxu0 %v665
    %3034 = vmatpush.msra.mxu0 %v661
    %3035 = vmatpush.msra.mxu0 %v657
    %3036 = vmatpush.msra.mxu0 %v653
    %3037 = vmatpush.msra.mxu0 %v649
    %3038 = vmatpush.msra.mxu0 %v645
    %3039 = vmatpush.msra.mxu0 %v641
    %3040 = vmatpush.msra.mxu0 %v637
    %3041 = vmatmul.f32.gmra.mxu0 %v2997
    %v3042 = vpop.f32.mrf.mxu0
    %v3043 = vadd.f32 0.0, %v3042
    %3044 = vdwg.mxu0
    %3045 = vmatpush.msra.mxu0 %v698
    %3046 = vmatpush.msra.mxu0 %v694
    %3047 = vmatpush.msra.mxu0 %v690
    %3048 = vmatpush.msra.mxu0 %v686
    %3049 = vmatpush.msra.mxu0 %v682
    %3050 = vmatpush.msra.mxu0 %v678
    %3051 = vmatpush.msra.mxu0 %v674
    %3052 = vmatpush.msra.mxu0 %v670
    %3053 = vmatpush.msra.mxu0 %v666
    %3054 = vmatpush.msra.mxu0 %v662
    %3055 = vmatpush.msra.mxu0 %v658
    %3056 = vmatpush.msra.mxu0 %v654
    %3057 = vmatpush.msra.mxu0 %v650
    %3058 = vmatpush.msra.mxu0 %v646
    %3059 = vmatpush.msra.mxu0 %v642
    %3060 = vmatpush.msra.mxu0 %v638
    %3061 = vmatmul.f32.gmra.mxu0 %v2997
    %v3062 = vpop.f32.mrf.mxu0
    %v3063 = vadd.f32 0.0, %v3062
    %3064 = vdwg.mxu0
    %3065 = vmatpush.msra.mxu0 %v699
    %3066 = vmatpush.msra.mxu0 %v695
    %3067 = vmatpush.msra.mxu0 %v691
    %3068 = vmatpush.msra.mxu0 %v687
    %3069 = vmatpush.msra.mxu0 %v683
    %3070 = vmatpush.msra.mxu0 %v679
    %3071 = vmatpush.msra.mxu0 %v675
    %3072 = vmatpush.msra.mxu0 %v671
    %3073 = vmatpush.msra.mxu0 %v667
    %3074 = vmatpush.msra.mxu0 %v663
    %3075 = vmatpush.msra.mxu0 %v659
    %3076 = vmatpush.msra.mxu0 %v655
    %3077 = vmatpush.msra.mxu0 %v651
    %3078 = vmatpush.msra.mxu0 %v647
    %3079 = vmatpush.msra.mxu0 %v643
    %3080 = vmatpush.msra.mxu0 %v639
    %3081 = vmatmul.f32.gmra.mxu0 %v2997
    %v3082 = vpop.f32.mrf.mxu0
    %v3083 = vadd.f32 0.0, %v3082
    %3084 = vdwg.mxu0
    %v3085 = vadd.f32 %v3001, %v3023
    %v3086 = vadd.f32 %v3002, %v3043
    %v3087 = vadd.f32 %v3003, %v3063
    %v3088 = vadd.f32 %v3004, %v3083
    %v3089 = vld [vmem:[#allocation2 + $0x20] sm:$0xff]
    %v3090 = vld [vmem:[#allocation2 + $0x28] sm:$0xff]
    %v3091 = vld [vmem:[#allocation2 + $0x30] sm:$0xff]
    %v3092 = vld [vmem:[#allocation2 + $0x38] sm:$0xff]
    %3093 = vmatpush.msra.mxu0 %v760
    %3094 = vmatpush.msra.mxu0 %v756
    %3095 = vmatpush.msra.mxu0 %v752
    %3096 = vmatpush.msra.mxu0 %v748
    %3097 = vmatpush.msra.mxu0 %v744
    %3098 = vmatpush.msra.mxu0 %v740
    %3099 = vmatpush.msra.mxu0 %v736
    %3100 = vmatpush.msra.mxu0 %v732
    %3101 = vmatpush.msra.mxu0 %v728
    %3102 = vmatpush.msra.mxu0 %v724
    %3103 = vmatpush.msra.mxu0 %v720
    %3104 = vmatpush.msra.mxu0 %v716
    %3105 = vmatpush.msra.mxu0 %v712
    %3106 = vmatpush.msra.mxu0 %v708
    %3107 = vmatpush.msra.mxu0 %v704
    %3108 = vmatpush.msra.mxu0 %v700
    %3109 = vmatmul.f32.gmra.mxu0 %v2999
    %v3110 = vpop.f32.mrf.mxu0
    %v3111 = vadd.f32 0.0, %v3110
    %3112 = vdwg.mxu0
    %3113 = vmatpush.msra.mxu0 %v761
    %3114 = vmatpush.msra.mxu0 %v757
    %3115 = vmatpush.msra.mxu0 %v753
    %3116 = vmatpush.msra.mxu0 %v749
    %3117 = vmatpush.msra.mxu0 %v745
    %3118 = vmatpush.msra.mxu0 %v741
    %3119 = vmatpush.msra.mxu0 %v737
    %3120 = vmatpush.msra.mxu0 %v733
    %3121 = vmatpush.msra.mxu0 %v729
    %3122 = vmatpush.msra.mxu0 %v725
    %3123 = vmatpush.msra.mxu0 %v721
    %3124 = vmatpush.msra.mxu0 %v717
    %3125 = vmatpush.msra.mxu0 %v713
    %3126 = vmatpush.msra.mxu0 %v709
    %3127 = vmatpush.msra.mxu0 %v705
    %3128 = vmatpush.msra.mxu0 %v701
    %3129 = vmatmul.f32.gmra.mxu0 %v2999
    %v3130 = vpop.f32.mrf.mxu0
    %v3131 = vadd.f32 0.0, %v3130
    %3132 = vdwg.mxu0
    %3133 = vmatpush.msra.mxu0 %v762
    %3134 = vmatpush.msra.mxu0 %v758
    %3135 = vmatpush.msra.mxu0 %v754
    %3136 = vmatpush.msra.mxu0 %v750
    %3137 = vmatpush.msra.mxu0 %v746
    %3138 = vmatpush.msra.mxu0 %v742
    %3139 = vmatpush.msra.mxu0 %v738
    %3140 = vmatpush.msra.mxu0 %v734
    %3141 = vmatpush.msra.mxu0 %v730
    %3142 = vmatpush.msra.mxu0 %v726
    %3143 = vmatpush.msra.mxu0 %v722
    %3144 = vmatpush.msra.mxu0 %v718
    %3145 = vmatpush.msra.mxu0 %v714
    %3146 = vmatpush.msra.mxu0 %v710
    %3147 = vmatpush.msra.mxu0 %v706
    %3148 = vmatpush.msra.mxu0 %v702
    %3149 = vmatmul.f32.gmra.mxu0 %v2999
    %v3150 = vpop.f32.mrf.mxu0
    %v3151 = vadd.f32 0.0, %v3150
    %3152 = vdwg.mxu0
    %3153 = vmatpush.msra.mxu0 %v763
    %3154 = vmatpush.msra.mxu0 %v759
    %3155 = vmatpush.msra.mxu0 %v755
    %3156 = vmatpush.msra.mxu0 %v751
    %3157 = vmatpush.msra.mxu0 %v747
    %3158 = vmatpush.msra.mxu0 %v743
    %3159 = vmatpush.msra.mxu0 %v739
    %3160 = vmatpush.msra.mxu0 %v735
    %3161 = vmatpush.msra.mxu0 %v731
    %3162 = vmatpush.msra.mxu0 %v727
    %3163 = vmatpush.msra.mxu0 %v723
    %3164 = vmatpush.msra.mxu0 %v719
    %3165 = vmatpush.msra.mxu0 %v715
    %3166 = vmatpush.msra.mxu0 %v711
    %3167 = vmatpush.msra.mxu0 %v707
    %3168 = vmatpush.msra.mxu0 %v703
    %3169 = vmatmul.f32.gmra.mxu0 %v2999
    %v3170 = vpop.f32.mrf.mxu0
    %v3171 = vadd.f32 0.0, %v3170
    %3172 = vdwg.mxu0
    %v3173 = vadd.f32 %v3089, %v3111
    %v3174 = vadd.f32 %v3090, %v3131
    %v3175 = vadd.f32 %v3091, %v3151
    %v3176 = vadd.f32 %v3092, %v3171
    %v3177 = vxor.u32 %v3085, 2147483648
    %v3178 = vmul.f32 %v3177, 1.442695
    %v3179 = vpow.pop %v3178
    %v3180 = vadd.f32 %v3179, 1.0
    %v3181 = vrcp.pop %v3180
    %v3182 = vmul.f32 %v3180, %v3181
    %v3183 = vsub.f32 1.0, %v3182
    %v3184 = vmul.f32 %v3181, %v3183
    %v3185 = vadd.f32 %v3181, %v3184
    %vm3186 = vweird.f32 %v3180
    %vm3187 = vweird.f32 %v3181
    %vm3188 = vmor %vm3186, %vm3187
    %v3189 = vsel %vm3188, %v3181, %v3185
    %v3190 = vand.u32 2147483647, %v3180
    %vm3191 = vcmp.eq.f32.partialorder %v3190, 8.507059e+37
    %v3192 = vand.u32 %v3180, 2147483648
    %v3193 = vor.u32 1.1754944e-38, %v3192
    %v3194 = vsel %vm3191, %v3193, %v3189
    %v3195 = vmul.f32 1.0, %v3194
    %v3196 = vxor.u32 %v3086, 2147483648
    %v3197 = vmul.f32 %v3196, 1.442695
    %v3198 = vpow.pop %v3197
    %v3199 = vadd.f32 %v3198, 1.0
    %v3200 = vrcp.pop %v3199
    %v3201 = vmul.f32 %v3199, %v3200
    %v3202 = vsub.f32 1.0, %v3201
    %v3203 = vmul.f32 %v3200, %v3202
    %v3204 = vadd.f32 %v3200, %v3203
    %vm3205 = vweird.f32 %v3199
    %vm3206 = vweird.f32 %v3200
    %vm3207 = vmor %vm3205, %vm3206
    %v3208 = vsel %vm3207, %v3200, %v3204
    %v3209 = vand.u32 2147483647, %v3199
    %vm3210 = vcmp.eq.f32.partialorder %v3209, 8.507059e+37
    %v3211 = vand.u32 %v3199, 2147483648
    %v3212 = vor.u32 1.1754944e-38, %v3211
    %v3213 = vsel %vm3210, %v3212, %v3208
    %v3214 = vmul.f32 1.0, %v3213
    %v3215 = vtanh.pop %v3087
    %v3216 = vxor.u32 %v3088, 2147483648
    %v3217 = vmul.f32 %v3216, 1.442695
    %v3218 = vpow.pop %v3217
    %v3219 = vadd.f32 %v3218, 1.0
    %v3220 = vrcp.pop %v3219
    %v3221 = vmul.f32 %v3219, %v3220
    %v3222 = vsub.f32 1.0, %v3221
    %v3223 = vmul.f32 %v3220, %v3222
    %v3224 = vadd.f32 %v3220, %v3223
    %vm3225 = vweird.f32 %v3219
    %vm3226 = vweird.f32 %v3220
    %vm3227 = vmor %vm3225, %vm3226
    %v3228 = vsel %vm3227, %v3220, %v3224
    %v3229 = vand.u32 2147483647, %v3219
    %vm3230 = vcmp.eq.f32.partialorder %v3229, 8.507059e+37
    %v3231 = vand.u32 %v3219, 2147483648
    %v3232 = vor.u32 1.1754944e-38, %v3231
    %v3233 = vsel %vm3230, %v3232, %v3228
    %v3234 = vmul.f32 1.0, %v3233
    %v3235 = vmul.f32 %v3214, %v2998
    %v3236 = vmul.f32 %v3195, %v3215
    %v3237 = vadd.f32 %v3235, %v3236
    %v3238 = vtanh.pop %v3237
    %v3239 = vmul.f32 %v3234, %v3238
    %v3240 = vxor.u32 %v3173, 2147483648
    %v3241 = vmul.f32 %v3240, 1.442695
    %v3242 = vpow.pop %v3241
    %v3243 = vadd.f32 %v3242, 1.0
    %v3244 = vrcp.pop %v3243
    %v3245 = vmul.f32 %v3243, %v3244
    %v3246 = vsub.f32 1.0, %v3245
    %v3247 = vmul.f32 %v3244, %v3246
    %v3248 = vadd.f32 %v3244, %v3247
    %vm3249 = vweird.f32 %v3243
    %vm3250 = vweird.f32 %v3244
    %vm3251 = vmor %vm3249, %vm3250
    %v3252 = vsel %vm3251, %v3244, %v3248
    %v3253 = vand.u32 2147483647, %v3243
    %vm3254 = vcmp.eq.f32.partialorder %v3253, 8.507059e+37
    %v3255 = vand.u32 %v3243, 2147483648
    %v3256 = vor.u32 1.1754944e-38, %v3255
    %v3257 = vsel %vm3254, %v3256, %v3252
    %v3258 = vmul.f32 1.0, %v3257
    %v3259 = vxor.u32 %v3174, 2147483648
    %v3260 = vmul.f32 %v3259, 1.442695
    %v3261 = vpow.pop %v3260
    %v3262 = vadd.f32 %v3261, 1.0
    %v3263 = vrcp.pop %v3262
    %v3264 = vmul.f32 %v3262, %v3263
    %v3265 = vsub.f32 1.0, %v3264
    %v3266 = vmul.f32 %v3263, %v3265
    %v3267 = vadd.f32 %v3263, %v3266
    %vm3268 = vweird.f32 %v3262
    %vm3269 = vweird.f32 %v3263
    %vm3270 = vmor %vm3268, %vm3269
    %v3271 = vsel %vm3270, %v3263, %v3267
    %v3272 = vand.u32 2147483647, %v3262
    %vm3273 = vcmp.eq.f32.partialorder %v3272, 8.507059e+37
    %v3274 = vand.u32 %v3262, 2147483648
    %v3275 = vor.u32 1.1754944e-38, %v3274
    %v3276 = vsel %vm3273, %v3275, %v3271
    %v3277 = vmul.f32 1.0, %v3276
    %v3278 = vtanh.pop %v3175
    %v3279 = vxor.u32 %v3176, 2147483648
    %v3280 = vmul.f32 %v3279, 1.442695
    %v3281 = vpow.pop %v3280
    %v3282 = vadd.f32 %v3281, 1.0
    %v3283 = vrcp.pop %v3282
    %v3284 = vmul.f32 %v3282, %v3283
    %v3285 = vsub.f32 1.0, %v3284
    %v3286 = vmul.f32 %v3283, %v3285
    %v3287 = vadd.f32 %v3283, %v3286
    %vm3288 = vweird.f32 %v3282
    %vm3289 = vweird.f32 %v3283
    %vm3290 = vmor %vm3288, %vm3289
    %v3291 = vsel %vm3290, %v3283, %v3287
    %v3292 = vand.u32 2147483647, %v3282
    %vm3293 = vcmp.eq.f32.partialorder %v3292, 8.507059e+37
    %v3294 = vand.u32 %v3282, 2147483648
    %v3295 = vor.u32 1.1754944e-38, %v3294
    %v3296 = vsel %vm3293, %v3295, %v3291
    %v3297 = vmul.f32 1.0, %v3296
    %v3298 = vmul.f32 %v3277, %v3000
    %v3299 = vmul.f32 %v3258, %v3278
    %v3300 = vadd.f32 %v3298, %v3299
    %v3301 = vtanh.pop %v3300
    %v3302 = vmul.f32 %v3297, %v3301
    %v3303 = vsel %vm1081, %v3239, 0.0
    %s3304 = scalar_lea.vmem [#allocation3], 56
    %3305 = vst [vmem:[%s3304] sm:$0xff] %v3303
    %v3306 = vsel %vm1074, %v3302, 0.0
    %3307 = vst [vmem:[#allocation4] sm:$0xff] %v3306
    %v3308 = vsel %vm1081, %v3239, %v2997
    %v3309 = vsel %vm1074, %v3302, %v2999
    %v3310 = vld [vmem:[#allocation3] sm:$0xff]
    %v3311 = vld [vmem:[#allocation3 + $0x8] sm:$0xff]
    %v3312 = vld [vmem:[#allocation3 + $0x10] sm:$0xff]
    %v3313 = vld [vmem:[#allocation3 + $0x18] sm:$0xff]
    %v3314 = vld [vmem:[#allocation3 + $0x20] sm:$0xff]
    %v3315 = vld [vmem:[#allocation3 + $0x28] sm:$0xff]
    %v3316 = vld [vmem:[#allocation3 + $0x30] sm:$0xff]
    %v3317 = vld [vmem:[#allocation3 + $0x38] sm:$0xff]
    %3318 = vst [vmem:[#allocation13] sm:$0xff] %v3310
    %3319 = vst [vmem:[#allocation13 + $0x10] sm:$0xff] %v3311
    %3320 = vst [vmem:[#allocation13 + $0x20] sm:$0xff] %v3312
    %3321 = vst [vmem:[#allocation13 + $0x30] sm:$0xff] %v3313
    %3322 = vst [vmem:[#allocation13 + $0x40] sm:$0xff] %v3314
    %3323 = vst [vmem:[#allocation13 + $0x50] sm:$0xff] %v3315
    %3324 = vst [vmem:[#allocation13 + $0x60] sm:$0xff] %v3316
    %3325 = vst [vmem:[#allocation13 + $0x70] sm:$0xff] %v3317
    %v3326 = vld [vmem:[#allocation4] sm:$0xff]
    %v3327 = vld [vmem:[#allocation4 + $0x8] sm:$0xff]
    %v3328 = vld [vmem:[#allocation4 + $0x10] sm:$0xff]
    %v3329 = vld [vmem:[#allocation4 + $0x18] sm:$0xff]
    %v3330 = vld [vmem:[#allocation4 + $0x20] sm:$0xff]
    %v3331 = vld [vmem:[#allocation4 + $0x28] sm:$0xff]
    %v3332 = vld [vmem:[#allocation4 + $0x30] sm:$0xff]
    %v3333 = vld [vmem:[#allocation4 + $0x38] sm:$0xff]
    %3334 = vst [vmem:[#allocation13 + $0x8] sm:$0xff] %v3326
    %3335 = vst [vmem:[#allocation13 + $0x18] sm:$0xff] %v3327
    %3336 = vst [vmem:[#allocation13 + $0x28] sm:$0xff] %v3328
    %3337 = vst [vmem:[#allocation13 + $0x38] sm:$0xff] %v3329
    %3338 = vst [vmem:[#allocation13 + $0x48] sm:$0xff] %v3330
    %3339 = vst [vmem:[#allocation13 + $0x58] sm:$0xff] %v3331
    %3340 = vst [vmem:[#allocation13 + $0x68] sm:$0xff] %v3332
    %3341 = vst [vmem:[#allocation13 + $0x78] sm:$0xff] %v3333
    %3342 = vst [vmem:[#allocation14] sm:$0xff] %v3308
    %3343 = vst [vmem:[#allocation14 + $0x8] sm:$0xff] %v3309
    // Predicated region
    $region42: #{tpu_custom_call.1} parent=1 // pred_check
      _
    $region43: #{tpu_custom_call.1} parent=1 // pred_check_branch
      %3345 = sbr.rel (0) target = $region45
    $region44: #{tpu_custom_call.1} parent=1 // pred_region
      %3347 = vsyncadd [#allocation7], 0
      %s3348 = sshll.u32 [#allocation13], 4
      %s3349 = int_to_ptr.vmem [resolvable:$true] %s3348
      %s3350 = sshll.u32 %s6, 4
      %s3351 = int_to_ptr.hbm [resolvable:$true] %s3350
      %3356 = dma.vmem_to_hbm [thread:$0]  %s3349, 2048, %s3351, [#allocation7], 256, 256, 16
    $region45: #{tpu_custom_call.1} parent=1 // pred_fallthru
      _
    // Predicated region
    $region46: #{tpu_custom_call.1} parent=1 // pred_check
      _
    $region47: #{tpu_custom_call.1} parent=1 // pred_check_branch
      %3358 = sbr.rel (0) target = $region49
    $region48: #{tpu_custom_call.1} parent=1 // pred_region
      %3360 = vsyncadd [#allocation15], 0
      %s3362 = sshll.u32 [#allocation14], 4
      %s3363 = int_to_ptr.vmem [resolvable:$true] %s3362
      %s3364 = sshll.u32 %s7, 4
      %s3365 = int_to_ptr.hbm [resolvable:$true] %s3364
      %3367 = dma.vmem_to_hbm [thread:$0]  %s3363, 256, %s3365, [#allocation15]
    $region49: #{tpu_custom_call.1} parent=1 // pred_fallthru
      _
    // Predicated region
    $region50: #{tpu_custom_call.1} parent=1 // pred_check
      _
    $region51: #{tpu_custom_call.1} parent=1 // pred_check_branch
      %3369 = sbr.rel (0) target = $region53
    $region52: #{tpu_custom_call.1} parent=1 // pred_region
      %3371 = dma.done [#allocation7], 2048
    $region53: #{tpu_custom_call.1} parent=1 // pred_fallthru
      _
    // Predicated region
    $region54: #{tpu_custom_call.1} parent=1 // pred_check
      _
    $region55: #{tpu_custom_call.1} parent=1 // pred_check_branch
      %3373 = sbr.rel (0) target = $region57
    $region56: #{tpu_custom_call.1} parent=1 // pred_region
      %3375 = dma.done [#allocation15], 256
    $region57: #{tpu_custom_call.1} parent=1 // pred_fallthru
      _
    %3376 = vsyncpa [#allocation6], 1
    %3377 = vsyncpa [#allocation9], 1
    %3378 = vsyncpa [#allocation12], 1
    %3379 = vsyncpa [#allocation7], 1
    %3380 = vsyncpa [#allocation15], 1

</llo_original>
